<compile_context>
chip_gen: v6e
topology: v6e:2x2x1
jax: 0.10.0
libtpu: 0.0.40
codegen_flags: <defaults>
</compile_context>

<pallas_src>
import functools

import jax
import jax.numpy as jnp
from jax.experimental import pallas as pl
from jax.experimental.pallas import tpu as pltpu

_K = 7                 # spatial-attention conv kernel size
_PAD = (_K - 1) // 2   # 'same' padding


def _cbam_kernel(x_ref, w1t_ref, w2t_ref, wsp_ref, o_ref, *, w):
    x = x_ref[...]                                  # (NB, C, HW) f32, lane-dense
    nb, c, hw = x.shape

    # ---------------- Channel attention ----------------
    # Global avg / max pooling over the flattened spatial axis.
    p_avg = jnp.sum(x, axis=2) * (1.0 / hw)         # (NB, C)
    p_max = jnp.max(x, axis=2)                      # (NB, C)
    p2 = jnp.concatenate([p_avg, p_max], axis=0)    # (2*NB, C): one fused MLP pass

    hid = jnp.maximum(
        jnp.dot(p2, w1t_ref[...], preferred_element_type=jnp.float32), 0.0)
    mlp = jnp.dot(hid, w2t_ref[...], preferred_element_type=jnp.float32)  # (2*NB, C)
    ca = jax.nn.sigmoid(mlp[:nb] + mlp[nb:])        # (NB, C)
    out1 = x * ca[:, :, None]                       # (NB, C, HW)

    # ---------------- Spatial attention ----------------
    avg_c = jnp.sum(out1, axis=1) * (1.0 / c)       # (NB, HW) channel-mean map
    max_c = jnp.max(out1, axis=1)                   # (NB, HW) channel-max map

    # Zero-pad the flat maps once; every conv tap becomes a static slice (flat shift).
    pad = max(_PAD * (w + 1), 64)
    zpad = jnp.zeros((nb, pad), jnp.float32)
    avg_f = jnp.concatenate([zpad, avg_c, zpad], axis=1)   # (NB, HW + 2*pad)
    max_f = jnp.concatenate([zpad, max_c, zpad], axis=1)

    # Column index (w coordinate) of each flat position; used to mask out taps that
    # would cross a row boundary after the flat shift.
    col = jax.lax.broadcasted_iota(jnp.int32, (1, hw), 1) % w

    acc = jnp.zeros((nb, hw), jnp.float32)
    for dj in range(_K):
        ox = dj - _PAD
        if ox != 0:
            mask = ((col + ox >= 0) & (col + ox < w)).astype(jnp.float32)  # (1, HW)
        for di in range(_K):
            oy = di - _PAD
            s = oy * w + ox                          # flat shift for this tap
            a_sh = avg_f[:, pad + s:pad + s + hw]    # (NB, HW) shifted avg map
            m_sh = max_f[:, pad + s:pad + s + hw]    # (NB, HW) shifted max map
            wa = wsp_ref[0, di * _K + dj]            # scalar weight from SMEM
            wm = wsp_ref[1, di * _K + dj]
            contrib = wa * a_sh + wm * m_sh
            if ox != 0:
                contrib = contrib * mask
            acc = acc + contrib

    sa = jax.nn.sigmoid(acc)                         # (NB, HW) spatial attention map
    o_ref[...] = (out1 * sa[:, None, :]).astype(o_ref.dtype)


def _pick_batch_block(n, c, hw, itemsize, vmem_budget=24 * 1024 * 1024):
    """Largest NB dividing N such that (in+out) double-buffers fit the VMEM budget
    and the grid still has >= 2 steps (keeps both v7x TensorCores busy)."""
    per_batch = c * hw * itemsize
    max_nb = max(1, vmem_budget // (4 * per_batch))  # 2 buffers x double-buffered
    best = 1
    for nb in range(min(n, max_nb), 0, -1):
        if n % nb == 0 and n // nb >= 2:
            best = nb
            break
    return best


def cbam_pallas(x, fc1_w, fc2_w, spatial_w):
    """x: (N, C, H, W); fc1_w: (C//r, C); fc2_w: (C, C//r); spatial_w: (1, 2, 7, 7)."""
    N, C, H, W = x.shape
    Ch = fc1_w.shape[0]
    HW = H * W

    x3 = x.reshape(N, C, HW)                                   # lane-dense layout
    w1t = fc1_w.T.astype(jnp.float32)                          # (C, Ch)
    w2t = fc2_w.T.astype(jnp.float32)                          # (Ch, C)
    wsp = spatial_w.reshape(2, _K * _K).astype(jnp.float32)    # (2, 49) -> SMEM

    nb = _pick_batch_block(N, C, HW, x3.dtype.itemsize)

    grid_spec = pltpu.PrefetchScalarGridSpec(
        num_scalar_prefetch=0,
        grid=(N // nb,),
        in_specs=[
            pl.BlockSpec((nb, C, HW), lambda n: (n, 0, 0)),
            pl.BlockSpec((C, Ch), lambda n: (0, 0)),
            pl.BlockSpec((Ch, C), lambda n: (0, 0)),
            pl.BlockSpec(memory_space=pltpu.MemorySpace.SMEM),
        ],
        out_specs=pl.BlockSpec((nb, C, HW), lambda n: (n, 0, 0)),
    )
    out3 = pl.pallas_call(
        functools.partial(_cbam_kernel, w=W),
        out_shape=jax.ShapeDtypeStruct((N, C, HW), x.dtype),
        grid_spec=grid_spec,
        compiler_params=pltpu.CompilerParams(dimension_semantics=("parallel",)),
    )(x3, w1t, w2t, wsp)
    return out3.reshape(N, C, H, W)


def cbam_ref(x, fc1_w, fc2_w, spatial_w):
    """Pure-JAX reference matching the PyTorch CBAM forward."""
    avg_p = jnp.mean(x, axis=(2, 3))
    max_p = jnp.max(x, axis=(2, 3))

    def mlp(p):
        return jax.nn.relu(p @ fc1_w.T) @ fc2_w.T

    ca = jax.nn.sigmoid(mlp(avg_p) + mlp(max_p))
    out = x * ca[:, :, None, None]

    avg_c = jnp.mean(out, axis=1, keepdims=True)
    max_c = jnp.max(out, axis=1, keepdims=True)
    cat = jnp.concatenate([avg_c, max_c], axis=1)
    conv = jax.lax.conv_general_dilated(
        cat, spatial_w, window_strides=(1, 1),
        padding=[(_PAD, _PAD), (_PAD, _PAD)],
        dimension_numbers=("NCHW", "OIHW", "NCHW"))
    sa = jax.nn.sigmoid(conv)
    return out * sa


if __name__ == "__main__":
    key = jax.random.PRNGKey(0)
    k1, k2, k3, k4 = jax.random.split(key, 4)

    # in_planes must be >= ratio for the PyTorch module to be well-formed.
    N, C, H, W = 2, 32, 16, 16
    ratio = 16
    Ch = C // ratio

    x = jax.random.normal(k1, (N, C, H, W), dtype=jnp.float32)
    fc1_w = 0.1 * jax.random.normal(k2, (Ch, C), dtype=jnp.float32)       # Conv2d(C, C//r, 1)
    fc2_w = 0.1 * jax.random.normal(k3, (C, Ch), dtype=jnp.float32)       # Conv2d(C//r, C, 1)
    spatial_w = 0.1 * jax.random.normal(k4, (1, 2, _K, _K), dtype=jnp.float32)  # Conv2d(2, 1, 7)

    out = jax.block_until_ready(cbam_pallas(x, fc1_w, fc2_w, spatial_w))
    ref = jax.block_until_ready(cbam_ref(x, fc1_w, fc2_w, spatial_w))

    max_err = float(jnp.max(jnp.abs(out - ref)))
    assert out.shape == (N, C, H, W)
    assert max_err < 2e-3, f"mismatch vs reference, max abs err = {max_err}"

    print("KERNEL_OK")
</pallas_src>

<mosaic_0001>
module attributes {stable_mosaic.version = 11 : i64} {
  func.func @_cbam_kernel(%arg0: i32, %arg1: memref<1x32x256xf32, #tpu.memory_space<vmem>>, %arg2: memref<32x2xf32, #tpu.memory_space<vmem>>, %arg3: memref<2x32xf32, #tpu.memory_space<vmem>>, %arg4: memref<2x49xf32, #tpu.memory_space<smem>>, %arg5: memref<1x32x256xf32, #tpu.memory_space<vmem>>) attributes {dimension_semantics = [#tpu.dimension_semantics<parallel>], iteration_bounds = array<i64: 2>, scalar_prefetch = 0 : i64, scratch_operands = 0 : i64, tpu.core_type = #tpu.core_type<tc>, window_params = [{transform_indices = @transform_0, window_bounds = array<i64: 1, 32, 256>}, {pipeline_mode = #tpu.pipeline_mode<synchronous>, transform_indices = @transform_1, window_bounds = array<i64: 32, 2>}, {pipeline_mode = #tpu.pipeline_mode<synchronous>, transform_indices = @transform_2, window_bounds = array<i64: 2, 32>}, {transform_indices = @transform_3, window_bounds = array<i64: 2, 49>}, {transform_indices = @transform_4, window_bounds = array<i64: 1, 32, 256>}]} {
    %c0 = arith.constant 0 : index
    %c0_0 = arith.constant 0 : index
    %c0_1 = arith.constant 0 : index
    %0 = vector.load %arg1[%c0, %c0_0, %c0_1] : memref<1x32x256xf32, #tpu.memory_space<vmem>>, vector<1x32x256xf32>
    %cst = arith.constant dense<0.000000e+00> : vector<1x32xf32>
    %1 = vector.multi_reduction <add>, %0, %cst [2] : vector<1x32x256xf32> to vector<1x32xf32>
    %cst_2 = arith.constant 3.906250e-03 : f32
    %2 = vector.broadcast %cst_2 : f32 to vector<1x32xf32>
    %3 = arith.mulf %1, %2 : vector<1x32xf32>
    %cst_3 = arith.constant dense<0xFF800000> : vector<1x32xf32>
    %4 = vector.multi_reduction <maximumf>, %0, %cst_3 [2] : vector<1x32x256xf32> to vector<1x32xf32>
    %5 = tpu.concatenate %3, %4 in 0 : vector<1x32xf32>, vector<1x32xf32> -> vector<2x32xf32>
    %c0_4 = arith.constant 0 : index
    %c0_5 = arith.constant 0 : index
    %6 = vector.load %arg2[%c0_4, %c0_5] : memref<32x2xf32, #tpu.memory_space<vmem>>, vector<32x2xf32>
    %cst_6 = arith.constant dense<0.000000e+00> : vector<2x2xf32>
    %7 = tpu.matmul %5, %6, %cst_6 {dimension_numbers = #tpu.dot_dimension_numbers<[1], [0], [0], [1], [0, 0, 1, 1], [], []>} : vector<2x32xf32>, vector<32x2xf32>, vector<2x2xf32> -> vector<2x2xf32>
    %cst_7 = arith.constant 0.000000e+00 : f32
    %8 = vector.broadcast %cst_7 : f32 to vector<2x2xf32>
    %9 = arith.maximumf %7, %8 : vector<2x2xf32>
    %c0_8 = arith.constant 0 : index
    %c0_9 = arith.constant 0 : index
    %10 = vector.load %arg3[%c0_8, %c0_9] : memref<2x32xf32, #tpu.memory_space<vmem>>, vector<2x32xf32>
    %cst_10 = arith.constant dense<0.000000e+00> : vector<2x32xf32>
    %11 = tpu.matmul %9, %10, %cst_10 {dimension_numbers = #tpu.dot_dimension_numbers<[1], [0], [0], [1], [0, 0, 1, 1], [], []>} : vector<2x2xf32>, vector<2x32xf32>, vector<2x32xf32> -> vector<2x32xf32>
    %12 = vector.extract_strided_slice %11 {offsets = [0, 0], sizes = [1, 32], strides = [1, 1]} : vector<2x32xf32> to vector<1x32xf32>
    %13 = vector.extract_strided_slice %11 {offsets = [1, 0], sizes = [1, 32], strides = [1, 1]} : vector<2x32xf32> to vector<1x32xf32>
    %14 = arith.addf %12, %13 : vector<1x32xf32>
    %15 = arith.negf %14 : vector<1x32xf32>
    %16 = math.exp %15 : vector<1x32xf32>
    %cst_11 = arith.constant 1.000000e+00 : f32
    %17 = vector.broadcast %cst_11 : f32 to vector<1x32xf32>
    %18 = arith.addf %17, %16 : vector<1x32xf32>
    %19 = arith.divf %17, %18 : vector<1x32xf32>
    %20 = vector.shape_cast %19 : vector<1x32xf32> to vector<1x32x1xf32>
    %21 = vector.broadcast %20 : vector<1x32x1xf32> to vector<1x32x256xf32>
    %22 = arith.mulf %0, %21 : vector<1x32x256xf32>
    %cst_12 = arith.constant dense<0.000000e+00> : vector<1x256xf32>
    %23 = vector.multi_reduction <add>, %22, %cst_12 [1] : vector<1x32x256xf32> to vector<1x256xf32>
    %cst_13 = arith.constant 3.125000e-02 : f32
    %24 = vector.broadcast %cst_13 : f32 to vector<1x256xf32>
    %25 = arith.mulf %23, %24 : vector<1x256xf32>
    %cst_14 = arith.constant dense<0xFF800000> : vector<1x256xf32>
    %26 = vector.multi_reduction <maximumf>, %22, %cst_14 [1] : vector<1x32x256xf32> to vector<1x256xf32>
    %cst_15 = arith.constant 0.000000e+00 : f32
    %27 = vector.broadcast %cst_15 : f32 to vector<1x64xf32>
    %28 = tpu.concatenate %27, %25, %27 in 1 : vector<1x64xf32>, vector<1x256xf32>, vector<1x64xf32> -> vector<1x384xf32>
    %29 = tpu.concatenate %27, %26, %27 in 1 : vector<1x64xf32>, vector<1x256xf32>, vector<1x64xf32> -> vector<1x384xf32>
    %30 = tpu.iota {dimensions = array<i32: 1>} : vector<1x256xi32>
    %c16_i32 = arith.constant 16 : i32
    %c0_i32 = arith.constant 0 : i32
    %31 = arith.cmpi eq, %c16_i32, %c0_i32 : i32
    %c1_i32 = arith.constant 1 : i32
    %32 = arith.select %31, %c1_i32, %c16_i32 : i32
    %33 = vector.broadcast %32 : i32 to vector<1x256xi32>
    %34 = arith.remsi %30, %33 : vector<1x256xi32>
    %c0_i32_16 = arith.constant 0 : i32
    %35 = vector.broadcast %c0_i32_16 : i32 to vector<1x256xi32>
    %36 = arith.cmpi ne, %34, %35 : vector<1x256xi32>
    %c0_i32_17 = arith.constant 0 : i32
    %37 = vector.broadcast %c0_i32_17 : i32 to vector<1x256xi32>
    %38 = arith.cmpi slt, %34, %37 : vector<1x256xi32>
    %c0_i32_18 = arith.constant 0 : i32
    %39 = arith.cmpi slt, %32, %c0_i32_18 : i32
    %40 = vector.broadcast %39 : i1 to vector<1x256xi1>
    %41 = vector.broadcast %40 : vector<1x256xi1> to vector<1x256xi1>
    %42 = arith.xori %38, %41 : vector<1x256xi1>
    %43 = arith.andi %42, %36 : vector<1x256xi1>
    %44 = vector.broadcast %32 : i32 to vector<1x256xi32>
    %45 = arith.addi %34, %44 : vector<1x256xi32>
    %46 = arith.select %43, %45, %34 : vector<1x256xi1>, vector<1x256xi32>
    %cst_19 = arith.constant 0.000000e+00 : f32
    %47 = vector.broadcast %cst_19 : f32 to vector<1x256xf32>
    %c-3_i32 = arith.constant -3 : i32
    %48 = vector.broadcast %c-3_i32 : i32 to vector<1x256xi32>
    %49 = arith.addi %46, %48 : vector<1x256xi32>
    %c0_i32_20 = arith.constant 0 : i32
    %50 = vector.broadcast %c0_i32_20 : i32 to vector<1x256xi32>
    %51 = arith.cmpi sge, %49, %50 : vector<1x256xi32>
    %c-3_i32_21 = arith.constant -3 : i32
    %52 = vector.broadcast %c-3_i32_21 : i32 to vector<1x256xi32>
    %53 = arith.addi %46, %52 : vector<1x256xi32>
    %c16_i32_22 = arith.constant 16 : i32
    %54 = vector.broadcast %c16_i32_22 : i32 to vector<1x256xi32>
    %55 = arith.cmpi slt, %53, %54 : vector<1x256xi32>
    %56 = arith.andi %51, %55 : vector<1x256xi1>
    %57 = arith.extui %56 : vector<1x256xi1> to vector<1x256xi32>
    %58 = arith.sitofp %57 : vector<1x256xi32> to vector<1x256xf32>
    %59 = vector.extract_strided_slice %28 {offsets = [0, 13], sizes = [1, 256], strides = [1, 1]} : vector<1x384xf32> to vector<1x256xf32>
    %60 = vector.extract_strided_slice %29 {offsets = [0, 13], sizes = [1, 256], strides = [1, 1]} : vector<1x384xf32> to vector<1x256xf32>
    %c0_23 = arith.constant 0 : index
    %c0_24 = arith.constant 0 : index
    %61 = memref.load %arg4[%c0_23, %c0_24] : memref<2x49xf32, #tpu.memory_space<smem>>
    %c1 = arith.constant 1 : index
    %c0_25 = arith.constant 0 : index
    %62 = memref.load %arg4[%c1, %c0_25] : memref<2x49xf32, #tpu.memory_space<smem>>
    %63 = vector.broadcast %61 : f32 to vector<1x256xf32>
    %64 = arith.mulf %63, %59 : vector<1x256xf32>
    %65 = vector.broadcast %62 : f32 to vector<1x256xf32>
    %66 = arith.mulf %65, %60 : vector<1x256xf32>
    %67 = arith.addf %64, %66 : vector<1x256xf32>
    %68 = arith.mulf %67, %58 : vector<1x256xf32>
    %69 = arith.addf %47, %68 : vector<1x256xf32>
    %70 = vector.extract_strided_slice %28 {offsets = [0, 29], sizes = [1, 256], strides = [1, 1]} : vector<1x384xf32> to vector<1x256xf32>
    %71 = vector.extract_strided_slice %29 {offsets = [0, 29], sizes = [1, 256], strides = [1, 1]} : vector<1x384xf32> to vector<1x256xf32>
    %c0_26 = arith.constant 0 : index
    %c7 = arith.constant 7 : index
    %72 = memref.load %arg4[%c0_26, %c7] : memref<2x49xf32, #tpu.memory_space<smem>>
    %c1_27 = arith.constant 1 : index
    %c7_28 = arith.constant 7 : index
    %73 = memref.load %arg4[%c1_27, %c7_28] : memref<2x49xf32, #tpu.memory_space<smem>>
    %74 = vector.broadcast %72 : f32 to vector<1x256xf32>
    %75 = arith.mulf %74, %70 : vector<1x256xf32>
    %76 = vector.broadcast %73 : f32 to vector<1x256xf32>
    %77 = arith.mulf %76, %71 : vector<1x256xf32>
    %78 = arith.addf %75, %77 : vector<1x256xf32>
    %79 = arith.mulf %78, %58 : vector<1x256xf32>
    %80 = arith.addf %69, %79 : vector<1x256xf32>
    %81 = vector.extract_strided_slice %28 {offsets = [0, 45], sizes = [1, 256], strides = [1, 1]} : vector<1x384xf32> to vector<1x256xf32>
    %82 = vector.extract_strided_slice %29 {offsets = [0, 45], sizes = [1, 256], strides = [1, 1]} : vector<1x384xf32> to vector<1x256xf32>
    %c0_29 = arith.constant 0 : index
    %c14 = arith.constant 14 : index
    %83 = memref.load %arg4[%c0_29, %c14] : memref<2x49xf32, #tpu.memory_space<smem>>
    %c1_30 = arith.constant 1 : index
    %c14_31 = arith.constant 14 : index
    %84 = memref.load %arg4[%c1_30, %c14_31] : memref<2x49xf32, #tpu.memory_space<smem>>
    %85 = vector.broadcast %83 : f32 to vector<1x256xf32>
    %86 = arith.mulf %85, %81 : vector<1x256xf32>
    %87 = vector.broadcast %84 : f32 to vector<1x256xf32>
    %88 = arith.mulf %87, %82 : vector<1x256xf32>
    %89 = arith.addf %86, %88 : vector<1x256xf32>
    %90 = arith.mulf %89, %58 : vector<1x256xf32>
    %91 = arith.addf %80, %90 : vector<1x256xf32>
    %92 = vector.extract_strided_slice %28 {offsets = [0, 61], sizes = [1, 256], strides = [1, 1]} : vector<1x384xf32> to vector<1x256xf32>
    %93 = vector.extract_strided_slice %29 {offsets = [0, 61], sizes = [1, 256], strides = [1, 1]} : vector<1x384xf32> to vector<1x256xf32>
    %c0_32 = arith.constant 0 : index
    %c21 = arith.constant 21 : index
    %94 = memref.load %arg4[%c0_32, %c21] : memref<2x49xf32, #tpu.memory_space<smem>>
    %c1_33 = arith.constant 1 : index
    %c21_34 = arith.constant 21 : index
    %95 = memref.load %arg4[%c1_33, %c21_34] : memref<2x49xf32, #tpu.memory_space<smem>>
    %96 = vector.broadcast %94 : f32 to vector<1x256xf32>
    %97 = arith.mulf %96, %92 : vector<1x256xf32>
    %98 = vector.broadcast %95 : f32 to vector<1x256xf32>
    %99 = arith.mulf %98, %93 : vector<1x256xf32>
    %100 = arith.addf %97, %99 : vector<1x256xf32>
    %101 = arith.mulf %100, %58 : vector<1x256xf32>
    %102 = arith.addf %91, %101 : vector<1x256xf32>
    %103 = vector.extract_strided_slice %28 {offsets = [0, 77], sizes = [1, 256], strides = [1, 1]} : vector<1x384xf32> to vector<1x256xf32>
    %104 = vector.extract_strided_slice %29 {offsets = [0, 77], sizes = [1, 256], strides = [1, 1]} : vector<1x384xf32> to vector<1x256xf32>
    %c0_35 = arith.constant 0 : index
    %c28 = arith.constant 28 : index
    %105 = memref.load %arg4[%c0_35, %c28] : memref<2x49xf32, #tpu.memory_space<smem>>
    %c1_36 = arith.constant 1 : index
    %c28_37 = arith.constant 28 : index
    %106 = memref.load %arg4[%c1_36, %c28_37] : memref<2x49xf32, #tpu.memory_space<smem>>
    %107 = vector.broadcast %105 : f32 to vector<1x256xf32>
    %108 = arith.mulf %107, %103 : vector<1x256xf32>
    %109 = vector.broadcast %106 : f32 to vector<1x256xf32>
    %110 = arith.mulf %109, %104 : vector<1x256xf32>
    %111 = arith.addf %108, %110 : vector<1x256xf32>
    %112 = arith.mulf %111, %58 : vector<1x256xf32>
    %113 = arith.addf %102, %112 : vector<1x256xf32>
    %114 = vector.extract_strided_slice %28 {offsets = [0, 93], sizes = [1, 256], strides = [1, 1]} : vector<1x384xf32> to vector<1x256xf32>
    %115 = vector.extract_strided_slice %29 {offsets = [0, 93], sizes = [1, 256], strides = [1, 1]} : vector<1x384xf32> to vector<1x256xf32>
    %c0_38 = arith.constant 0 : index
    %c35 = arith.constant 35 : index
    %116 = memref.load %arg4[%c0_38, %c35] : memref<2x49xf32, #tpu.memory_space<smem>>
    %c1_39 = arith.constant 1 : index
    %c35_40 = arith.constant 35 : index
    %117 = memref.load %arg4[%c1_39, %c35_40] : memref<2x49xf32, #tpu.memory_space<smem>>
    %118 = vector.broadcast %116 : f32 to vector<1x256xf32>
    %119 = arith.mulf %118, %114 : vector<1x256xf32>
    %120 = vector.broadcast %117 : f32 to vector<1x256xf32>
    %121 = arith.mulf %120, %115 : vector<1x256xf32>
    %122 = arith.addf %119, %121 : vector<1x256xf32>
    %123 = arith.mulf %122, %58 : vector<1x256xf32>
    %124 = arith.addf %113, %123 : vector<1x256xf32>
    %125 = vector.extract_strided_slice %28 {offsets = [0, 109], sizes = [1, 256], strides = [1, 1]} : vector<1x384xf32> to vector<1x256xf32>
    %126 = vector.extract_strided_slice %29 {offsets = [0, 109], sizes = [1, 256], strides = [1, 1]} : vector<1x384xf32> to vector<1x256xf32>
    %c0_41 = arith.constant 0 : index
    %c42 = arith.constant 42 : index
    %127 = memref.load %arg4[%c0_41, %c42] : memref<2x49xf32, #tpu.memory_space<smem>>
    %c1_42 = arith.constant 1 : index
    %c42_43 = arith.constant 42 : index
    %128 = memref.load %arg4[%c1_42, %c42_43] : memref<2x49xf32, #tpu.memory_space<smem>>
    %129 = vector.broadcast %127 : f32 to vector<1x256xf32>
    %130 = arith.mulf %129, %125 : vector<1x256xf32>
    %131 = vector.broadcast %128 : f32 to vector<1x256xf32>
    %132 = arith.mulf %131, %126 : vector<1x256xf32>
    %133 = arith.addf %130, %132 : vector<1x256xf32>
    %134 = arith.mulf %133, %58 : vector<1x256xf32>
    %135 = arith.addf %124, %134 : vector<1x256xf32>
    %c-2_i32 = arith.constant -2 : i32
    %136 = vector.broadcast %c-2_i32 : i32 to vector<1x256xi32>
    %137 = arith.addi %46, %136 : vector<1x256xi32>
    %c0_i32_44 = arith.constant 0 : i32
    %138 = vector.broadcast %c0_i32_44 : i32 to vector<1x256xi32>
    %139 = arith.cmpi sge, %137, %138 : vector<1x256xi32>
    %c-2_i32_45 = arith.constant -2 : i32
    %140 = vector.broadcast %c-2_i32_45 : i32 to vector<1x256xi32>
    %141 = arith.addi %46, %140 : vector<1x256xi32>
    %c16_i32_46 = arith.constant 16 : i32
    %142 = vector.broadcast %c16_i32_46 : i32 to vector<1x256xi32>
    %143 = arith.cmpi slt, %141, %142 : vector<1x256xi32>
    %144 = arith.andi %139, %143 : vector<1x256xi1>
    %145 = arith.extui %144 : vector<1x256xi1> to vector<1x256xi32>
    %146 = arith.sitofp %145 : vector<1x256xi32> to vector<1x256xf32>
    %147 = vector.extract_strided_slice %28 {offsets = [0, 14], sizes = [1, 256], strides = [1, 1]} : vector<1x384xf32> to vector<1x256xf32>
    %148 = vector.extract_strided_slice %29 {offsets = [0, 14], sizes = [1, 256], strides = [1, 1]} : vector<1x384xf32> to vector<1x256xf32>
    %c0_47 = arith.constant 0 : index
    %c1_48 = arith.constant 1 : index
    %149 = memref.load %arg4[%c0_47, %c1_48] : memref<2x49xf32, #tpu.memory_space<smem>>
    %c1_49 = arith.constant 1 : index
    %c1_50 = arith.constant 1 : index
    %150 = memref.load %arg4[%c1_49, %c1_50] : memref<2x49xf32, #tpu.memory_space<smem>>
    %151 = vector.broadcast %149 : f32 to vector<1x256xf32>
    %152 = arith.mulf %151, %147 : vector<1x256xf32>
    %153 = vector.broadcast %150 : f32 to vector<1x256xf32>
    %154 = arith.mulf %153, %148 : vector<1x256xf32>
    %155 = arith.addf %152, %154 : vector<1x256xf32>
    %156 = arith.mulf %155, %146 : vector<1x256xf32>
    %157 = arith.addf %135, %156 : vector<1x256xf32>
    %158 = vector.extract_strided_slice %28 {offsets = [0, 30], sizes = [1, 256], strides = [1, 1]} : vector<1x384xf32> to vector<1x256xf32>
    %159 = vector.extract_strided_slice %29 {offsets = [0, 30], sizes = [1, 256], strides = [1, 1]} : vector<1x384xf32> to vector<1x256xf32>
    %c0_51 = arith.constant 0 : index
    %c8 = arith.constant 8 : index
    %160 = memref.load %arg4[%c0_51, %c8] : memref<2x49xf32, #tpu.memory_space<smem>>
    %c1_52 = arith.constant 1 : index
    %c8_53 = arith.constant 8 : index
    %161 = memref.load %arg4[%c1_52, %c8_53] : memref<2x49xf32, #tpu.memory_space<smem>>
    %162 = vector.broadcast %160 : f32 to vector<1x256xf32>
    %163 = arith.mulf %162, %158 : vector<1x256xf32>
    %164 = vector.broadcast %161 : f32 to vector<1x256xf32>
    %165 = arith.mulf %164, %159 : vector<1x256xf32>
    %166 = arith.addf %163, %165 : vector<1x256xf32>
    %167 = arith.mulf %166, %146 : vector<1x256xf32>
    %168 = arith.addf %157, %167 : vector<1x256xf32>
    %169 = vector.extract_strided_slice %28 {offsets = [0, 46], sizes = [1, 256], strides = [1, 1]} : vector<1x384xf32> to vector<1x256xf32>
    %170 = vector.extract_strided_slice %29 {offsets = [0, 46], sizes = [1, 256], strides = [1, 1]} : vector<1x384xf32> to vector<1x256xf32>
    %c0_54 = arith.constant 0 : index
    %c15 = arith.constant 15 : index
    %171 = memref.load %arg4[%c0_54, %c15] : memref<2x49xf32, #tpu.memory_space<smem>>
    %c1_55 = arith.constant 1 : index
    %c15_56 = arith.constant 15 : index
    %172 = memref.load %arg4[%c1_55, %c15_56] : memref<2x49xf32, #tpu.memory_space<smem>>
    %173 = vector.broadcast %171 : f32 to vector<1x256xf32>
    %174 = arith.mulf %173, %169 : vector<1x256xf32>
    %175 = vector.broadcast %172 : f32 to vector<1x256xf32>
    %176 = arith.mulf %175, %170 : vector<1x256xf32>
    %177 = arith.addf %174, %176 : vector<1x256xf32>
    %178 = arith.mulf %177, %146 : vector<1x256xf32>
    %179 = arith.addf %168, %178 : vector<1x256xf32>
    %180 = vector.extract_strided_slice %28 {offsets = [0, 62], sizes = [1, 256], strides = [1, 1]} : vector<1x384xf32> to vector<1x256xf32>
    %181 = vector.extract_strided_slice %29 {offsets = [0, 62], sizes = [1, 256], strides = [1, 1]} : vector<1x384xf32> to vector<1x256xf32>
    %c0_57 = arith.constant 0 : index
    %c22 = arith.constant 22 : index
    %182 = memref.load %arg4[%c0_57, %c22] : memref<2x49xf32, #tpu.memory_space<smem>>
    %c1_58 = arith.constant 1 : index
    %c22_59 = arith.constant 22 : index
    %183 = memref.load %arg4[%c1_58, %c22_59] : memref<2x49xf32, #tpu.memory_space<smem>>
    %184 = vector.broadcast %182 : f32 to vector<1x256xf32>
    %185 = arith.mulf %184, %180 : vector<1x256xf32>
    %186 = vector.broadcast %183 : f32 to vector<1x256xf32>
    %187 = arith.mulf %186, %181 : vector<1x256xf32>
    %188 = arith.addf %185, %187 : vector<1x256xf32>
    %189 = arith.mulf %188, %146 : vector<1x256xf32>
    %190 = arith.addf %179, %189 : vector<1x256xf32>
    %191 = vector.extract_strided_slice %28 {offsets = [0, 78], sizes = [1, 256], strides = [1, 1]} : vector<1x384xf32> to vector<1x256xf32>
    %192 = vector.extract_strided_slice %29 {offsets = [0, 78], sizes = [1, 256], strides = [1, 1]} : vector<1x384xf32> to vector<1x256xf32>
    %c0_60 = arith.constant 0 : index
    %c29 = arith.constant 29 : index
    %193 = memref.load %arg4[%c0_60, %c29] : memref<2x49xf32, #tpu.memory_space<smem>>
    %c1_61 = arith.constant 1 : index
    %c29_62 = arith.constant 29 : index
    %194 = memref.load %arg4[%c1_61, %c29_62] : memref<2x49xf32, #tpu.memory_space<smem>>
    %195 = vector.broadcast %193 : f32 to vector<1x256xf32>
    %196 = arith.mulf %195, %191 : vector<1x256xf32>
    %197 = vector.broadcast %194 : f32 to vector<1x256xf32>
    %198 = arith.mulf %197, %192 : vector<1x256xf32>
    %199 = arith.addf %196, %198 : vector<1x256xf32>
    %200 = arith.mulf %199, %146 : vector<1x256xf32>
    %201 = arith.addf %190, %200 : vector<1x256xf32>
    %202 = vector.extract_strided_slice %28 {offsets = [0, 94], sizes = [1, 256], strides = [1, 1]} : vector<1x384xf32> to vector<1x256xf32>
    %203 = vector.extract_strided_slice %29 {offsets = [0, 94], sizes = [1, 256], strides = [1, 1]} : vector<1x384xf32> to vector<1x256xf32>
    %c0_63 = arith.constant 0 : index
    %c36 = arith.constant 36 : index
    %204 = memref.load %arg4[%c0_63, %c36] : memref<2x49xf32, #tpu.memory_space<smem>>
    %c1_64 = arith.constant 1 : index
    %c36_65 = arith.constant 36 : index
    %205 = memref.load %arg4[%c1_64, %c36_65] : memref<2x49xf32, #tpu.memory_space<smem>>
    %206 = vector.broadcast %204 : f32 to vector<1x256xf32>
    %207 = arith.mulf %206, %202 : vector<1x256xf32>
    %208 = vector.broadcast %205 : f32 to vector<1x256xf32>
    %209 = arith.mulf %208, %203 : vector<1x256xf32>
    %210 = arith.addf %207, %209 : vector<1x256xf32>
    %211 = arith.mulf %210, %146 : vector<1x256xf32>
    %212 = arith.addf %201, %211 : vector<1x256xf32>
    %213 = vector.extract_strided_slice %28 {offsets = [0, 110], sizes = [1, 256], strides = [1, 1]} : vector<1x384xf32> to vector<1x256xf32>
    %214 = vector.extract_strided_slice %29 {offsets = [0, 110], sizes = [1, 256], strides = [1, 1]} : vector<1x384xf32> to vector<1x256xf32>
    %c0_66 = arith.constant 0 : index
    %c43 = arith.constant 43 : index
    %215 = memref.load %arg4[%c0_66, %c43] : memref<2x49xf32, #tpu.memory_space<smem>>
    %c1_67 = arith.constant 1 : index
    %c43_68 = arith.constant 43 : index
    %216 = memref.load %arg4[%c1_67, %c43_68] : memref<2x49xf32, #tpu.memory_space<smem>>
    %217 = vector.broadcast %215 : f32 to vector<1x256xf32>
    %218 = arith.mulf %217, %213 : vector<1x256xf32>
    %219 = vector.broadcast %216 : f32 to vector<1x256xf32>
    %220 = arith.mulf %219, %214 : vector<1x256xf32>
    %221 = arith.addf %218, %220 : vector<1x256xf32>
    %222 = arith.mulf %221, %146 : vector<1x256xf32>
    %223 = arith.addf %212, %222 : vector<1x256xf32>
    %c-1_i32 = arith.constant -1 : i32
    %224 = vector.broadcast %c-1_i32 : i32 to vector<1x256xi32>
    %225 = arith.addi %46, %224 : vector<1x256xi32>
    %c0_i32_69 = arith.constant 0 : i32
    %226 = vector.broadcast %c0_i32_69 : i32 to vector<1x256xi32>
    %227 = arith.cmpi sge, %225, %226 : vector<1x256xi32>
    %c-1_i32_70 = arith.constant -1 : i32
    %228 = vector.broadcast %c-1_i32_70 : i32 to vector<1x256xi32>
    %229 = arith.addi %46, %228 : vector<1x256xi32>
    %c16_i32_71 = arith.constant 16 : i32
    %230 = vector.broadcast %c16_i32_71 : i32 to vector<1x256xi32>
    %231 = arith.cmpi slt, %229, %230 : vector<1x256xi32>
    %232 = arith.andi %227, %231 : vector<1x256xi1>
    %233 = arith.extui %232 : vector<1x256xi1> to vector<1x256xi32>
    %234 = arith.sitofp %233 : vector<1x256xi32> to vector<1x256xf32>
    %235 = vector.extract_strided_slice %28 {offsets = [0, 15], sizes = [1, 256], strides = [1, 1]} : vector<1x384xf32> to vector<1x256xf32>
    %236 = vector.extract_strided_slice %29 {offsets = [0, 15], sizes = [1, 256], strides = [1, 1]} : vector<1x384xf32> to vector<1x256xf32>
    %c0_72 = arith.constant 0 : index
    %c2 = arith.constant 2 : index
    %237 = memref.load %arg4[%c0_72, %c2] : memref<2x49xf32, #tpu.memory_space<smem>>
    %c1_73 = arith.constant 1 : index
    %c2_74 = arith.constant 2 : index
    %238 = memref.load %arg4[%c1_73, %c2_74] : memref<2x49xf32, #tpu.memory_space<smem>>
    %239 = vector.broadcast %237 : f32 to vector<1x256xf32>
    %240 = arith.mulf %239, %235 : vector<1x256xf32>
    %241 = vector.broadcast %238 : f32 to vector<1x256xf32>
    %242 = arith.mulf %241, %236 : vector<1x256xf32>
    %243 = arith.addf %240, %242 : vector<1x256xf32>
    %244 = arith.mulf %243, %234 : vector<1x256xf32>
    %245 = arith.addf %223, %244 : vector<1x256xf32>
    %246 = vector.extract_strided_slice %28 {offsets = [0, 31], sizes = [1, 256], strides = [1, 1]} : vector<1x384xf32> to vector<1x256xf32>
    %247 = vector.extract_strided_slice %29 {offsets = [0, 31], sizes = [1, 256], strides = [1, 1]} : vector<1x384xf32> to vector<1x256xf32>
    %c0_75 = arith.constant 0 : index
    %c9 = arith.constant 9 : index
    %248 = memref.load %arg4[%c0_75, %c9] : memref<2x49xf32, #tpu.memory_space<smem>>
    %c1_76 = arith.constant 1 : index
    %c9_77 = arith.constant 9 : index
    %249 = memref.load %arg4[%c1_76, %c9_77] : memref<2x49xf32, #tpu.memory_space<smem>>
    %250 = vector.broadcast %248 : f32 to vector<1x256xf32>
    %251 = arith.mulf %250, %246 : vector<1x256xf32>
    %252 = vector.broadcast %249 : f32 to vector<1x256xf32>
    %253 = arith.mulf %252, %247 : vector<1x256xf32>
    %254 = arith.addf %251, %253 : vector<1x256xf32>
    %255 = arith.mulf %254, %234 : vector<1x256xf32>
    %256 = arith.addf %245, %255 : vector<1x256xf32>
    %257 = vector.extract_strided_slice %28 {offsets = [0, 47], sizes = [1, 256], strides = [1, 1]} : vector<1x384xf32> to vector<1x256xf32>
    %258 = vector.extract_strided_slice %29 {offsets = [0, 47], sizes = [1, 256], strides = [1, 1]} : vector<1x384xf32> to vector<1x256xf32>
    %c0_78 = arith.constant 0 : index
    %c16 = arith.constant 16 : index
    %259 = memref.load %arg4[%c0_78, %c16] : memref<2x49xf32, #tpu.memory_space<smem>>
    %c1_79 = arith.constant 1 : index
    %c16_80 = arith.constant 16 : index
    %260 = memref.load %arg4[%c1_79, %c16_80] : memref<2x49xf32, #tpu.memory_space<smem>>
    %261 = vector.broadcast %259 : f32 to vector<1x256xf32>
    %262 = arith.mulf %261, %257 : vector<1x256xf32>
    %263 = vector.broadcast %260 : f32 to vector<1x256xf32>
    %264 = arith.mulf %263, %258 : vector<1x256xf32>
    %265 = arith.addf %262, %264 : vector<1x256xf32>
    %266 = arith.mulf %265, %234 : vector<1x256xf32>
    %267 = arith.addf %256, %266 : vector<1x256xf32>
    %268 = vector.extract_strided_slice %28 {offsets = [0, 63], sizes = [1, 256], strides = [1, 1]} : vector<1x384xf32> to vector<1x256xf32>
    %269 = vector.extract_strided_slice %29 {offsets = [0, 63], sizes = [1, 256], strides = [1, 1]} : vector<1x384xf32> to vector<1x256xf32>
    %c0_81 = arith.constant 0 : index
    %c23 = arith.constant 23 : index
    %270 = memref.load %arg4[%c0_81, %c23] : memref<2x49xf32, #tpu.memory_space<smem>>
    %c1_82 = arith.constant 1 : index
    %c23_83 = arith.constant 23 : index
    %271 = memref.load %arg4[%c1_82, %c23_83] : memref<2x49xf32, #tpu.memory_space<smem>>
    %272 = vector.broadcast %270 : f32 to vector<1x256xf32>
    %273 = arith.mulf %272, %268 : vector<1x256xf32>
    %274 = vector.broadcast %271 : f32 to vector<1x256xf32>
    %275 = arith.mulf %274, %269 : vector<1x256xf32>
    %276 = arith.addf %273, %275 : vector<1x256xf32>
    %277 = arith.mulf %276, %234 : vector<1x256xf32>
    %278 = arith.addf %267, %277 : vector<1x256xf32>
    %279 = vector.extract_strided_slice %28 {offsets = [0, 79], sizes = [1, 256], strides = [1, 1]} : vector<1x384xf32> to vector<1x256xf32>
    %280 = vector.extract_strided_slice %29 {offsets = [0, 79], sizes = [1, 256], strides = [1, 1]} : vector<1x384xf32> to vector<1x256xf32>
    %c0_84 = arith.constant 0 : index
    %c30 = arith.constant 30 : index
    %281 = memref.load %arg4[%c0_84, %c30] : memref<2x49xf32, #tpu.memory_space<smem>>
    %c1_85 = arith.constant 1 : index
    %c30_86 = arith.constant 30 : index
    %282 = memref.load %arg4[%c1_85, %c30_86] : memref<2x49xf32, #tpu.memory_space<smem>>
    %283 = vector.broadcast %281 : f32 to vector<1x256xf32>
    %284 = arith.mulf %283, %279 : vector<1x256xf32>
    %285 = vector.broadcast %282 : f32 to vector<1x256xf32>
    %286 = arith.mulf %285, %280 : vector<1x256xf32>
    %287 = arith.addf %284, %286 : vector<1x256xf32>
    %288 = arith.mulf %287, %234 : vector<1x256xf32>
    %289 = arith.addf %278, %288 : vector<1x256xf32>
    %290 = vector.extract_strided_slice %28 {offsets = [0, 95], sizes = [1, 256], strides = [1, 1]} : vector<1x384xf32> to vector<1x256xf32>
    %291 = vector.extract_strided_slice %29 {offsets = [0, 95], sizes = [1, 256], strides = [1, 1]} : vector<1x384xf32> to vector<1x256xf32>
    %c0_87 = arith.constant 0 : index
    %c37 = arith.constant 37 : index
    %292 = memref.load %arg4[%c0_87, %c37] : memref<2x49xf32, #tpu.memory_space<smem>>
    %c1_88 = arith.constant 1 : index
    %c37_89 = arith.constant 37 : index
    %293 = memref.load %arg4[%c1_88, %c37_89] : memref<2x49xf32, #tpu.memory_space<smem>>
    %294 = vector.broadcast %292 : f32 to vector<1x256xf32>
    %295 = arith.mulf %294, %290 : vector<1x256xf32>
    %296 = vector.broadcast %293 : f32 to vector<1x256xf32>
    %297 = arith.mulf %296, %291 : vector<1x256xf32>
    %298 = arith.addf %295, %297 : vector<1x256xf32>
    %299 = arith.mulf %298, %234 : vector<1x256xf32>
    %300 = arith.addf %289, %299 : vector<1x256xf32>
    %301 = vector.extract_strided_slice %28 {offsets = [0, 111], sizes = [1, 256], strides = [1, 1]} : vector<1x384xf32> to vector<1x256xf32>
    %302 = vector.extract_strided_slice %29 {offsets = [0, 111], sizes = [1, 256], strides = [1, 1]} : vector<1x384xf32> to vector<1x256xf32>
    %c0_90 = arith.constant 0 : index
    %c44 = arith.constant 44 : index
    %303 = memref.load %arg4[%c0_90, %c44] : memref<2x49xf32, #tpu.memory_space<smem>>
    %c1_91 = arith.constant 1 : index
    %c44_92 = arith.constant 44 : index
    %304 = memref.load %arg4[%c1_91, %c44_92] : memref<2x49xf32, #tpu.memory_space<smem>>
    %305 = vector.broadcast %303 : f32 to vector<1x256xf32>
    %306 = arith.mulf %305, %301 : vector<1x256xf32>
    %307 = vector.broadcast %304 : f32 to vector<1x256xf32>
    %308 = arith.mulf %307, %302 : vector<1x256xf32>
    %309 = arith.addf %306, %308 : vector<1x256xf32>
    %310 = arith.mulf %309, %234 : vector<1x256xf32>
    %311 = arith.addf %300, %310 : vector<1x256xf32>
    %312 = vector.extract_strided_slice %28 {offsets = [0, 16], sizes = [1, 256], strides = [1, 1]} : vector<1x384xf32> to vector<1x256xf32>
    %313 = vector.extract_strided_slice %29 {offsets = [0, 16], sizes = [1, 256], strides = [1, 1]} : vector<1x384xf32> to vector<1x256xf32>
    %c0_93 = arith.constant 0 : index
    %c3 = arith.constant 3 : index
    %314 = memref.load %arg4[%c0_93, %c3] : memref<2x49xf32, #tpu.memory_space<smem>>
    %c1_94 = arith.constant 1 : index
    %c3_95 = arith.constant 3 : index
    %315 = memref.load %arg4[%c1_94, %c3_95] : memref<2x49xf32, #tpu.memory_space<smem>>
    %316 = vector.broadcast %314 : f32 to vector<1x256xf32>
    %317 = arith.mulf %316, %312 : vector<1x256xf32>
    %318 = vector.broadcast %315 : f32 to vector<1x256xf32>
    %319 = arith.mulf %318, %313 : vector<1x256xf32>
    %320 = arith.addf %317, %319 : vector<1x256xf32>
    %321 = arith.addf %311, %320 : vector<1x256xf32>
    %322 = vector.extract_strided_slice %28 {offsets = [0, 32], sizes = [1, 256], strides = [1, 1]} : vector<1x384xf32> to vector<1x256xf32>
    %323 = vector.extract_strided_slice %29 {offsets = [0, 32], sizes = [1, 256], strides = [1, 1]} : vector<1x384xf32> to vector<1x256xf32>
    %c0_96 = arith.constant 0 : index
    %c10 = arith.constant 10 : index
    %324 = memref.load %arg4[%c0_96, %c10] : memref<2x49xf32, #tpu.memory_space<smem>>
    %c1_97 = arith.constant 1 : index
    %c10_98 = arith.constant 10 : index
    %325 = memref.load %arg4[%c1_97, %c10_98] : memref<2x49xf32, #tpu.memory_space<smem>>
    %326 = vector.broadcast %324 : f32 to vector<1x256xf32>
    %327 = arith.mulf %326, %322 : vector<1x256xf32>
    %328 = vector.broadcast %325 : f32 to vector<1x256xf32>
    %329 = arith.mulf %328, %323 : vector<1x256xf32>
    %330 = arith.addf %327, %329 : vector<1x256xf32>
    %331 = arith.addf %321, %330 : vector<1x256xf32>
    %332 = vector.extract_strided_slice %28 {offsets = [0, 48], sizes = [1, 256], strides = [1, 1]} : vector<1x384xf32> to vector<1x256xf32>
    %333 = vector.extract_strided_slice %29 {offsets = [0, 48], sizes = [1, 256], strides = [1, 1]} : vector<1x384xf32> to vector<1x256xf32>
    %c0_99 = arith.constant 0 : index
    %c17 = arith.constant 17 : index
    %334 = memref.load %arg4[%c0_99, %c17] : memref<2x49xf32, #tpu.memory_space<smem>>
    %c1_100 = arith.constant 1 : index
    %c17_101 = arith.constant 17 : index
    %335 = memref.load %arg4[%c1_100, %c17_101] : memref<2x49xf32, #tpu.memory_space<smem>>
    %336 = vector.broadcast %334 : f32 to vector<1x256xf32>
    %337 = arith.mulf %336, %332 : vector<1x256xf32>
    %338 = vector.broadcast %335 : f32 to vector<1x256xf32>
    %339 = arith.mulf %338, %333 : vector<1x256xf32>
    %340 = arith.addf %337, %339 : vector<1x256xf32>
    %341 = arith.addf %331, %340 : vector<1x256xf32>
    %342 = vector.extract_strided_slice %28 {offsets = [0, 64], sizes = [1, 256], strides = [1, 1]} : vector<1x384xf32> to vector<1x256xf32>
    %343 = vector.extract_strided_slice %29 {offsets = [0, 64], sizes = [1, 256], strides = [1, 1]} : vector<1x384xf32> to vector<1x256xf32>
    %c0_102 = arith.constant 0 : index
    %c24 = arith.constant 24 : index
    %344 = memref.load %arg4[%c0_102, %c24] : memref<2x49xf32, #tpu.memory_space<smem>>
    %c1_103 = arith.constant 1 : index
    %c24_104 = arith.constant 24 : index
    %345 = memref.load %arg4[%c1_103, %c24_104] : memref<2x49xf32, #tpu.memory_space<smem>>
    %346 = vector.broadcast %344 : f32 to vector<1x256xf32>
    %347 = arith.mulf %346, %342 : vector<1x256xf32>
    %348 = vector.broadcast %345 : f32 to vector<1x256xf32>
    %349 = arith.mulf %348, %343 : vector<1x256xf32>
    %350 = arith.addf %347, %349 : vector<1x256xf32>
    %351 = arith.addf %341, %350 : vector<1x256xf32>
    %352 = vector.extract_strided_slice %28 {offsets = [0, 80], sizes = [1, 256], strides = [1, 1]} : vector<1x384xf32> to vector<1x256xf32>
    %353 = vector.extract_strided_slice %29 {offsets = [0, 80], sizes = [1, 256], strides = [1, 1]} : vector<1x384xf32> to vector<1x256xf32>
    %c0_105 = arith.constant 0 : index
    %c31 = arith.constant 31 : index
    %354 = memref.load %arg4[%c0_105, %c31] : memref<2x49xf32, #tpu.memory_space<smem>>
    %c1_106 = arith.constant 1 : index
    %c31_107 = arith.constant 31 : index
    %355 = memref.load %arg4[%c1_106, %c31_107] : memref<2x49xf32, #tpu.memory_space<smem>>
    %356 = vector.broadcast %354 : f32 to vector<1x256xf32>
    %357 = arith.mulf %356, %352 : vector<1x256xf32>
    %358 = vector.broadcast %355 : f32 to vector<1x256xf32>
    %359 = arith.mulf %358, %353 : vector<1x256xf32>
    %360 = arith.addf %357, %359 : vector<1x256xf32>
    %361 = arith.addf %351, %360 : vector<1x256xf32>
    %362 = vector.extract_strided_slice %28 {offsets = [0, 96], sizes = [1, 256], strides = [1, 1]} : vector<1x384xf32> to vector<1x256xf32>
    %363 = vector.extract_strided_slice %29 {offsets = [0, 96], sizes = [1, 256], strides = [1, 1]} : vector<1x384xf32> to vector<1x256xf32>
    %c0_108 = arith.constant 0 : index
    %c38 = arith.constant 38 : index
    %364 = memref.load %arg4[%c0_108, %c38] : memref<2x49xf32, #tpu.memory_space<smem>>
    %c1_109 = arith.constant 1 : index
    %c38_110 = arith.constant 38 : index
    %365 = memref.load %arg4[%c1_109, %c38_110] : memref<2x49xf32, #tpu.memory_space<smem>>
    %366 = vector.broadcast %364 : f32 to vector<1x256xf32>
    %367 = arith.mulf %366, %362 : vector<1x256xf32>
    %368 = vector.broadcast %365 : f32 to vector<1x256xf32>
    %369 = arith.mulf %368, %363 : vector<1x256xf32>
    %370 = arith.addf %367, %369 : vector<1x256xf32>
    %371 = arith.addf %361, %370 : vector<1x256xf32>
    %372 = vector.extract_strided_slice %28 {offsets = [0, 112], sizes = [1, 256], strides = [1, 1]} : vector<1x384xf32> to vector<1x256xf32>
    %373 = vector.extract_strided_slice %29 {offsets = [0, 112], sizes = [1, 256], strides = [1, 1]} : vector<1x384xf32> to vector<1x256xf32>
    %c0_111 = arith.constant 0 : index
    %c45 = arith.constant 45 : index
    %374 = memref.load %arg4[%c0_111, %c45] : memref<2x49xf32, #tpu.memory_space<smem>>
    %c1_112 = arith.constant 1 : index
    %c45_113 = arith.constant 45 : index
    %375 = memref.load %arg4[%c1_112, %c45_113] : memref<2x49xf32, #tpu.memory_space<smem>>
    %376 = vector.broadcast %374 : f32 to vector<1x256xf32>
    %377 = arith.mulf %376, %372 : vector<1x256xf32>
    %378 = vector.broadcast %375 : f32 to vector<1x256xf32>
    %379 = arith.mulf %378, %373 : vector<1x256xf32>
    %380 = arith.addf %377, %379 : vector<1x256xf32>
    %381 = arith.addf %371, %380 : vector<1x256xf32>
    %c1_i32_114 = arith.constant 1 : i32
    %382 = vector.broadcast %c1_i32_114 : i32 to vector<1x256xi32>
    %383 = arith.addi %46, %382 : vector<1x256xi32>
    %c0_i32_115 = arith.constant 0 : i32
    %384 = vector.broadcast %c0_i32_115 : i32 to vector<1x256xi32>
    %385 = arith.cmpi sge, %383, %384 : vector<1x256xi32>
    %c1_i32_116 = arith.constant 1 : i32
    %386 = vector.broadcast %c1_i32_116 : i32 to vector<1x256xi32>
    %387 = arith.addi %46, %386 : vector<1x256xi32>
    %c16_i32_117 = arith.constant 16 : i32
    %388 = vector.broadcast %c16_i32_117 : i32 to vector<1x256xi32>
    %389 = arith.cmpi slt, %387, %388 : vector<1x256xi32>
    %390 = arith.andi %385, %389 : vector<1x256xi1>
    %391 = arith.extui %390 : vector<1x256xi1> to vector<1x256xi32>
    %392 = arith.sitofp %391 : vector<1x256xi32> to vector<1x256xf32>
    %393 = vector.extract_strided_slice %28 {offsets = [0, 17], sizes = [1, 256], strides = [1, 1]} : vector<1x384xf32> to vector<1x256xf32>
    %394 = vector.extract_strided_slice %29 {offsets = [0, 17], sizes = [1, 256], strides = [1, 1]} : vector<1x384xf32> to vector<1x256xf32>
    %c0_118 = arith.constant 0 : index
    %c4 = arith.constant 4 : index
    %395 = memref.load %arg4[%c0_118, %c4] : memref<2x49xf32, #tpu.memory_space<smem>>
    %c1_119 = arith.constant 1 : index
    %c4_120 = arith.constant 4 : index
    %396 = memref.load %arg4[%c1_119, %c4_120] : memref<2x49xf32, #tpu.memory_space<smem>>
    %397 = vector.broadcast %395 : f32 to vector<1x256xf32>
    %398 = arith.mulf %397, %393 : vector<1x256xf32>
    %399 = vector.broadcast %396 : f32 to vector<1x256xf32>
    %400 = arith.mulf %399, %394 : vector<1x256xf32>
    %401 = arith.addf %398, %400 : vector<1x256xf32>
    %402 = arith.mulf %401, %392 : vector<1x256xf32>
    %403 = arith.addf %381, %402 : vector<1x256xf32>
    %404 = vector.extract_strided_slice %28 {offsets = [0, 33], sizes = [1, 256], strides = [1, 1]} : vector<1x384xf32> to vector<1x256xf32>
    %405 = vector.extract_strided_slice %29 {offsets = [0, 33], sizes = [1, 256], strides = [1, 1]} : vector<1x384xf32> to vector<1x256xf32>
    %c0_121 = arith.constant 0 : index
    %c11 = arith.constant 11 : index
    %406 = memref.load %arg4[%c0_121, %c11] : memref<2x49xf32, #tpu.memory_space<smem>>
    %c1_122 = arith.constant 1 : index
    %c11_123 = arith.constant 11 : index
    %407 = memref.load %arg4[%c1_122, %c11_123] : memref<2x49xf32, #tpu.memory_space<smem>>
    %408 = vector.broadcast %406 : f32 to vector<1x256xf32>
    %409 = arith.mulf %408, %404 : vector<1x256xf32>
    %410 = vector.broadcast %407 : f32 to vector<1x256xf32>
    %411 = arith.mulf %410, %405 : vector<1x256xf32>
    %412 = arith.addf %409, %411 : vector<1x256xf32>
    %413 = arith.mulf %412, %392 : vector<1x256xf32>
    %414 = arith.addf %403, %413 : vector<1x256xf32>
    %415 = vector.extract_strided_slice %28 {offsets = [0, 49], sizes = [1, 256], strides = [1, 1]} : vector<1x384xf32> to vector<1x256xf32>
    %416 = vector.extract_strided_slice %29 {offsets = [0, 49], sizes = [1, 256], strides = [1, 1]} : vector<1x384xf32> to vector<1x256xf32>
    %c0_124 = arith.constant 0 : index
    %c18 = arith.constant 18 : index
    %417 = memref.load %arg4[%c0_124, %c18] : memref<2x49xf32, #tpu.memory_space<smem>>
    %c1_125 = arith.constant 1 : index
    %c18_126 = arith.constant 18 : index
    %418 = memref.load %arg4[%c1_125, %c18_126] : memref<2x49xf32, #tpu.memory_space<smem>>
    %419 = vector.broadcast %417 : f32 to vector<1x256xf32>
    %420 = arith.mulf %419, %415 : vector<1x256xf32>
    %421 = vector.broadcast %418 : f32 to vector<1x256xf32>
    %422 = arith.mulf %421, %416 : vector<1x256xf32>
    %423 = arith.addf %420, %422 : vector<1x256xf32>
    %424 = arith.mulf %423, %392 : vector<1x256xf32>
    %425 = arith.addf %414, %424 : vector<1x256xf32>
    %426 = vector.extract_strided_slice %28 {offsets = [0, 65], sizes = [1, 256], strides = [1, 1]} : vector<1x384xf32> to vector<1x256xf32>
    %427 = vector.extract_strided_slice %29 {offsets = [0, 65], sizes = [1, 256], strides = [1, 1]} : vector<1x384xf32> to vector<1x256xf32>
    %c0_127 = arith.constant 0 : index
    %c25 = arith.constant 25 : index
    %428 = memref.load %arg4[%c0_127, %c25] : memref<2x49xf32, #tpu.memory_space<smem>>
    %c1_128 = arith.constant 1 : index
    %c25_129 = arith.constant 25 : index
    %429 = memref.load %arg4[%c1_128, %c25_129] : memref<2x49xf32, #tpu.memory_space<smem>>
    %430 = vector.broadcast %428 : f32 to vector<1x256xf32>
    %431 = arith.mulf %430, %426 : vector<1x256xf32>
    %432 = vector.broadcast %429 : f32 to vector<1x256xf32>
    %433 = arith.mulf %432, %427 : vector<1x256xf32>
    %434 = arith.addf %431, %433 : vector<1x256xf32>
    %435 = arith.mulf %434, %392 : vector<1x256xf32>
    %436 = arith.addf %425, %435 : vector<1x256xf32>
    %437 = vector.extract_strided_slice %28 {offsets = [0, 81], sizes = [1, 256], strides = [1, 1]} : vector<1x384xf32> to vector<1x256xf32>
    %438 = vector.extract_strided_slice %29 {offsets = [0, 81], sizes = [1, 256], strides = [1, 1]} : vector<1x384xf32> to vector<1x256xf32>
    %c0_130 = arith.constant 0 : index
    %c32 = arith.constant 32 : index
    %439 = memref.load %arg4[%c0_130, %c32] : memref<2x49xf32, #tpu.memory_space<smem>>
    %c1_131 = arith.constant 1 : index
    %c32_132 = arith.constant 32 : index
    %440 = memref.load %arg4[%c1_131, %c32_132] : memref<2x49xf32, #tpu.memory_space<smem>>
    %441 = vector.broadcast %439 : f32 to vector<1x256xf32>
    %442 = arith.mulf %441, %437 : vector<1x256xf32>
    %443 = vector.broadcast %440 : f32 to vector<1x256xf32>
    %444 = arith.mulf %443, %438 : vector<1x256xf32>
    %445 = arith.addf %442, %444 : vector<1x256xf32>
    %446 = arith.mulf %445, %392 : vector<1x256xf32>
    %447 = arith.addf %436, %446 : vector<1x256xf32>
    %448 = vector.extract_strided_slice %28 {offsets = [0, 97], sizes = [1, 256], strides = [1, 1]} : vector<1x384xf32> to vector<1x256xf32>
    %449 = vector.extract_strided_slice %29 {offsets = [0, 97], sizes = [1, 256], strides = [1, 1]} : vector<1x384xf32> to vector<1x256xf32>
    %c0_133 = arith.constant 0 : index
    %c39 = arith.constant 39 : index
    %450 = memref.load %arg4[%c0_133, %c39] : memref<2x49xf32, #tpu.memory_space<smem>>
    %c1_134 = arith.constant 1 : index
    %c39_135 = arith.constant 39 : index
    %451 = memref.load %arg4[%c1_134, %c39_135] : memref<2x49xf32, #tpu.memory_space<smem>>
    %452 = vector.broadcast %450 : f32 to vector<1x256xf32>
    %453 = arith.mulf %452, %448 : vector<1x256xf32>
    %454 = vector.broadcast %451 : f32 to vector<1x256xf32>
    %455 = arith.mulf %454, %449 : vector<1x256xf32>
    %456 = arith.addf %453, %455 : vector<1x256xf32>
    %457 = arith.mulf %456, %392 : vector<1x256xf32>
    %458 = arith.addf %447, %457 : vector<1x256xf32>
    %459 = vector.extract_strided_slice %28 {offsets = [0, 113], sizes = [1, 256], strides = [1, 1]} : vector<1x384xf32> to vector<1x256xf32>
    %460 = vector.extract_strided_slice %29 {offsets = [0, 113], sizes = [1, 256], strides = [1, 1]} : vector<1x384xf32> to vector<1x256xf32>
    %c0_136 = arith.constant 0 : index
    %c46 = arith.constant 46 : index
    %461 = memref.load %arg4[%c0_136, %c46] : memref<2x49xf32, #tpu.memory_space<smem>>
    %c1_137 = arith.constant 1 : index
    %c46_138 = arith.constant 46 : index
    %462 = memref.load %arg4[%c1_137, %c46_138] : memref<2x49xf32, #tpu.memory_space<smem>>
    %463 = vector.broadcast %461 : f32 to vector<1x256xf32>
    %464 = arith.mulf %463, %459 : vector<1x256xf32>
    %465 = vector.broadcast %462 : f32 to vector<1x256xf32>
    %466 = arith.mulf %465, %460 : vector<1x256xf32>
    %467 = arith.addf %464, %466 : vector<1x256xf32>
    %468 = arith.mulf %467, %392 : vector<1x256xf32>
    %469 = arith.addf %458, %468 : vector<1x256xf32>
    %c2_i32 = arith.constant 2 : i32
    %470 = vector.broadcast %c2_i32 : i32 to vector<1x256xi32>
    %471 = arith.addi %46, %470 : vector<1x256xi32>
    %c0_i32_139 = arith.constant 0 : i32
    %472 = vector.broadcast %c0_i32_139 : i32 to vector<1x256xi32>
    %473 = arith.cmpi sge, %471, %472 : vector<1x256xi32>
    %c2_i32_140 = arith.constant 2 : i32
    %474 = vector.broadcast %c2_i32_140 : i32 to vector<1x256xi32>
    %475 = arith.addi %46, %474 : vector<1x256xi32>
    %c16_i32_141 = arith.constant 16 : i32
    %476 = vector.broadcast %c16_i32_141 : i32 to vector<1x256xi32>
    %477 = arith.cmpi slt, %475, %476 : vector<1x256xi32>
    %478 = arith.andi %473, %477 : vector<1x256xi1>
    %479 = arith.extui %478 : vector<1x256xi1> to vector<1x256xi32>
    %480 = arith.sitofp %479 : vector<1x256xi32> to vector<1x256xf32>
    %481 = vector.extract_strided_slice %28 {offsets = [0, 18], sizes = [1, 256], strides = [1, 1]} : vector<1x384xf32> to vector<1x256xf32>
    %482 = vector.extract_strided_slice %29 {offsets = [0, 18], sizes = [1, 256], strides = [1, 1]} : vector<1x384xf32> to vector<1x256xf32>
    %c0_142 = arith.constant 0 : index
    %c5 = arith.constant 5 : index
    %483 = memref.load %arg4[%c0_142, %c5] : memref<2x49xf32, #tpu.memory_space<smem>>
    %c1_143 = arith.constant 1 : index
    %c5_144 = arith.constant 5 : index
    %484 = memref.load %arg4[%c1_143, %c5_144] : memref<2x49xf32, #tpu.memory_space<smem>>
    %485 = vector.broadcast %483 : f32 to vector<1x256xf32>
    %486 = arith.mulf %485, %481 : vector<1x256xf32>
    %487 = vector.broadcast %484 : f32 to vector<1x256xf32>
    %488 = arith.mulf %487, %482 : vector<1x256xf32>
    %489 = arith.addf %486, %488 : vector<1x256xf32>
    %490 = arith.mulf %489, %480 : vector<1x256xf32>
    %491 = arith.addf %469, %490 : vector<1x256xf32>
    %492 = vector.extract_strided_slice %28 {offsets = [0, 34], sizes = [1, 256], strides = [1, 1]} : vector<1x384xf32> to vector<1x256xf32>
    %493 = vector.extract_strided_slice %29 {offsets = [0, 34], sizes = [1, 256], strides = [1, 1]} : vector<1x384xf32> to vector<1x256xf32>
    %c0_145 = arith.constant 0 : index
    %c12 = arith.constant 12 : index
    %494 = memref.load %arg4[%c0_145, %c12] : memref<2x49xf32, #tpu.memory_space<smem>>
    %c1_146 = arith.constant 1 : index
    %c12_147 = arith.constant 12 : index
    %495 = memref.load %arg4[%c1_146, %c12_147] : memref<2x49xf32, #tpu.memory_space<smem>>
    %496 = vector.broadcast %494 : f32 to vector<1x256xf32>
    %497 = arith.mulf %496, %492 : vector<1x256xf32>
    %498 = vector.broadcast %495 : f32 to vector<1x256xf32>
    %499 = arith.mulf %498, %493 : vector<1x256xf32>
    %500 = arith.addf %497, %499 : vector<1x256xf32>
    %501 = arith.mulf %500, %480 : vector<1x256xf32>
    %502 = arith.addf %491, %501 : vector<1x256xf32>
    %503 = vector.extract_strided_slice %28 {offsets = [0, 50], sizes = [1, 256], strides = [1, 1]} : vector<1x384xf32> to vector<1x256xf32>
    %504 = vector.extract_strided_slice %29 {offsets = [0, 50], sizes = [1, 256], strides = [1, 1]} : vector<1x384xf32> to vector<1x256xf32>
    %c0_148 = arith.constant 0 : index
    %c19 = arith.constant 19 : index
    %505 = memref.load %arg4[%c0_148, %c19] : memref<2x49xf32, #tpu.memory_space<smem>>
    %c1_149 = arith.constant 1 : index
    %c19_150 = arith.constant 19 : index
    %506 = memref.load %arg4[%c1_149, %c19_150] : memref<2x49xf32, #tpu.memory_space<smem>>
    %507 = vector.broadcast %505 : f32 to vector<1x256xf32>
    %508 = arith.mulf %507, %503 : vector<1x256xf32>
    %509 = vector.broadcast %506 : f32 to vector<1x256xf32>
    %510 = arith.mulf %509, %504 : vector<1x256xf32>
    %511 = arith.addf %508, %510 : vector<1x256xf32>
    %512 = arith.mulf %511, %480 : vector<1x256xf32>
    %513 = arith.addf %502, %512 : vector<1x256xf32>
    %514 = vector.extract_strided_slice %28 {offsets = [0, 66], sizes = [1, 256], strides = [1, 1]} : vector<1x384xf32> to vector<1x256xf32>
    %515 = vector.extract_strided_slice %29 {offsets = [0, 66], sizes = [1, 256], strides = [1, 1]} : vector<1x384xf32> to vector<1x256xf32>
    %c0_151 = arith.constant 0 : index
    %c26 = arith.constant 26 : index
    %516 = memref.load %arg4[%c0_151, %c26] : memref<2x49xf32, #tpu.memory_space<smem>>
    %c1_152 = arith.constant 1 : index
    %c26_153 = arith.constant 26 : index
    %517 = memref.load %arg4[%c1_152, %c26_153] : memref<2x49xf32, #tpu.memory_space<smem>>
    %518 = vector.broadcast %516 : f32 to vector<1x256xf32>
    %519 = arith.mulf %518, %514 : vector<1x256xf32>
    %520 = vector.broadcast %517 : f32 to vector<1x256xf32>
    %521 = arith.mulf %520, %515 : vector<1x256xf32>
    %522 = arith.addf %519, %521 : vector<1x256xf32>
    %523 = arith.mulf %522, %480 : vector<1x256xf32>
    %524 = arith.addf %513, %523 : vector<1x256xf32>
    %525 = vector.extract_strided_slice %28 {offsets = [0, 82], sizes = [1, 256], strides = [1, 1]} : vector<1x384xf32> to vector<1x256xf32>
    %526 = vector.extract_strided_slice %29 {offsets = [0, 82], sizes = [1, 256], strides = [1, 1]} : vector<1x384xf32> to vector<1x256xf32>
    %c0_154 = arith.constant 0 : index
    %c33 = arith.constant 33 : index
    %527 = memref.load %arg4[%c0_154, %c33] : memref<2x49xf32, #tpu.memory_space<smem>>
    %c1_155 = arith.constant 1 : index
    %c33_156 = arith.constant 33 : index
    %528 = memref.load %arg4[%c1_155, %c33_156] : memref<2x49xf32, #tpu.memory_space<smem>>
    %529 = vector.broadcast %527 : f32 to vector<1x256xf32>
    %530 = arith.mulf %529, %525 : vector<1x256xf32>
    %531 = vector.broadcast %528 : f32 to vector<1x256xf32>
    %532 = arith.mulf %531, %526 : vector<1x256xf32>
    %533 = arith.addf %530, %532 : vector<1x256xf32>
    %534 = arith.mulf %533, %480 : vector<1x256xf32>
    %535 = arith.addf %524, %534 : vector<1x256xf32>
    %536 = vector.extract_strided_slice %28 {offsets = [0, 98], sizes = [1, 256], strides = [1, 1]} : vector<1x384xf32> to vector<1x256xf32>
    %537 = vector.extract_strided_slice %29 {offsets = [0, 98], sizes = [1, 256], strides = [1, 1]} : vector<1x384xf32> to vector<1x256xf32>
    %c0_157 = arith.constant 0 : index
    %c40 = arith.constant 40 : index
    %538 = memref.load %arg4[%c0_157, %c40] : memref<2x49xf32, #tpu.memory_space<smem>>
    %c1_158 = arith.constant 1 : index
    %c40_159 = arith.constant 40 : index
    %539 = memref.load %arg4[%c1_158, %c40_159] : memref<2x49xf32, #tpu.memory_space<smem>>
    %540 = vector.broadcast %538 : f32 to vector<1x256xf32>
    %541 = arith.mulf %540, %536 : vector<1x256xf32>
    %542 = vector.broadcast %539 : f32 to vector<1x256xf32>
    %543 = arith.mulf %542, %537 : vector<1x256xf32>
    %544 = arith.addf %541, %543 : vector<1x256xf32>
    %545 = arith.mulf %544, %480 : vector<1x256xf32>
    %546 = arith.addf %535, %545 : vector<1x256xf32>
    %547 = vector.extract_strided_slice %28 {offsets = [0, 114], sizes = [1, 256], strides = [1, 1]} : vector<1x384xf32> to vector<1x256xf32>
    %548 = vector.extract_strided_slice %29 {offsets = [0, 114], sizes = [1, 256], strides = [1, 1]} : vector<1x384xf32> to vector<1x256xf32>
    %c0_160 = arith.constant 0 : index
    %c47 = arith.constant 47 : index
    %549 = memref.load %arg4[%c0_160, %c47] : memref<2x49xf32, #tpu.memory_space<smem>>
    %c1_161 = arith.constant 1 : index
    %c47_162 = arith.constant 47 : index
    %550 = memref.load %arg4[%c1_161, %c47_162] : memref<2x49xf32, #tpu.memory_space<smem>>
    %551 = vector.broadcast %549 : f32 to vector<1x256xf32>
    %552 = arith.mulf %551, %547 : vector<1x256xf32>
    %553 = vector.broadcast %550 : f32 to vector<1x256xf32>
    %554 = arith.mulf %553, %548 : vector<1x256xf32>
    %555 = arith.addf %552, %554 : vector<1x256xf32>
    %556 = arith.mulf %555, %480 : vector<1x256xf32>
    %557 = arith.addf %546, %556 : vector<1x256xf32>
    %c3_i32 = arith.constant 3 : i32
    %558 = vector.broadcast %c3_i32 : i32 to vector<1x256xi32>
    %559 = arith.addi %46, %558 : vector<1x256xi32>
    %c0_i32_163 = arith.constant 0 : i32
    %560 = vector.broadcast %c0_i32_163 : i32 to vector<1x256xi32>
    %561 = arith.cmpi sge, %559, %560 : vector<1x256xi32>
    %c3_i32_164 = arith.constant 3 : i32
    %562 = vector.broadcast %c3_i32_164 : i32 to vector<1x256xi32>
    %563 = arith.addi %46, %562 : vector<1x256xi32>
    %c16_i32_165 = arith.constant 16 : i32
    %564 = vector.broadcast %c16_i32_165 : i32 to vector<1x256xi32>
    %565 = arith.cmpi slt, %563, %564 : vector<1x256xi32>
    %566 = arith.andi %561, %565 : vector<1x256xi1>
    %567 = arith.extui %566 : vector<1x256xi1> to vector<1x256xi32>
    %568 = arith.sitofp %567 : vector<1x256xi32> to vector<1x256xf32>
    %569 = vector.extract_strided_slice %28 {offsets = [0, 19], sizes = [1, 256], strides = [1, 1]} : vector<1x384xf32> to vector<1x256xf32>
    %570 = vector.extract_strided_slice %29 {offsets = [0, 19], sizes = [1, 256], strides = [1, 1]} : vector<1x384xf32> to vector<1x256xf32>
    %c0_166 = arith.constant 0 : index
    %c6 = arith.constant 6 : index
    %571 = memref.load %arg4[%c0_166, %c6] : memref<2x49xf32, #tpu.memory_space<smem>>
    %c1_167 = arith.constant 1 : index
    %c6_168 = arith.constant 6 : index
    %572 = memref.load %arg4[%c1_167, %c6_168] : memref<2x49xf32, #tpu.memory_space<smem>>
    %573 = vector.broadcast %571 : f32 to vector<1x256xf32>
    %574 = arith.mulf %573, %569 : vector<1x256xf32>
    %575 = vector.broadcast %572 : f32 to vector<1x256xf32>
    %576 = arith.mulf %575, %570 : vector<1x256xf32>
    %577 = arith.addf %574, %576 : vector<1x256xf32>
    %578 = arith.mulf %577, %568 : vector<1x256xf32>
    %579 = arith.addf %557, %578 : vector<1x256xf32>
    %580 = vector.extract_strided_slice %28 {offsets = [0, 35], sizes = [1, 256], strides = [1, 1]} : vector<1x384xf32> to vector<1x256xf32>
    %581 = vector.extract_strided_slice %29 {offsets = [0, 35], sizes = [1, 256], strides = [1, 1]} : vector<1x384xf32> to vector<1x256xf32>
    %c0_169 = arith.constant 0 : index
    %c13 = arith.constant 13 : index
    %582 = memref.load %arg4[%c0_169, %c13] : memref<2x49xf32, #tpu.memory_space<smem>>
    %c1_170 = arith.constant 1 : index
    %c13_171 = arith.constant 13 : index
    %583 = memref.load %arg4[%c1_170, %c13_171] : memref<2x49xf32, #tpu.memory_space<smem>>
    %584 = vector.broadcast %582 : f32 to vector<1x256xf32>
    %585 = arith.mulf %584, %580 : vector<1x256xf32>
    %586 = vector.broadcast %583 : f32 to vector<1x256xf32>
    %587 = arith.mulf %586, %581 : vector<1x256xf32>
    %588 = arith.addf %585, %587 : vector<1x256xf32>
    %589 = arith.mulf %588, %568 : vector<1x256xf32>
    %590 = arith.addf %579, %589 : vector<1x256xf32>
    %591 = vector.extract_strided_slice %28 {offsets = [0, 51], sizes = [1, 256], strides = [1, 1]} : vector<1x384xf32> to vector<1x256xf32>
    %592 = vector.extract_strided_slice %29 {offsets = [0, 51], sizes = [1, 256], strides = [1, 1]} : vector<1x384xf32> to vector<1x256xf32>
    %c0_172 = arith.constant 0 : index
    %c20 = arith.constant 20 : index
    %593 = memref.load %arg4[%c0_172, %c20] : memref<2x49xf32, #tpu.memory_space<smem>>
    %c1_173 = arith.constant 1 : index
    %c20_174 = arith.constant 20 : index
    %594 = memref.load %arg4[%c1_173, %c20_174] : memref<2x49xf32, #tpu.memory_space<smem>>
    %595 = vector.broadcast %593 : f32 to vector<1x256xf32>
    %596 = arith.mulf %595, %591 : vector<1x256xf32>
    %597 = vector.broadcast %594 : f32 to vector<1x256xf32>
    %598 = arith.mulf %597, %592 : vector<1x256xf32>
    %599 = arith.addf %596, %598 : vector<1x256xf32>
    %600 = arith.mulf %599, %568 : vector<1x256xf32>
    %601 = arith.addf %590, %600 : vector<1x256xf32>
    %602 = vector.extract_strided_slice %28 {offsets = [0, 67], sizes = [1, 256], strides = [1, 1]} : vector<1x384xf32> to vector<1x256xf32>
    %603 = vector.extract_strided_slice %29 {offsets = [0, 67], sizes = [1, 256], strides = [1, 1]} : vector<1x384xf32> to vector<1x256xf32>
    %c0_175 = arith.constant 0 : index
    %c27 = arith.constant 27 : index
    %604 = memref.load %arg4[%c0_175, %c27] : memref<2x49xf32, #tpu.memory_space<smem>>
    %c1_176 = arith.constant 1 : index
    %c27_177 = arith.constant 27 : index
    %605 = memref.load %arg4[%c1_176, %c27_177] : memref<2x49xf32, #tpu.memory_space<smem>>
    %606 = vector.broadcast %604 : f32 to vector<1x256xf32>
    %607 = arith.mulf %606, %602 : vector<1x256xf32>
    %608 = vector.broadcast %605 : f32 to vector<1x256xf32>
    %609 = arith.mulf %608, %603 : vector<1x256xf32>
    %610 = arith.addf %607, %609 : vector<1x256xf32>
    %611 = arith.mulf %610, %568 : vector<1x256xf32>
    %612 = arith.addf %601, %611 : vector<1x256xf32>
    %613 = vector.extract_strided_slice %28 {offsets = [0, 83], sizes = [1, 256], strides = [1, 1]} : vector<1x384xf32> to vector<1x256xf32>
    %614 = vector.extract_strided_slice %29 {offsets = [0, 83], sizes = [1, 256], strides = [1, 1]} : vector<1x384xf32> to vector<1x256xf32>
    %c0_178 = arith.constant 0 : index
    %c34 = arith.constant 34 : index
    %615 = memref.load %arg4[%c0_178, %c34] : memref<2x49xf32, #tpu.memory_space<smem>>
    %c1_179 = arith.constant 1 : index
    %c34_180 = arith.constant 34 : index
    %616 = memref.load %arg4[%c1_179, %c34_180] : memref<2x49xf32, #tpu.memory_space<smem>>
    %617 = vector.broadcast %615 : f32 to vector<1x256xf32>
    %618 = arith.mulf %617, %613 : vector<1x256xf32>
    %619 = vector.broadcast %616 : f32 to vector<1x256xf32>
    %620 = arith.mulf %619, %614 : vector<1x256xf32>
    %621 = arith.addf %618, %620 : vector<1x256xf32>
    %622 = arith.mulf %621, %568 : vector<1x256xf32>
    %623 = arith.addf %612, %622 : vector<1x256xf32>
    %624 = vector.extract_strided_slice %28 {offsets = [0, 99], sizes = [1, 256], strides = [1, 1]} : vector<1x384xf32> to vector<1x256xf32>
    %625 = vector.extract_strided_slice %29 {offsets = [0, 99], sizes = [1, 256], strides = [1, 1]} : vector<1x384xf32> to vector<1x256xf32>
    %c0_181 = arith.constant 0 : index
    %c41 = arith.constant 41 : index
    %626 = memref.load %arg4[%c0_181, %c41] : memref<2x49xf32, #tpu.memory_space<smem>>
    %c1_182 = arith.constant 1 : index
    %c41_183 = arith.constant 41 : index
    %627 = memref.load %arg4[%c1_182, %c41_183] : memref<2x49xf32, #tpu.memory_space<smem>>
    %628 = vector.broadcast %626 : f32 to vector<1x256xf32>
    %629 = arith.mulf %628, %624 : vector<1x256xf32>
    %630 = vector.broadcast %627 : f32 to vector<1x256xf32>
    %631 = arith.mulf %630, %625 : vector<1x256xf32>
    %632 = arith.addf %629, %631 : vector<1x256xf32>
    %633 = arith.mulf %632, %568 : vector<1x256xf32>
    %634 = arith.addf %623, %633 : vector<1x256xf32>
    %635 = vector.extract_strided_slice %28 {offsets = [0, 115], sizes = [1, 256], strides = [1, 1]} : vector<1x384xf32> to vector<1x256xf32>
    %636 = vector.extract_strided_slice %29 {offsets = [0, 115], sizes = [1, 256], strides = [1, 1]} : vector<1x384xf32> to vector<1x256xf32>
    %c0_184 = arith.constant 0 : index
    %c48 = arith.constant 48 : index
    %637 = memref.load %arg4[%c0_184, %c48] : memref<2x49xf32, #tpu.memory_space<smem>>
    %c1_185 = arith.constant 1 : index
    %c48_186 = arith.constant 48 : index
    %638 = memref.load %arg4[%c1_185, %c48_186] : memref<2x49xf32, #tpu.memory_space<smem>>
    %639 = vector.broadcast %637 : f32 to vector<1x256xf32>
    %640 = arith.mulf %639, %635 : vector<1x256xf32>
    %641 = vector.broadcast %638 : f32 to vector<1x256xf32>
    %642 = arith.mulf %641, %636 : vector<1x256xf32>
    %643 = arith.addf %640, %642 : vector<1x256xf32>
    %644 = arith.mulf %643, %568 : vector<1x256xf32>
    %645 = arith.addf %634, %644 : vector<1x256xf32>
    %646 = arith.negf %645 : vector<1x256xf32>
    %647 = math.exp %646 : vector<1x256xf32>
    %cst_187 = arith.constant 1.000000e+00 : f32
    %648 = vector.broadcast %cst_187 : f32 to vector<1x256xf32>
    %649 = arith.addf %648, %647 : vector<1x256xf32>
    %650 = arith.divf %648, %649 : vector<1x256xf32>
    %651 = vector.shape_cast %650 : vector<1x256xf32> to vector<1x1x256xf32>
    %652 = vector.broadcast %651 : vector<1x1x256xf32> to vector<1x32x256xf32>
    %653 = arith.mulf %22, %652 : vector<1x32x256xf32>
    %c0_188 = arith.constant 0 : index
    %c0_189 = arith.constant 0 : index
    %c0_190 = arith.constant 0 : index
    %654 = vector.load %arg5[%c0_188, %c0_189, %c0_190] : memref<1x32x256xf32, #tpu.memory_space<vmem>>, vector<1x32x256xf32>
    tpu.vector_store %arg5[%c0_188, %c0_189, %c0_190], %653 {strides = array<i32>} : memref<1x32x256xf32, #tpu.memory_space<vmem>>, vector<1x32x256xf32>,
    return
  }
  func.func @transform_0(%arg0: i32) -> (i32, i32, i32) {
    %c0_i32 = arith.constant 0 : i32
    %c0_i32_0 = arith.constant 0 : i32
    %c0_i32_1 = arith.constant 0 : i32
    return %arg0, %c0_i32, %c0_i32_0 : i32, i32, i32
  }
  func.func @transform_1(%arg0: i32) -> (i32, i32) {
    %c0_i32 = arith.constant 0 : i32
    %c0_i32_0 = arith.constant 0 : i32
    %c0_i32_1 = arith.constant 0 : i32
    return %c0_i32, %c0_i32_0 : i32, i32
  }
  func.func @transform_2(%arg0: i32) -> (i32, i32) {
    %c0_i32 = arith.constant 0 : i32
    %c0_i32_0 = arith.constant 0 : i32
    %c0_i32_1 = arith.constant 0 : i32
    return %c0_i32, %c0_i32_0 : i32, i32
  }
  func.func @transform_3(%arg0: i32) -> (i32, i32) {
    %c0_i32 = arith.constant 0 : i32
    %c0_i32_0 = arith.constant 0 : i32
    %c0_i32_1 = arith.constant 0 : i32
    return %c0_i32, %c0_i32_0 : i32, i32
  }
  func.func @transform_4(%arg0: i32) -> (i32, i32, i32) {
    %c0_i32 = arith.constant 0 : i32
    %c0_i32_0 = arith.constant 0 : i32
    %c0_i32_1 = arith.constant 0 : i32
    return %arg0, %c0_i32, %c0_i32_0 : i32, i32, i32
  }
}

</mosaic_0001>

<llo_original>
// kernel: tpu_custom_call.1
$region0: #{tpu_custom_call.1}
  #allocation0 [shape = 'u32[]', space=smem, size = 0x4, offset = 0x4, fixed_abs, tag = 'smem constant byte address 0x4 - core index']
  #allocation1 [shape = 'u32[144,128]{1,0:T(1,128)}', space=vmem, size = 0x12000, scoped, tag = 'internal scratch']
  %s0 = inlined_call_operand.hbm [shape: f32[2,32,256], index: 0, kind: input, shape index: {}]
  %s1 = inlined_call_operand.vmem [shape: f32[32,2], index: 1, kind: input, shape index: {}]
  %s2 = inlined_call_operand.vmem [shape: f32[2,32], index: 2, kind: input, shape index: {}]
  %s3 = inlined_call_operand.vmem [shape: f32[2,49], index: 3, kind: input, shape index: {}]
  %s4 = inlined_call_operand.hbm [shape: f32[2,32,256], index: 4, kind: output, shape index: {}]
  %s5 = sld [smem:[#allocation0]]
  $region57: #{tpu_custom_call.1} parent=0
    _
  %s7 = ssub.s32 1, %s5
  %s8 = scalar_select 0, %s7, %s5
  $region1: #{tpu_custom_call.1} parent=0
    #allocation2 [shape = 'u8[65536]{0}', space=vmem, size = 0x10000, scoped, tag = 'input window, operand 0']
    #allocation3 [shape = 's32[2]{0}', space=sflag, size = 0x8, scoped, tag = 'scoped memory for tpu_custom_call.1']
    #allocation4 [shape = 's32[2]{0}', space=sflag, size = 0x8, scoped, tag = 'scoped memory for tpu_custom_call.1']
    #allocation5 [shape = 's32[2]{0}', space=sflag, size = 0x8, scoped, tag = 'scoped memory for tpu_custom_call.1']
    #allocation6 [shape = 'u8[1024]{0}', space=smem, size = 0x400, scoped, tag = 'input window, operand 3, single buffered']
    #allocation7 [shape = 'u8[65536]{0}', space=vmem, size = 0x10000, scoped, tag = 'output window, operand 0']
    %9 = vsyncpa [#allocation3], 0
    %s10 = scalar_lea.sflag [#allocation3], 1
    %11 = vsyncpa %s10, 0
    %12 = vsyncpa [#allocation5], 0
    %13 = vsyncpa [#allocation4], 0
    %s14 = scalar_lea.sflag [#allocation4], 1
    %15 = vsyncpa %s14, 0
    loop: start=0, step=1, limit=4
    $region2: #{tpu_custom_call.1} parent=1 // loop_pre_header
      _
    $region3: #{tpu_custom_call.1} parent=1 // loop_header
      %s17 = sphi 0, %s21
      %p18 = scmp.ge.s32.totalorder %s17, 4
      %s27 = sphi 0, %s29
      %s30 = sphi 0, %s27
      %s31 = sphi 0, %s30
      %s47 = sphi 0, %s31
      %s51 = sphi 0, %s51
      %s53 = sphi 0, %s51
      %s54 = sphi 0, %s53
      %s68 = sphi 0, %s54
      %s72 = sphi 0, %s72
      %s74 = sphi 0, %s72
      %s75 = sphi 0, %s74
      %s89 = sphi 0, %s75
      %s93 = sphi 0, %s93
      %s95 = sphi 0, %s93
      %s96 = sphi 0, %s95
      %s110 = sphi 0, %s96
      %s116 = sphi 0, %s118
      %s119 = sphi 0, %s116
      %s120 = sphi 0, %s119
      %s136 = sphi 0, %s120
    $region4: #{tpu_custom_call.1} parent=1 // loop_header_branch
      %20 = sbr.rel (%p18) target = $region8
    $region5: #{tpu_custom_call.1} parent=1 // loop_body
      %s22 = ssub.s32 %s17, 1
      %s23 = ssub.s32 %s17, 2
      %s24 = sadd.s32 %s17, 1
      %s25 = ssub.s32 %s17, %s24
      %p26 = scmp.eq.s32.totalorder %s25, 0
      %s28 = sadd.s32 %s27, 1
      %s29 = scalar_select %p26, %s27, %s28
      %p32 = pneg %p26
      %p33 = scmp.eq.s32.totalorder %s17, 1
      %p34 = por %p32, %p33
      %p35 = scmp.ne.s32.totalorder %s27, %s30
      %p36 = scmp.eq.s32.totalorder %s17, 0
      %p37 = por %p35, %p36
      %p38 = scmp.ne.s32.totalorder %s27, %s30
      %p39 = scmp.eq.s32.totalorder %s22, 1
      %p40 = por %p38, %p39
      %p41 = scmp.ne.s32.totalorder %s30, %s31
      %p42 = scmp.eq.s32.totalorder %s22, 0
      %p43 = por %p41, %p42
      %p44 = scmp.ne.s32.totalorder %s30, %s31
      %p45 = scmp.eq.s32.totalorder %s23, 1
      %p46 = por %p44, %p45
      %p48 = scmp.ne.s32.totalorder %s31, %s47
      %p49 = scmp.eq.s32.totalorder %s23, 0
      %p50 = por %p48, %p49
      %s52 = sadd.s32 %s51, 1
      %p55 = scmp.eq.s32.totalorder %s17, 1
      %p56 = scmp.ne.s32.totalorder %s51, %s53
      %p57 = scmp.eq.s32.totalorder %s17, 0
      %p58 = por %p56, %p57
      %p59 = scmp.ne.s32.totalorder %s51, %s53
      %p60 = scmp.eq.s32.totalorder %s22, 1
      %p61 = por %p59, %p60
      %p62 = scmp.ne.s32.totalorder %s53, %s54
      %p63 = scmp.eq.s32.totalorder %s22, 0
      %p64 = por %p62, %p63
      %p65 = scmp.ne.s32.totalorder %s53, %s54
      %p66 = scmp.eq.s32.totalorder %s23, 1
      %p67 = por %p65, %p66
      %p69 = scmp.ne.s32.totalorder %s54, %s68
      %p70 = scmp.eq.s32.totalorder %s23, 0
      %p71 = por %p69, %p70
      %s73 = sadd.s32 %s72, 1
      %p76 = scmp.eq.s32.totalorder %s17, 1
      %p77 = scmp.ne.s32.totalorder %s72, %s74
      %p78 = scmp.eq.s32.totalorder %s17, 0
      %p79 = por %p77, %p78
      %p80 = scmp.ne.s32.totalorder %s72, %s74
      %p81 = scmp.eq.s32.totalorder %s22, 1
      %p82 = por %p80, %p81
      %p83 = scmp.ne.s32.totalorder %s74, %s75
      %p84 = scmp.eq.s32.totalorder %s22, 0
      %p85 = por %p83, %p84
      %p86 = scmp.ne.s32.totalorder %s74, %s75
      %p87 = scmp.eq.s32.totalorder %s23, 1
      %p88 = por %p86, %p87
      %p90 = scmp.ne.s32.totalorder %s75, %s89
      %p91 = scmp.eq.s32.totalorder %s23, 0
      %p92 = por %p90, %p91
      %s94 = sadd.s32 %s93, 1
      %p97 = scmp.eq.s32.totalorder %s17, 1
      %p98 = scmp.ne.s32.totalorder %s93, %s95
      %p99 = scmp.eq.s32.totalorder %s17, 0
      %p100 = por %p98, %p99
      %p101 = scmp.ne.s32.totalorder %s93, %s95
      %p102 = scmp.eq.s32.totalorder %s22, 1
      %p103 = por %p101, %p102
      %p104 = scmp.ne.s32.totalorder %s95, %s96
      %p105 = scmp.eq.s32.totalorder %s22, 0
      %p106 = por %p104, %p105
      %p107 = scmp.ne.s32.totalorder %s95, %s96
      %p108 = scmp.eq.s32.totalorder %s23, 1
      %p109 = por %p107, %p108
      %p111 = scmp.ne.s32.totalorder %s96, %s110
      %p112 = scmp.eq.s32.totalorder %s23, 0
      %p113 = por %p111, %p112
      %s114 = ssub.s32 %s17, %s24
      %p115 = scmp.eq.s32.totalorder %s114, 0
      %s117 = sadd.s32 %s116, 1
      %s118 = scalar_select %p115, %s116, %s117
      %p121 = pneg %p115
      %p122 = scmp.eq.s32.totalorder %s17, 1
      %p123 = por %p121, %p122
      %p124 = scmp.ne.s32.totalorder %s116, %s119
      %p125 = scmp.eq.s32.totalorder %s17, 0
      %p126 = por %p124, %p125
      %p127 = scmp.ne.s32.totalorder %s116, %s119
      %p128 = scmp.eq.s32.totalorder %s22, 1
      %p129 = por %p127, %p128
      %p130 = scmp.ne.s32.totalorder %s119, %s120
      %p131 = scmp.eq.s32.totalorder %s22, 0
      %p132 = por %p130, %p131
      %p133 = scmp.ne.s32.totalorder %s119, %s120
      %p134 = scmp.eq.s32.totalorder %s23, 1
      %p135 = por %p133, %p134
      %p137 = scmp.ne.s32.totalorder %s120, %s136
      %p138 = scmp.eq.s32.totalorder %s23, 0
      %p139 = por %p137, %p138
      %p140 = scmp.le.s32.totalorder 1, %s17
      %p141 = scmp.lt.s32.totalorder %s17, 3
      %p142 = pnand %p140, %p141
      %p143 = pneg %p142
      // Predicated region
      $region9: #{tpu_custom_call.1} parent=5 // pred_check
        _
      $region10: #{tpu_custom_call.1} parent=5 // pred_check_branch
        %145 = sbr.rel (%p142) target = $region12
      $region11: #{tpu_custom_call.1} parent=5 // pred_region
        %s146 = ssub.s32 %s17, 1
        // Predicated region
        $region13: #{tpu_custom_call.1} parent=11 // pred_check
          %p147 = pneg %p64
        $region14: #{tpu_custom_call.1} parent=11 // pred_check_branch
          %149 = sbr.rel (%p147) target = $region16
        $region15: #{tpu_custom_call.1} parent=11 // pred_region
          _
        $region16: #{tpu_custom_call.1} parent=11 // pred_fallthru
          _
        // Predicated region
        $region17: #{tpu_custom_call.1} parent=11 // pred_check
          %p150 = pneg %p85
        $region18: #{tpu_custom_call.1} parent=11 // pred_check_branch
          %152 = sbr.rel (%p150) target = $region20
        $region19: #{tpu_custom_call.1} parent=11 // pred_region
          _
        $region20: #{tpu_custom_call.1} parent=11 // pred_fallthru
          _
        // Predicated region
        $region21: #{tpu_custom_call.1} parent=11 // pred_check
          %p153 = pneg %p106
        $region22: #{tpu_custom_call.1} parent=11 // pred_check_branch
          %155 = sbr.rel (%p153) target = $region24
        $region23: #{tpu_custom_call.1} parent=11 // pred_region
          %s157 = ssub.s32 32, 32
          %158 = vsyncadd [#allocation5], %s157
          %s160 = sshll.u32 %s3, 4
          %s161 = int_to_ptr.vmem [resolvable:$true] %s160
          %163 = dma.vmem_to_smem %s161, 32, [#allocation6], [#allocation5]
        $region24: #{tpu_custom_call.1} parent=11 // pred_fallthru
          _
      $region12: #{tpu_custom_call.1} parent=5 // pred_fallthru
        _
      %p164 = scmp.lt.s32.totalorder %s17, 2
      // Predicated region
      $region25: #{tpu_custom_call.1} parent=5 // pred_check
        %p165 = pneg %p164
      $region26: #{tpu_custom_call.1} parent=5 // pred_check_branch
        %167 = sbr.rel (%p165) target = $region28
      $region27: #{tpu_custom_call.1} parent=5 // pred_region
        // Predicated region
        $region29: #{tpu_custom_call.1} parent=27 // pred_check
          %p168 = pneg %p37
        $region30: #{tpu_custom_call.1} parent=27 // pred_check_branch
          %170 = sbr.rel (%p168) target = $region32
        $region31: #{tpu_custom_call.1} parent=27 // pred_region
          %s171 = sand.u32 %s27, 1
          %s172 = scalar_lea.sflag [#allocation3], %s171
          %s173 = sand.u32 %s27, 1
          %s174 = smul.addr %s173, 64
          %s175 = scalar_lea.vmem [#allocation2], %s174
          %s177 = ssub.s32 1024, 1024
          %178 = vsyncadd %s172, %s177
          %s179 = smul.addr %s17, 8
          %s180 = smul.addr %s179, 128
          %s181 = scalar_lea.hbm %s0, %s180
          %s182 = sshll.u32 %s175, 4
          %s183 = int_to_ptr.vmem [resolvable:$true] %s182
          %188 = dma.hbm_to_vmem [thread:$0]  %s181, 1024, %s183, %s172, 256, 256, 16
        $region32: #{tpu_custom_call.1} parent=27 // pred_fallthru
          _
      $region28: #{tpu_custom_call.1} parent=5 // pred_fallthru
        _
      %p189 = scmp.le.s32.totalorder 1, %s17
      %p190 = scmp.lt.s32.totalorder %s17, 3
      %p191 = pnand %p189, %p190
      %p192 = pneg %p191
      // Predicated region
      $region33: #{tpu_custom_call.1} parent=5 // pred_check
        _
      $region34: #{tpu_custom_call.1} parent=5 // pred_check_branch
        %194 = sbr.rel (%p191) target = $region36
      $region35: #{tpu_custom_call.1} parent=5 // pred_region
        %s195 = ssub.s32 %s17, 1
        %s196 = sand.u32 %s30, 1
        %s197 = scalar_lea.sflag [#allocation3], %s196
        %s198 = sand.u32 %s30, 1
        %s199 = smul.addr %s198, 64
        %s200 = scalar_lea.vmem [#allocation2], %s199
        // Predicated region
        $region37: #{tpu_custom_call.1} parent=35 // pred_check
          %p201 = pneg %p43
        $region38: #{tpu_custom_call.1} parent=35 // pred_check_branch
          %203 = sbr.rel (%p201) target = $region40
        $region39: #{tpu_custom_call.1} parent=35 // pred_region
          %204 = dma.done %s197, 1024
        $region40: #{tpu_custom_call.1} parent=35 // pred_fallthru
          _
        // Predicated region
        $region41: #{tpu_custom_call.1} parent=35 // pred_check
          %p205 = pneg %p106
        $region42: #{tpu_custom_call.1} parent=35 // pred_check_branch
          %207 = sbr.rel (%p205) target = $region44
        $region43: #{tpu_custom_call.1} parent=35 // pred_region
          %208 = dma.done [#allocation5], 32
        $region44: #{tpu_custom_call.1} parent=35 // pred_fallthru
          _
        %209 = sfence
        %s210 = sand.u32 %s30, 1
        %s211 = scalar_lea.sflag [#allocation3], %s210
        %s212 = sand.u32 %s30, 1
        %s213 = smul.addr %s212, 64
        %s214 = scalar_lea.vmem [#allocation2], %s213
        %p215 = pneg %p43
        %p216 = pneg %p40
        %p217 = pneg %p64
        %p218 = pneg %p61
        %p219 = pneg %p85
        %p220 = pneg %p82
        %p221 = pneg %p106
        %p222 = pneg %p103
        %p223 = pneg %p132
        %p224 = pneg %p129
        %s225 = sand.u32 %s119, 1
        %s226 = scalar_lea.sflag [#allocation4], %s225
        %s227 = sand.u32 %s119, 1
        %s228 = smul.addr %s227, 64
        %s229 = scalar_lea.vmem [#allocation7], %s228
        %v230 = vld [vmem:[%s200] sm:$0xff]
        %v231 = vld [vmem:[%s200 + $0x8] sm:$0xff]
        %v232 = vld [vmem:[%s200 + $0x10] sm:$0xff]
        %v233 = vld [vmem:[%s200 + $0x18] sm:$0xff]
        %v234 = vld [vmem:[%s200 + $0x20] sm:$0xff]
        %v235 = vld [vmem:[%s200 + $0x28] sm:$0xff]
        %v236 = vld [vmem:[%s200 + $0x30] sm:$0xff]
        %v237 = vld [vmem:[%s200 + $0x38] sm:$0xff]
        %v238 = vadd.f32 %v230, %v231
        %239 = vadd.xlane.f32.xlu0 %v238
        %v240 = vpop.xlane.xlu0 %239
        %v241 = vadd.f32 %v232, %v233
        %242 = vadd.xlane.f32.xlu0 %v241
        %v243 = vpop.xlane.xlu0 %242
        %v244 = vadd.f32 %v234, %v235
        %245 = vadd.xlane.f32.xlu0 %v244
        %v246 = vpop.xlane.xlu0 %245
        %v247 = vadd.f32 %v236, %v237
        %248 = vadd.xlane.f32.xlu0 %v247
        %v249 = vpop.xlane.xlu0 %248
        %v250 = vmul.f32 %v240, 0.00390625
        %v251 = vmul.f32 %v243, 0.00390625
        %v252 = vmul.f32 %v246, 0.00390625
        %v253 = vmul.f32 %v249, 0.00390625
        %v254 = vmax.f32 %v230, %v231
        %255 = vmax.xlane.f32.xlu0 %v254
        %v256 = vpop.xlane.xlu0 %255
        %v257 = vmax.f32 %v232, %v233
        %258 = vmax.xlane.f32.xlu0 %v257
        %v259 = vpop.xlane.xlu0 %258
        %v260 = vmax.f32 %v234, %v235
        %261 = vmax.xlane.f32.xlu0 %v260
        %v262 = vpop.xlane.xlu0 %261
        %v263 = vmax.f32 %v236, %v237
        %264 = vmax.xlane.f32.xlu0 %v263
        %v265 = vpop.xlane.xlu0 %264
        %v270 = vlaneseq
        %v271 = vand.u32 %v270, 127
        %v272 = vlaneseq
        %v273 = vshrl.u32 %v272, 7
        %v274 = vsub.s32 %v271, %v273
        %v275 = vrot.slane %v250, %v274
        %v276 = vadd.s32 %v271, 4294967288
        %v277 = vlaneseq
        %v278 = vshrl.u32 %v277, 7
        %v279 = vsub.s32 %v276, %v278
        %v280 = vrot.slane %v251, %v279
        %vm281 = vcmask 130112
        %v282 = vsel %vm281, %v280, %v275
        %v283 = vadd.s32 %v271, 4294967280
        %v284 = vlaneseq
        %v285 = vshrl.u32 %v284, 7
        %v286 = vsub.s32 %v283, %v285
        %v287 = vrot.slane %v252, %v286
        %vm288 = vcmask 195712
        %v289 = vsel %vm288, %v287, %v282
        %v290 = vadd.s32 %v271, 4294967272
        %v291 = vlaneseq
        %v292 = vshrl.u32 %v291, 7
        %v293 = vsub.s32 %v290, %v292
        %v294 = vrot.slane %v253, %v293
        %vm295 = vcmask 261312
        %v296 = vsel %vm295, %v294, %v289
        %v302 = vlaneseq
        %v303 = vshrl.u32 %v302, 7
        %v304 = vsub.s32 %v271, %v303
        %v305 = vrot.slane %v256, %v304
        %v306 = vlaneseq
        %v307 = vshrl.u32 %v306, 7
        %v308 = vsub.s32 %v276, %v307
        %v309 = vrot.slane %v259, %v308
        %v310 = vsel %vm281, %v309, %v305
        %v311 = vlaneseq
        %v312 = vshrl.u32 %v311, 7
        %v313 = vsub.s32 %v283, %v312
        %v314 = vrot.slane %v262, %v313
        %v315 = vsel %vm288, %v314, %v310
        %v316 = vlaneseq
        %v317 = vshrl.u32 %v316, 7
        %v318 = vsub.s32 %v290, %v317
        %v319 = vrot.slane %v265, %v318
        %v320 = vsel %vm295, %v319, %v315
        %vm322 = vcmask 1040384
        %v323 = vsel %vm322, %v296, %v320
        %v324 = vld [vmem:[%s1] sm:$0xff]
        %v325 = vld [vmem:[%s1 + $0x8] sm:$0xff]
        %v326 = vld [vmem:[%s1 + $0x10] sm:$0xff]
        %v327 = vld [vmem:[%s1 + $0x18] sm:$0xff]
        %vm328 = vcmask 261120
        %v330 = vsel %vm328, %v323, 0
        %332 = vmatprep.subr.mxu0 0.0
        %333 = vmatpush1.msra.mxu0 0.0
        %334 = vmatprep.subr.mxu0 0.0
        %335 = vmatpush1.msra.mxu0 0.0
        %336 = vmatprep.subr.mxu0 0.0
        %337 = vmatpush1.msra.mxu0 0.0
        %338 = vmatprep.subr.mxu0 0.0
        %339 = vmatpush1.msra.mxu0 0.0
        %340 = vmatprep.subr.mxu0 0.0
        %341 = vmatpush1.msra.mxu0 0.0
        %342 = vmatprep.subr.mxu0 0.0
        %343 = vmatpush1.msra.mxu0 0.0
        %344 = vmatprep.subr.mxu0 0.0
        %345 = vmatpush1.msra.mxu0 0.0
        %346 = vmatprep.subr.mxu0 0.0
        %347 = vmatpush1.msra.mxu0 0.0
        %348 = vmatprep.subr.mxu0 0.0
        %349 = vmatpush1.msra.mxu0 0.0
        %350 = vmatprep.subr.mxu0 0.0
        %351 = vmatpush1.msra.mxu0 0.0
        %352 = vmatprep.subr.mxu0 0.0
        %353 = vmatpush1.msra.mxu0 0.0
        %354 = vmatprep.subr.mxu0 0.0
        %355 = vmatpush1.msra.mxu0 0.0
        %356 = vmatprep.subr.mxu0 0.0
        %357 = vmatpush1.msra.mxu0 %v327
        %358 = vmatprep.subr.mxu0 0.0
        %359 = vmatpush1.msra.mxu0 %v326
        %360 = vmatprep.subr.mxu0 0.0
        %361 = vmatpush1.msra.mxu0 %v325
        %362 = vmatprep.subr.mxu0 0.0
        %363 = vmatpush1.msra.mxu0 %v324
        %364 = vmatprep.subr.mxu0 0.0
        %365 = vmatpush2.msra.mxu0 0.0
        %366 = vmatprep.subr.mxu0 0.0
        %367 = vmatpush2.msra.mxu0 0.0
        %368 = vmatprep.subr.mxu0 0.0
        %369 = vmatpush2.msra.mxu0 0.0
        %370 = vmatprep.subr.mxu0 0.0
        %371 = vmatpush2.msra.mxu0 0.0
        %372 = vmatprep.subr.mxu0 0.0
        %373 = vmatpush2.msra.mxu0 0.0
        %374 = vmatprep.subr.mxu0 0.0
        %375 = vmatpush2.msra.mxu0 0.0
        %376 = vmatprep.subr.mxu0 0.0
        %377 = vmatpush2.msra.mxu0 0.0
        %378 = vmatprep.subr.mxu0 0.0
        %379 = vmatpush2.msra.mxu0 0.0
        %380 = vmatprep.subr.mxu0 0.0
        %381 = vmatpush2.msra.mxu0 0.0
        %382 = vmatprep.subr.mxu0 0.0
        %383 = vmatpush2.msra.mxu0 0.0
        %384 = vmatprep.subr.mxu0 0.0
        %385 = vmatpush2.msra.mxu0 0.0
        %386 = vmatprep.subr.mxu0 0.0
        %387 = vmatpush2.msra.mxu0 0.0
        %388 = vmatprep.subr.mxu0 0.0
        %389 = vmatpush2.msra.mxu0 0.0
        %390 = vmatprep.subr.mxu0 0.0
        %391 = vmatpush2.msra.mxu0 0.0
        %392 = vmatprep.subr.mxu0 0.0
        %393 = vmatpush2.msra.mxu0 0.0
        %394 = vmatprep.subr.mxu0 0.0
        %395 = vmatpush2.msra.mxu0 0.0
        %396 = vmatprep.mubr.f32.mxu0 0.0
        %397 = vmatmul.mubr.f32.gmra.mxu0 %v330
        %v398 = vpop.f32.mrf.mxu0
        %v399 = vadd.f32 0.0, %v398
        %v400 = vpop.f32.mrf.mxu0
        %401 = vdwg.mxu0
        %v402 = vmax.f32 %v399, 0.0
        %v403 = vld [vmem:[%s2] sm:$0x3]
        %vm404 = vcmask 15360
        %v406 = vsel %vm404, %v402, 0
        %vm408 = vcmask 1041408
        %v410 = vsel %vm408, %v403, 0
        %412 = vmatprep.subr.mxu0 0.0
        %413 = vmatpush1.msra.mxu0 0.0
        %414 = vmatprep.subr.mxu0 0.0
        %415 = vmatpush1.msra.mxu0 0.0
        %416 = vmatprep.subr.mxu0 0.0
        %417 = vmatpush1.msra.mxu0 0.0
        %418 = vmatprep.subr.mxu0 0.0
        %419 = vmatpush1.msra.mxu0 0.0
        %420 = vmatprep.subr.mxu0 0.0
        %421 = vmatpush1.msra.mxu0 0.0
        %422 = vmatprep.subr.mxu0 0.0
        %423 = vmatpush1.msra.mxu0 0.0
        %424 = vmatprep.subr.mxu0 0.0
        %425 = vmatpush1.msra.mxu0 0.0
        %426 = vmatprep.subr.mxu0 0.0
        %427 = vmatpush1.msra.mxu0 0.0
        %428 = vmatprep.subr.mxu0 0.0
        %429 = vmatpush1.msra.mxu0 0.0
        %430 = vmatprep.subr.mxu0 0.0
        %431 = vmatpush1.msra.mxu0 0.0
        %432 = vmatprep.subr.mxu0 0.0
        %433 = vmatpush1.msra.mxu0 0.0
        %434 = vmatprep.subr.mxu0 0.0
        %435 = vmatpush1.msra.mxu0 0.0
        %436 = vmatprep.subr.mxu0 0.0
        %437 = vmatpush1.msra.mxu0 0.0
        %438 = vmatprep.subr.mxu0 0.0
        %439 = vmatpush1.msra.mxu0 0.0
        %440 = vmatprep.subr.mxu0 0.0
        %441 = vmatpush1.msra.mxu0 0.0
        %442 = vmatprep.subr.mxu0 0.0
        %443 = vmatpush1.msra.mxu0 %v410
        %444 = vmatprep.subr.mxu0 0.0
        %445 = vmatpush2.msra.mxu0 0.0
        %446 = vmatprep.subr.mxu0 0.0
        %447 = vmatpush2.msra.mxu0 0.0
        %448 = vmatprep.subr.mxu0 0.0
        %449 = vmatpush2.msra.mxu0 0.0
        %450 = vmatprep.subr.mxu0 0.0
        %451 = vmatpush2.msra.mxu0 0.0
        %452 = vmatprep.subr.mxu0 0.0
        %453 = vmatpush2.msra.mxu0 0.0
        %454 = vmatprep.subr.mxu0 0.0
        %455 = vmatpush2.msra.mxu0 0.0
        %456 = vmatprep.subr.mxu0 0.0
        %457 = vmatpush2.msra.mxu0 0.0
        %458 = vmatprep.subr.mxu0 0.0
        %459 = vmatpush2.msra.mxu0 0.0
        %460 = vmatprep.subr.mxu0 0.0
        %461 = vmatpush2.msra.mxu0 0.0
        %462 = vmatprep.subr.mxu0 0.0
        %463 = vmatpush2.msra.mxu0 0.0
        %464 = vmatprep.subr.mxu0 0.0
        %465 = vmatpush2.msra.mxu0 0.0
        %466 = vmatprep.subr.mxu0 0.0
        %467 = vmatpush2.msra.mxu0 0.0
        %468 = vmatprep.subr.mxu0 0.0
        %469 = vmatpush2.msra.mxu0 0.0
        %470 = vmatprep.subr.mxu0 0.0
        %471 = vmatpush2.msra.mxu0 0.0
        %472 = vmatprep.subr.mxu0 0.0
        %473 = vmatpush2.msra.mxu0 0.0
        %474 = vmatprep.subr.mxu0 0.0
        %475 = vmatpush2.msra.mxu0 0.0
        %476 = vmatprep.mubr.f32.mxu0 0.0
        %477 = vmatmul.mubr.f32.gmra.mxu0 %v406
        %v478 = vpop.f32.mrf.mxu0
        %v479 = vadd.f32 0.0, %v478
        %v480 = vpop.f32.mrf.mxu0
        %481 = vdwg.mxu0
        %v483 = vrot.slane %v479, 1
        %v485 = vadd.f32 %v479, %v483
        %v486 = vxor.u32 %v485, 2147483648
        %v487 = vmul.f32 %v486, 1.442695
        %v488 = vpow.pop %v487
        %v489 = vadd.f32 %v488, 1.0
        %v490 = vrcp.pop %v489
        %v491 = vmul.f32 1.0, %v490
        %v492 = vlaneseq
        %v493 = vshrl.u32 %v492, 7
        %v494 = vsub.s32 0, %v493
        %v495 = vrot.slane %v491, %v494
        %497 = vbcast.lane.b32.xlu0 %v495, 256
        %v498 = vpop.permute.xlu0 %497
        %s500 = sor.u32 256, 8
        %501 = vbcast.lane.b32.xlu0 %v495, %s500
        %v502 = vpop.permute.xlu0 %501
        %s504 = sor.u32 256, 16
        %505 = vbcast.lane.b32.xlu0 %v495, %s504
        %v506 = vpop.permute.xlu0 %505
        %s508 = sor.u32 256, 24
        %509 = vbcast.lane.b32.xlu0 %v495, %s508
        %v510 = vpop.permute.xlu0 %509
        %v511 = vmul.f32 %v230, %v498
        %v512 = vmul.f32 %v231, %v498
        %v513 = vmul.f32 %v232, %v502
        %v514 = vmul.f32 %v233, %v502
        %v515 = vmul.f32 %v234, %v506
        %v516 = vmul.f32 %v235, %v506
        %v517 = vmul.f32 %v236, %v510
        %v518 = vmul.f32 %v237, %v510
        %v519 = vadd.f32 %v511, %v513
        %v520 = vadd.f32 %v519, %v515
        %v521 = vadd.f32 %v520, %v517
        %v522 = vrot.slane %v521, 4
        %v523 = vadd.f32 %v521, %v522
        %v524 = vrot.slane %v523, 2
        %v525 = vadd.f32 %v523, %v524
        %v526 = vrot.slane %v525, 1
        %v527 = vadd.f32 %v525, %v526
        %v528 = vadd.f32 %v512, %v514
        %v529 = vadd.f32 %v528, %v516
        %v530 = vadd.f32 %v529, %v518
        %v531 = vrot.slane %v530, 4
        %v532 = vadd.f32 %v530, %v531
        %v533 = vrot.slane %v532, 2
        %v534 = vadd.f32 %v532, %v533
        %v535 = vrot.slane %v534, 1
        %v536 = vadd.f32 %v534, %v535
        %v537 = vmul.f32 %v527, 0.03125
        %v538 = vmul.f32 %v536, 0.03125
        %v539 = vmax.f32 %v511, %v515
        %v540 = vmax.f32 %v513, %v517
        %v541 = vmax.f32 %v539, %v540
        %v542 = vrot.slane %v541, 4
        %v543 = vmax.f32 %v541, %v542
        %v544 = vrot.slane %v543, 2
        %v545 = vmax.f32 %v543, %v544
        %v546 = vrot.slane %v545, 1
        %v547 = vmax.f32 %v545, %v546
        %v548 = vmax.f32 %v512, %v516
        %v549 = vmax.f32 %v514, %v518
        %v550 = vmax.f32 %v548, %v549
        %v551 = vrot.slane %v550, 4
        %v552 = vmax.f32 %v550, %v551
        %v553 = vrot.slane %v552, 2
        %v554 = vmax.f32 %v552, %v553
        %v555 = vrot.slane %v554, 1
        %v556 = vmax.f32 %v554, %v555
        %559 = vrot.lane.b32.xlu0 %v537, 64
        %v560 = vpop.permute.xlu0 %559
        %561 = vrot.lane.b32.xlu0 %v538, 64
        %v562 = vpop.permute.xlu0 %561
        %vm563 = vcmask 523264
        %v564 = vsel %vm563, %v560, %v562
        %v568 = vsel %vm563, 0.0, %v560
        %v569 = vsel %vm563, %v562, 0.0
        %572 = vrot.lane.b32.xlu0 %v547, 64
        %v573 = vpop.permute.xlu0 %572
        %574 = vrot.lane.b32.xlu0 %v556, 64
        %v575 = vpop.permute.xlu0 %574
        %v576 = vsel %vm563, %v573, %v575
        %v580 = vsel %vm563, 0.0, %v573
        %v581 = vsel %vm563, %v575, 0.0
        %v582 = vadd.s32 %v271, 128
        %vm583 = vcmp.lt.s32.totalorder %v271, 0
        %v584 = vsub.s32 0, %v271
        %v585 = vsel %vm583, %v584, %v271
        %v586 = vshrl.u32 %v585, 4
        %v587 = vand.u32 %v585, 15
        %v588 = vsub.s32 0, %v587
        %v589 = vsel %vm583, %v588, %v587
        %vm590 = vcmp.lt.s32.totalorder %v582, 0
        %v591 = vsub.s32 0, %v582
        %v592 = vsel %vm590, %v591, %v582
        %v593 = vshrl.u32 %v592, 4
        %v594 = vand.u32 %v592, 15
        %v595 = vsub.s32 0, %v594
        %v596 = vsel %vm590, %v595, %v594
        %vm597 = vcmp.ne.s32.totalorder %v589, 0
        %vm598 = vcmp.ne.s32.totalorder %v596, 0
        %vm599 = vcmp.lt.s32.totalorder %v589, 0
        %vm600 = vcmp.lt.s32.totalorder %v596, 0
        %vm601 = vmand %vm599, %vm597
        %vm602 = vmand %vm600, %vm598
        %v603 = vadd.s32 %v589, 16
        %v604 = vadd.s32 %v596, 16
        %v605 = vsel %vm601, %v603, %v589
        %v606 = vsel %vm602, %v604, %v596
        %v607 = vadd.s32 %v605, 4294967293
        %v608 = vadd.s32 %v606, 4294967293
        %vm609 = vcmp.ge.s32.totalorder %v607, 0
        %vm610 = vcmp.ge.s32.totalorder %v608, 0
        %vm611 = vcmp.lt.s32.totalorder %v607, 16
        %vm612 = vcmp.lt.s32.totalorder %v608, 16
        %vm613 = vmand %vm609, %vm611
        %vm614 = vmand %vm610, %vm612
        %v615 = vsel %vm613, 1, 0
        %v616 = vsel %vm614, 1, 0
        %v617 = vcvt.s32.f32 %v615
        %v618 = vcvt.s32.f32 %v616
        %s619 = sld [smem:[#allocation6]]
        %s620 = sld [smem:[#allocation6 + $0x80]]
        %v621 = vstv %s619
        %v622 = vmul.f32 %v621, %v568
        %v623 = vmul.f32 %v621, %v564
        %v624 = vmul.f32 %v621, %v569
        %v625 = vstv %s620
        %v626 = vmul.f32 %v625, %v580
        %v627 = vmul.f32 %v625, %v576
        %v628 = vmul.f32 %v625, %v581
        %v629 = vadd.f32 %v622, %v626
        %v630 = vadd.f32 %v623, %v627
        %v631 = vadd.f32 %v624, %v628
        %634 = vrot.lane.b32.xlu0 %v617, 13
        %v635 = vpop.permute.xlu0 %634
        %636 = vrot.lane.b32.xlu0 %v618, 13
        %v637 = vpop.permute.xlu0 %636
        %vm638 = vcmask 105472
        %v639 = vsel %vm638, %v635, %v637
        %v643 = vmul.f32 %v629, %v635
        %v644 = vmul.f32 %v630, %v639
        %v645 = vmul.f32 %v631, %v637
        %v646 = vadd.f32 %v643, 0.0
        %v647 = vadd.f32 %v644, 0.0
        %v648 = vadd.f32 %v645, 0.0
        %s649 = sld [smem:[#allocation6 + $0x7]]
        %s650 = sld [smem:[#allocation6 + $0x87]]
        %v651 = vstv %s649
        %v652 = vmul.f32 %v651, %v568
        %v653 = vmul.f32 %v651, %v564
        %v654 = vmul.f32 %v651, %v569
        %v655 = vstv %s650
        %v656 = vmul.f32 %v655, %v580
        %v657 = vmul.f32 %v655, %v576
        %v658 = vmul.f32 %v655, %v581
        %v659 = vadd.f32 %v652, %v656
        %v660 = vadd.f32 %v653, %v657
        %v661 = vadd.f32 %v654, %v658
        %662 = vrot.lane.b32.xlu0 %v617, 29
        %v663 = vpop.permute.xlu0 %662
        %664 = vrot.lane.b32.xlu0 %v618, 29
        %v665 = vpop.permute.xlu0 %664
        %vm666 = vcmask 236544
        %v667 = vsel %vm666, %v663, %v665
        %v671 = vmul.f32 %v659, %v663
        %v672 = vmul.f32 %v660, %v667
        %v673 = vmul.f32 %v661, %v665
        %677 = vrot.lane.b32.xlu0 %v671, 112
        %v678 = vpop.permute.xlu0 %677
        %679 = vrot.lane.b32.xlu0 %v672, 112
        %v680 = vpop.permute.xlu0 %679
        %681 = vrot.lane.b32.xlu0 %v673, 112
        %v682 = vpop.permute.xlu0 %681
        %vm683 = vcmask 916480
        %v684 = vsel %vm683, %v678, %v680
        %v685 = vsel %vm683, %v680, %v682
        %v689 = vadd.f32 %v646, %v684
        %v690 = vadd.f32 %v647, %v685
        %v691 = vadd.f32 %v648, %v682
        %s692 = sld [smem:[#allocation6 + $0xe]]
        %s693 = sld [smem:[#allocation6 + $0x8e]]
        %v694 = vstv %s692
        %v695 = vmul.f32 %v694, %v568
        %v696 = vmul.f32 %v694, %v564
        %v697 = vmul.f32 %v694, %v569
        %v698 = vstv %s693
        %v699 = vmul.f32 %v698, %v580
        %v700 = vmul.f32 %v698, %v576
        %v701 = vmul.f32 %v698, %v581
        %v702 = vadd.f32 %v695, %v699
        %v703 = vadd.f32 %v696, %v700
        %v704 = vadd.f32 %v697, %v701
        %705 = vrot.lane.b32.xlu0 %v617, 45
        %v706 = vpop.permute.xlu0 %705
        %707 = vrot.lane.b32.xlu0 %v618, 45
        %v708 = vpop.permute.xlu0 %707
        %vm709 = vcmask 367616
        %v710 = vsel %vm709, %v706, %v708
        %v714 = vmul.f32 %v702, %v706
        %v715 = vmul.f32 %v703, %v710
        %v716 = vmul.f32 %v704, %v708
        %720 = vrot.lane.b32.xlu0 %v714, 96
        %v721 = vpop.permute.xlu0 %720
        %722 = vrot.lane.b32.xlu0 %v715, 96
        %v723 = vpop.permute.xlu0 %722
        %724 = vrot.lane.b32.xlu0 %v716, 96
        %v725 = vpop.permute.xlu0 %724
        %vm726 = vcmask 785408
        %v727 = vsel %vm726, %v721, %v723
        %v728 = vsel %vm726, %v723, %v725
        %v732 = vadd.f32 %v689, %v727
        %v733 = vadd.f32 %v690, %v728
        %v734 = vadd.f32 %v691, %v725
        %s735 = sld [smem:[#allocation6 + $0x15]]
        %s736 = sld [smem:[#allocation6 + $0x95]]
        %v737 = vstv %s735
        %v738 = vmul.f32 %v737, %v568
        %v739 = vmul.f32 %v737, %v564
        %v740 = vmul.f32 %v737, %v569
        %v741 = vstv %s736
        %v742 = vmul.f32 %v741, %v580
        %v743 = vmul.f32 %v741, %v576
        %v744 = vmul.f32 %v741, %v581
        %v745 = vadd.f32 %v738, %v742
        %v746 = vadd.f32 %v739, %v743
        %v747 = vadd.f32 %v740, %v744
        %748 = vrot.lane.b32.xlu0 %v617, 61
        %v749 = vpop.permute.xlu0 %748
        %750 = vrot.lane.b32.xlu0 %v618, 61
        %v751 = vpop.permute.xlu0 %750
        %vm752 = vcmask 498688
        %v753 = vsel %vm752, %v749, %v751
        %v757 = vmul.f32 %v745, %v749
        %v758 = vmul.f32 %v746, %v753
        %v759 = vmul.f32 %v747, %v751
        %763 = vrot.lane.b32.xlu0 %v757, 80
        %v764 = vpop.permute.xlu0 %763
        %765 = vrot.lane.b32.xlu0 %v758, 80
        %v766 = vpop.permute.xlu0 %765
        %767 = vrot.lane.b32.xlu0 %v759, 80
        %v768 = vpop.permute.xlu0 %767
        %vm769 = vcmask 654336
        %v770 = vsel %vm769, %v764, %v766
        %v771 = vsel %vm769, %v766, %v768
        %v775 = vadd.f32 %v732, %v770
        %v776 = vadd.f32 %v733, %v771
        %v777 = vadd.f32 %v734, %v768
        %s778 = sld [smem:[#allocation6 + $0x1c]]
        %s779 = sld [smem:[#allocation6 + $0x9c]]
        %v780 = vstv %s778
        %v781 = vmul.f32 %v780, %v568
        %v782 = vmul.f32 %v780, %v564
        %v783 = vmul.f32 %v780, %v569
        %v784 = vstv %s779
        %v785 = vmul.f32 %v784, %v580
        %v786 = vmul.f32 %v784, %v576
        %v787 = vmul.f32 %v784, %v581
        %v788 = vadd.f32 %v781, %v785
        %v789 = vadd.f32 %v782, %v786
        %v790 = vadd.f32 %v783, %v787
        %791 = vrot.lane.b32.xlu0 %v617, 77
        %v792 = vpop.permute.xlu0 %791
        %793 = vrot.lane.b32.xlu0 %v618, 77
        %v794 = vpop.permute.xlu0 %793
        %vm795 = vcmask 629760
        %v796 = vsel %vm795, %v792, %v794
        %v800 = vmul.f32 %v788, %v792
        %v801 = vmul.f32 %v789, %v796
        %v802 = vmul.f32 %v790, %v794
        %806 = vrot.lane.b32.xlu0 %v800, 64
        %v807 = vpop.permute.xlu0 %806
        %808 = vrot.lane.b32.xlu0 %v801, 64
        %v809 = vpop.permute.xlu0 %808
        %810 = vrot.lane.b32.xlu0 %v802, 64
        %v811 = vpop.permute.xlu0 %810
        %v812 = vsel %vm563, %v807, %v809
        %v813 = vsel %vm563, %v809, %v811
        %v817 = vadd.f32 %v775, %v812
        %v818 = vadd.f32 %v776, %v813
        %v819 = vadd.f32 %v777, %v811
        %s820 = sld [smem:[#allocation6 + $0x23]]
        %s821 = sld [smem:[#allocation6 + $0xa3]]
        %v822 = vstv %s820
        %v823 = vmul.f32 %v822, %v568
        %v824 = vmul.f32 %v822, %v564
        %v825 = vmul.f32 %v822, %v569
        %v826 = vstv %s821
        %v827 = vmul.f32 %v826, %v580
        %v828 = vmul.f32 %v826, %v576
        %v829 = vmul.f32 %v826, %v581
        %v830 = vadd.f32 %v823, %v827
        %v831 = vadd.f32 %v824, %v828
        %v832 = vadd.f32 %v825, %v829
        %833 = vrot.lane.b32.xlu0 %v617, 93
        %v834 = vpop.permute.xlu0 %833
        %835 = vrot.lane.b32.xlu0 %v618, 93
        %v836 = vpop.permute.xlu0 %835
        %vm837 = vcmask 760832
        %v838 = vsel %vm837, %v834, %v836
        %v842 = vmul.f32 %v830, %v834
        %v843 = vmul.f32 %v831, %v838
        %v844 = vmul.f32 %v832, %v836
        %848 = vrot.lane.b32.xlu0 %v842, 48
        %v849 = vpop.permute.xlu0 %848
        %850 = vrot.lane.b32.xlu0 %v843, 48
        %v851 = vpop.permute.xlu0 %850
        %852 = vrot.lane.b32.xlu0 %v844, 48
        %v853 = vpop.permute.xlu0 %852
        %vm854 = vcmask 392192
        %v855 = vsel %vm854, %v849, %v851
        %v856 = vsel %vm854, %v851, %v853
        %v860 = vadd.f32 %v817, %v855
        %v861 = vadd.f32 %v818, %v856
        %v862 = vadd.f32 %v819, %v853
        %s863 = sld [smem:[#allocation6 + $0x2a]]
        %s864 = sld [smem:[#allocation6 + $0xaa]]
        %v865 = vstv %s863
        %v866 = vmul.f32 %v865, %v568
        %v867 = vmul.f32 %v865, %v564
        %v868 = vmul.f32 %v865, %v569
        %v869 = vstv %s864
        %v870 = vmul.f32 %v869, %v580
        %v871 = vmul.f32 %v869, %v576
        %v872 = vmul.f32 %v869, %v581
        %v873 = vadd.f32 %v866, %v870
        %v874 = vadd.f32 %v867, %v871
        %v875 = vadd.f32 %v868, %v872
        %876 = vrot.lane.b32.xlu0 %v617, 109
        %v877 = vpop.permute.xlu0 %876
        %878 = vrot.lane.b32.xlu0 %v618, 109
        %v879 = vpop.permute.xlu0 %878
        %vm880 = vcmask 891904
        %v881 = vsel %vm880, %v877, %v879
        %v885 = vmul.f32 %v873, %v877
        %v886 = vmul.f32 %v874, %v881
        %v887 = vmul.f32 %v875, %v879
        %891 = vrot.lane.b32.xlu0 %v885, 32
        %v892 = vpop.permute.xlu0 %891
        %893 = vrot.lane.b32.xlu0 %v886, 32
        %v894 = vpop.permute.xlu0 %893
        %895 = vrot.lane.b32.xlu0 %v887, 32
        %v896 = vpop.permute.xlu0 %895
        %v897 = vsel %vm328, %v892, %v894
        %v898 = vsel %vm328, %v894, %v896
        %v902 = vadd.f32 %v860, %v897
        %v903 = vadd.f32 %v861, %v898
        %v904 = vadd.f32 %v862, %v896
        %v905 = vadd.s32 %v605, 4294967294
        %v906 = vadd.s32 %v606, 4294967294
        %vm907 = vcmp.ge.s32.totalorder %v905, 0
        %vm908 = vcmp.ge.s32.totalorder %v906, 0
        %vm909 = vcmp.lt.s32.totalorder %v905, 16
        %vm910 = vcmp.lt.s32.totalorder %v906, 16
        %vm911 = vmand %vm907, %vm909
        %vm912 = vmand %vm908, %vm910
        %v913 = vsel %vm911, 1, 0
        %v914 = vsel %vm912, 1, 0
        %v915 = vcvt.s32.f32 %v913
        %v916 = vcvt.s32.f32 %v914
        %s917 = sld [smem:[#allocation6 + $0x1]]
        %s918 = sld [smem:[#allocation6 + $0x81]]
        %v919 = vstv %s917
        %v920 = vmul.f32 %v919, %v568
        %v921 = vmul.f32 %v919, %v564
        %v922 = vmul.f32 %v919, %v569
        %v923 = vstv %s918
        %v924 = vmul.f32 %v923, %v580
        %v925 = vmul.f32 %v923, %v576
        %v926 = vmul.f32 %v923, %v581
        %v927 = vadd.f32 %v920, %v924
        %v928 = vadd.f32 %v921, %v925
        %v929 = vadd.f32 %v922, %v926
        %932 = vrot.lane.b32.xlu0 %v915, 14
        %v933 = vpop.permute.xlu0 %932
        %934 = vrot.lane.b32.xlu0 %v916, 14
        %v935 = vpop.permute.xlu0 %934
        %vm936 = vcmask 113664
        %v937 = vsel %vm936, %v933, %v935
        %v941 = vmul.f32 %v927, %v933
        %v942 = vmul.f32 %v928, %v937
        %v943 = vmul.f32 %v929, %v935
        %947 = vrot.lane.b32.xlu0 %v941, 127
        %v948 = vpop.permute.xlu0 %947
        %949 = vrot.lane.b32.xlu0 %v942, 127
        %v950 = vpop.permute.xlu0 %949
        %951 = vrot.lane.b32.xlu0 %v943, 127
        %v952 = vpop.permute.xlu0 %951
        %vm953 = vcmask 1039360
        %v954 = vsel %vm953, %v948, %v950
        %v955 = vsel %vm953, %v950, %v952
        %v959 = vadd.f32 %v902, %v954
        %v960 = vadd.f32 %v903, %v955
        %v961 = vadd.f32 %v904, %v952
        %s962 = sld [smem:[#allocation6 + $0x8]]
        %s963 = sld [smem:[#allocation6 + $0x88]]
        %v964 = vstv %s962
        %v965 = vmul.f32 %v964, %v568
        %v966 = vmul.f32 %v964, %v564
        %v967 = vmul.f32 %v964, %v569
        %v968 = vstv %s963
        %v969 = vmul.f32 %v968, %v580
        %v970 = vmul.f32 %v968, %v576
        %v971 = vmul.f32 %v968, %v581
        %v972 = vadd.f32 %v965, %v969
        %v973 = vadd.f32 %v966, %v970
        %v974 = vadd.f32 %v967, %v971
        %975 = vrot.lane.b32.xlu0 %v915, 30
        %v976 = vpop.permute.xlu0 %975
        %977 = vrot.lane.b32.xlu0 %v916, 30
        %v978 = vpop.permute.xlu0 %977
        %vm979 = vcmask 244736
        %v980 = vsel %vm979, %v976, %v978
        %v984 = vmul.f32 %v972, %v976
        %v985 = vmul.f32 %v973, %v980
        %v986 = vmul.f32 %v974, %v978
        %990 = vrot.lane.b32.xlu0 %v984, 111
        %v991 = vpop.permute.xlu0 %990
        %992 = vrot.lane.b32.xlu0 %v985, 111
        %v993 = vpop.permute.xlu0 %992
        %994 = vrot.lane.b32.xlu0 %v986, 111
        %v995 = vpop.permute.xlu0 %994
        %vm996 = vcmask 908288
        %v997 = vsel %vm996, %v991, %v993
        %v998 = vsel %vm996, %v993, %v995
        %v1002 = vadd.f32 %v959, %v997
        %v1003 = vadd.f32 %v960, %v998
        %v1004 = vadd.f32 %v961, %v995
        %s1005 = sld [smem:[#allocation6 + $0xf]]
        %s1006 = sld [smem:[#allocation6 + $0x8f]]
        %v1007 = vstv %s1005
        %v1008 = vmul.f32 %v1007, %v568
        %v1009 = vmul.f32 %v1007, %v564
        %v1010 = vmul.f32 %v1007, %v569
        %v1011 = vstv %s1006
        %v1012 = vmul.f32 %v1011, %v580
        %v1013 = vmul.f32 %v1011, %v576
        %v1014 = vmul.f32 %v1011, %v581
        %v1015 = vadd.f32 %v1008, %v1012
        %v1016 = vadd.f32 %v1009, %v1013
        %v1017 = vadd.f32 %v1010, %v1014
        %1018 = vrot.lane.b32.xlu0 %v915, 46
        %v1019 = vpop.permute.xlu0 %1018
        %1020 = vrot.lane.b32.xlu0 %v916, 46
        %v1021 = vpop.permute.xlu0 %1020
        %vm1022 = vcmask 375808
        %v1023 = vsel %vm1022, %v1019, %v1021
        %v1027 = vmul.f32 %v1015, %v1019
        %v1028 = vmul.f32 %v1016, %v1023
        %v1029 = vmul.f32 %v1017, %v1021
        %1033 = vrot.lane.b32.xlu0 %v1027, 95
        %v1034 = vpop.permute.xlu0 %1033
        %1035 = vrot.lane.b32.xlu0 %v1028, 95
        %v1036 = vpop.permute.xlu0 %1035
        %1037 = vrot.lane.b32.xlu0 %v1029, 95
        %v1038 = vpop.permute.xlu0 %1037
        %vm1039 = vcmask 777216
        %v1040 = vsel %vm1039, %v1034, %v1036
        %v1041 = vsel %vm1039, %v1036, %v1038
        %v1045 = vadd.f32 %v1002, %v1040
        %v1046 = vadd.f32 %v1003, %v1041
        %v1047 = vadd.f32 %v1004, %v1038
        %s1048 = sld [smem:[#allocation6 + $0x16]]
        %s1049 = sld [smem:[#allocation6 + $0x96]]
        %v1050 = vstv %s1048
        %v1051 = vmul.f32 %v1050, %v568
        %v1052 = vmul.f32 %v1050, %v564
        %v1053 = vmul.f32 %v1050, %v569
        %v1054 = vstv %s1049
        %v1055 = vmul.f32 %v1054, %v580
        %v1056 = vmul.f32 %v1054, %v576
        %v1057 = vmul.f32 %v1054, %v581
        %v1058 = vadd.f32 %v1051, %v1055
        %v1059 = vadd.f32 %v1052, %v1056
        %v1060 = vadd.f32 %v1053, %v1057
        %1061 = vrot.lane.b32.xlu0 %v915, 62
        %v1062 = vpop.permute.xlu0 %1061
        %1063 = vrot.lane.b32.xlu0 %v916, 62
        %v1064 = vpop.permute.xlu0 %1063
        %vm1065 = vcmask 506880
        %v1066 = vsel %vm1065, %v1062, %v1064
        %v1070 = vmul.f32 %v1058, %v1062
        %v1071 = vmul.f32 %v1059, %v1066
        %v1072 = vmul.f32 %v1060, %v1064
        %1076 = vrot.lane.b32.xlu0 %v1070, 79
        %v1077 = vpop.permute.xlu0 %1076
        %1078 = vrot.lane.b32.xlu0 %v1071, 79
        %v1079 = vpop.permute.xlu0 %1078
        %1080 = vrot.lane.b32.xlu0 %v1072, 79
        %v1081 = vpop.permute.xlu0 %1080
        %vm1082 = vcmask 646144
        %v1083 = vsel %vm1082, %v1077, %v1079
        %v1084 = vsel %vm1082, %v1079, %v1081
        %v1088 = vadd.f32 %v1045, %v1083
        %v1089 = vadd.f32 %v1046, %v1084
        %v1090 = vadd.f32 %v1047, %v1081
        %s1091 = sld [smem:[#allocation6 + $0x1d]]
        %s1092 = sld [smem:[#allocation6 + $0x9d]]
        %v1093 = vstv %s1091
        %v1094 = vmul.f32 %v1093, %v568
        %v1095 = vmul.f32 %v1093, %v564
        %v1096 = vmul.f32 %v1093, %v569
        %v1097 = vstv %s1092
        %v1098 = vmul.f32 %v1097, %v580
        %v1099 = vmul.f32 %v1097, %v576
        %v1100 = vmul.f32 %v1097, %v581
        %v1101 = vadd.f32 %v1094, %v1098
        %v1102 = vadd.f32 %v1095, %v1099
        %v1103 = vadd.f32 %v1096, %v1100
        %1104 = vrot.lane.b32.xlu0 %v915, 78
        %v1105 = vpop.permute.xlu0 %1104
        %1106 = vrot.lane.b32.xlu0 %v916, 78
        %v1107 = vpop.permute.xlu0 %1106
        %vm1108 = vcmask 637952
        %v1109 = vsel %vm1108, %v1105, %v1107
        %v1113 = vmul.f32 %v1101, %v1105
        %v1114 = vmul.f32 %v1102, %v1109
        %v1115 = vmul.f32 %v1103, %v1107
        %1119 = vrot.lane.b32.xlu0 %v1113, 63
        %v1120 = vpop.permute.xlu0 %1119
        %1121 = vrot.lane.b32.xlu0 %v1114, 63
        %v1122 = vpop.permute.xlu0 %1121
        %1123 = vrot.lane.b32.xlu0 %v1115, 63
        %v1124 = vpop.permute.xlu0 %1123
        %vm1125 = vcmask 515072
        %v1126 = vsel %vm1125, %v1120, %v1122
        %v1127 = vsel %vm1125, %v1122, %v1124
        %v1131 = vadd.f32 %v1088, %v1126
        %v1132 = vadd.f32 %v1089, %v1127
        %v1133 = vadd.f32 %v1090, %v1124
        %s1134 = sld [smem:[#allocation6 + $0x24]]
        %s1135 = sld [smem:[#allocation6 + $0xa4]]
        %v1136 = vstv %s1134
        %v1137 = vmul.f32 %v1136, %v568
        %v1138 = vmul.f32 %v1136, %v564
        %v1139 = vmul.f32 %v1136, %v569
        %v1140 = vstv %s1135
        %v1141 = vmul.f32 %v1140, %v580
        %v1142 = vmul.f32 %v1140, %v576
        %v1143 = vmul.f32 %v1140, %v581
        %v1144 = vadd.f32 %v1137, %v1141
        %v1145 = vadd.f32 %v1138, %v1142
        %v1146 = vadd.f32 %v1139, %v1143
        %1147 = vrot.lane.b32.xlu0 %v915, 94
        %v1148 = vpop.permute.xlu0 %1147
        %1149 = vrot.lane.b32.xlu0 %v916, 94
        %v1150 = vpop.permute.xlu0 %1149
        %vm1151 = vcmask 769024
        %v1152 = vsel %vm1151, %v1148, %v1150
        %v1156 = vmul.f32 %v1144, %v1148
        %v1157 = vmul.f32 %v1145, %v1152
        %v1158 = vmul.f32 %v1146, %v1150
        %1162 = vrot.lane.b32.xlu0 %v1156, 47
        %v1163 = vpop.permute.xlu0 %1162
        %1164 = vrot.lane.b32.xlu0 %v1157, 47
        %v1165 = vpop.permute.xlu0 %1164
        %1166 = vrot.lane.b32.xlu0 %v1158, 47
        %v1167 = vpop.permute.xlu0 %1166
        %vm1168 = vcmask 384000
        %v1169 = vsel %vm1168, %v1163, %v1165
        %v1170 = vsel %vm1168, %v1165, %v1167
        %v1174 = vadd.f32 %v1131, %v1169
        %v1175 = vadd.f32 %v1132, %v1170
        %v1176 = vadd.f32 %v1133, %v1167
        %s1177 = sld [smem:[#allocation6 + $0x2b]]
        %s1178 = sld [smem:[#allocation6 + $0xab]]
        %v1179 = vstv %s1177
        %v1180 = vmul.f32 %v1179, %v568
        %v1181 = vmul.f32 %v1179, %v564
        %v1182 = vmul.f32 %v1179, %v569
        %v1183 = vstv %s1178
        %v1184 = vmul.f32 %v1183, %v580
        %v1185 = vmul.f32 %v1183, %v576
        %v1186 = vmul.f32 %v1183, %v581
        %v1187 = vadd.f32 %v1180, %v1184
        %v1188 = vadd.f32 %v1181, %v1185
        %v1189 = vadd.f32 %v1182, %v1186
        %1190 = vrot.lane.b32.xlu0 %v915, 110
        %v1191 = vpop.permute.xlu0 %1190
        %1192 = vrot.lane.b32.xlu0 %v916, 110
        %v1193 = vpop.permute.xlu0 %1192
        %vm1194 = vcmask 900096
        %v1195 = vsel %vm1194, %v1191, %v1193
        %v1199 = vmul.f32 %v1187, %v1191
        %v1200 = vmul.f32 %v1188, %v1195
        %v1201 = vmul.f32 %v1189, %v1193
        %1205 = vrot.lane.b32.xlu0 %v1199, 31
        %v1206 = vpop.permute.xlu0 %1205
        %1207 = vrot.lane.b32.xlu0 %v1200, 31
        %v1208 = vpop.permute.xlu0 %1207
        %1209 = vrot.lane.b32.xlu0 %v1201, 31
        %v1210 = vpop.permute.xlu0 %1209
        %vm1211 = vcmask 252928
        %v1212 = vsel %vm1211, %v1206, %v1208
        %v1213 = vsel %vm1211, %v1208, %v1210
        %v1217 = vadd.f32 %v1174, %v1212
        %v1218 = vadd.f32 %v1175, %v1213
        %v1219 = vadd.f32 %v1176, %v1210
        %v1220 = vadd.s32 %v605, 4294967295
        %v1221 = vadd.s32 %v606, 4294967295
        %vm1222 = vcmp.ge.s32.totalorder %v1220, 0
        %vm1223 = vcmp.ge.s32.totalorder %v1221, 0
        %vm1224 = vcmp.lt.s32.totalorder %v1220, 16
        %vm1225 = vcmp.lt.s32.totalorder %v1221, 16
        %vm1226 = vmand %vm1222, %vm1224
        %vm1227 = vmand %vm1223, %vm1225
        %v1228 = vsel %vm1226, 1, 0
        %v1229 = vsel %vm1227, 1, 0
        %v1230 = vcvt.s32.f32 %v1228
        %v1231 = vcvt.s32.f32 %v1229
        %s1232 = sld [smem:[#allocation6 + $0x2]]
        %s1233 = sld [smem:[#allocation6 + $0x82]]
        %v1234 = vstv %s1232
        %v1235 = vmul.f32 %v1234, %v568
        %v1236 = vmul.f32 %v1234, %v564
        %v1237 = vmul.f32 %v1234, %v569
        %v1238 = vstv %s1233
        %v1239 = vmul.f32 %v1238, %v580
        %v1240 = vmul.f32 %v1238, %v576
        %v1241 = vmul.f32 %v1238, %v581
        %v1242 = vadd.f32 %v1235, %v1239
        %v1243 = vadd.f32 %v1236, %v1240
        %v1244 = vadd.f32 %v1237, %v1241
        %1247 = vrot.lane.b32.xlu0 %v1230, 15
        %v1248 = vpop.permute.xlu0 %1247
        %1249 = vrot.lane.b32.xlu0 %v1231, 15
        %v1250 = vpop.permute.xlu0 %1249
        %vm1251 = vcmask 121856
        %v1252 = vsel %vm1251, %v1248, %v1250
        %v1256 = vmul.f32 %v1242, %v1248
        %v1257 = vmul.f32 %v1243, %v1252
        %v1258 = vmul.f32 %v1244, %v1250
        %1262 = vrot.lane.b32.xlu0 %v1256, 126
        %v1263 = vpop.permute.xlu0 %1262
        %1264 = vrot.lane.b32.xlu0 %v1257, 126
        %v1265 = vpop.permute.xlu0 %1264
        %1266 = vrot.lane.b32.xlu0 %v1258, 126
        %v1267 = vpop.permute.xlu0 %1266
        %vm1268 = vcmask 1031168
        %v1269 = vsel %vm1268, %v1263, %v1265
        %v1270 = vsel %vm1268, %v1265, %v1267
        %v1274 = vadd.f32 %v1217, %v1269
        %v1275 = vadd.f32 %v1218, %v1270
        %v1276 = vadd.f32 %v1219, %v1267
        %s1277 = sld [smem:[#allocation6 + $0x9]]
        %s1278 = sld [smem:[#allocation6 + $0x89]]
        %v1279 = vstv %s1277
        %v1280 = vmul.f32 %v1279, %v568
        %v1281 = vmul.f32 %v1279, %v564
        %v1282 = vmul.f32 %v1279, %v569
        %v1283 = vstv %s1278
        %v1284 = vmul.f32 %v1283, %v580
        %v1285 = vmul.f32 %v1283, %v576
        %v1286 = vmul.f32 %v1283, %v581
        %v1287 = vadd.f32 %v1280, %v1284
        %v1288 = vadd.f32 %v1281, %v1285
        %v1289 = vadd.f32 %v1282, %v1286
        %1290 = vrot.lane.b32.xlu0 %v1230, 31
        %v1291 = vpop.permute.xlu0 %1290
        %1292 = vrot.lane.b32.xlu0 %v1231, 31
        %v1293 = vpop.permute.xlu0 %1292
        %v1294 = vsel %vm1211, %v1291, %v1293
        %v1298 = vmul.f32 %v1287, %v1291
        %v1299 = vmul.f32 %v1288, %v1294
        %v1300 = vmul.f32 %v1289, %v1293
        %1304 = vrot.lane.b32.xlu0 %v1298, 110
        %v1305 = vpop.permute.xlu0 %1304
        %1306 = vrot.lane.b32.xlu0 %v1299, 110
        %v1307 = vpop.permute.xlu0 %1306
        %1308 = vrot.lane.b32.xlu0 %v1300, 110
        %v1309 = vpop.permute.xlu0 %1308
        %v1310 = vsel %vm1194, %v1305, %v1307
        %v1311 = vsel %vm1194, %v1307, %v1309
        %v1315 = vadd.f32 %v1274, %v1310
        %v1316 = vadd.f32 %v1275, %v1311
        %v1317 = vadd.f32 %v1276, %v1309
        %s1318 = sld [smem:[#allocation6 + $0x10]]
        %s1319 = sld [smem:[#allocation6 + $0x90]]
        %v1320 = vstv %s1318
        %v1321 = vmul.f32 %v1320, %v568
        %v1322 = vmul.f32 %v1320, %v564
        %v1323 = vmul.f32 %v1320, %v569
        %v1324 = vstv %s1319
        %v1325 = vmul.f32 %v1324, %v580
        %v1326 = vmul.f32 %v1324, %v576
        %v1327 = vmul.f32 %v1324, %v581
        %v1328 = vadd.f32 %v1321, %v1325
        %v1329 = vadd.f32 %v1322, %v1326
        %v1330 = vadd.f32 %v1323, %v1327
        %1331 = vrot.lane.b32.xlu0 %v1230, 47
        %v1332 = vpop.permute.xlu0 %1331
        %1333 = vrot.lane.b32.xlu0 %v1231, 47
        %v1334 = vpop.permute.xlu0 %1333
        %v1335 = vsel %vm1168, %v1332, %v1334
        %v1339 = vmul.f32 %v1328, %v1332
        %v1340 = vmul.f32 %v1329, %v1335
        %v1341 = vmul.f32 %v1330, %v1334
        %1345 = vrot.lane.b32.xlu0 %v1339, 94
        %v1346 = vpop.permute.xlu0 %1345
        %1347 = vrot.lane.b32.xlu0 %v1340, 94
        %v1348 = vpop.permute.xlu0 %1347
        %1349 = vrot.lane.b32.xlu0 %v1341, 94
        %v1350 = vpop.permute.xlu0 %1349
        %v1351 = vsel %vm1151, %v1346, %v1348
        %v1352 = vsel %vm1151, %v1348, %v1350
        %v1356 = vadd.f32 %v1315, %v1351
        %v1357 = vadd.f32 %v1316, %v1352
        %v1358 = vadd.f32 %v1317, %v1350
        %s1359 = sld [smem:[#allocation6 + $0x17]]
        %s1360 = sld [smem:[#allocation6 + $0x97]]
        %v1361 = vstv %s1359
        %v1362 = vmul.f32 %v1361, %v568
        %v1363 = vmul.f32 %v1361, %v564
        %v1364 = vmul.f32 %v1361, %v569
        %v1365 = vstv %s1360
        %v1366 = vmul.f32 %v1365, %v580
        %v1367 = vmul.f32 %v1365, %v576
        %v1368 = vmul.f32 %v1365, %v581
        %v1369 = vadd.f32 %v1362, %v1366
        %v1370 = vadd.f32 %v1363, %v1367
        %v1371 = vadd.f32 %v1364, %v1368
        %1372 = vrot.lane.b32.xlu0 %v1230, 63
        %v1373 = vpop.permute.xlu0 %1372
        %1374 = vrot.lane.b32.xlu0 %v1231, 63
        %v1375 = vpop.permute.xlu0 %1374
        %v1376 = vsel %vm1125, %v1373, %v1375
        %v1380 = vmul.f32 %v1369, %v1373
        %v1381 = vmul.f32 %v1370, %v1376
        %v1382 = vmul.f32 %v1371, %v1375
        %1386 = vrot.lane.b32.xlu0 %v1380, 78
        %v1387 = vpop.permute.xlu0 %1386
        %1388 = vrot.lane.b32.xlu0 %v1381, 78
        %v1389 = vpop.permute.xlu0 %1388
        %1390 = vrot.lane.b32.xlu0 %v1382, 78
        %v1391 = vpop.permute.xlu0 %1390
        %v1392 = vsel %vm1108, %v1387, %v1389
        %v1393 = vsel %vm1108, %v1389, %v1391
        %v1397 = vadd.f32 %v1356, %v1392
        %v1398 = vadd.f32 %v1357, %v1393
        %v1399 = vadd.f32 %v1358, %v1391
        %s1400 = sld [smem:[#allocation6 + $0x1e]]
        %s1401 = sld [smem:[#allocation6 + $0x9e]]
        %v1402 = vstv %s1400
        %v1403 = vmul.f32 %v1402, %v568
        %v1404 = vmul.f32 %v1402, %v564
        %v1405 = vmul.f32 %v1402, %v569
        %v1406 = vstv %s1401
        %v1407 = vmul.f32 %v1406, %v580
        %v1408 = vmul.f32 %v1406, %v576
        %v1409 = vmul.f32 %v1406, %v581
        %v1410 = vadd.f32 %v1403, %v1407
        %v1411 = vadd.f32 %v1404, %v1408
        %v1412 = vadd.f32 %v1405, %v1409
        %1413 = vrot.lane.b32.xlu0 %v1230, 79
        %v1414 = vpop.permute.xlu0 %1413
        %1415 = vrot.lane.b32.xlu0 %v1231, 79
        %v1416 = vpop.permute.xlu0 %1415
        %v1417 = vsel %vm1082, %v1414, %v1416
        %v1421 = vmul.f32 %v1410, %v1414
        %v1422 = vmul.f32 %v1411, %v1417
        %v1423 = vmul.f32 %v1412, %v1416
        %1427 = vrot.lane.b32.xlu0 %v1421, 62
        %v1428 = vpop.permute.xlu0 %1427
        %1429 = vrot.lane.b32.xlu0 %v1422, 62
        %v1430 = vpop.permute.xlu0 %1429
        %1431 = vrot.lane.b32.xlu0 %v1423, 62
        %v1432 = vpop.permute.xlu0 %1431
        %v1433 = vsel %vm1065, %v1428, %v1430
        %v1434 = vsel %vm1065, %v1430, %v1432
        %v1438 = vadd.f32 %v1397, %v1433
        %v1439 = vadd.f32 %v1398, %v1434
        %v1440 = vadd.f32 %v1399, %v1432
        %s1441 = sld [smem:[#allocation6 + $0x25]]
        %s1442 = sld [smem:[#allocation6 + $0xa5]]
        %v1443 = vstv %s1441
        %v1444 = vmul.f32 %v1443, %v568
        %v1445 = vmul.f32 %v1443, %v564
        %v1446 = vmul.f32 %v1443, %v569
        %v1447 = vstv %s1442
        %v1448 = vmul.f32 %v1447, %v580
        %v1449 = vmul.f32 %v1447, %v576
        %v1450 = vmul.f32 %v1447, %v581
        %v1451 = vadd.f32 %v1444, %v1448
        %v1452 = vadd.f32 %v1445, %v1449
        %v1453 = vadd.f32 %v1446, %v1450
        %1454 = vrot.lane.b32.xlu0 %v1230, 95
        %v1455 = vpop.permute.xlu0 %1454
        %1456 = vrot.lane.b32.xlu0 %v1231, 95
        %v1457 = vpop.permute.xlu0 %1456
        %v1458 = vsel %vm1039, %v1455, %v1457
        %v1462 = vmul.f32 %v1451, %v1455
        %v1463 = vmul.f32 %v1452, %v1458
        %v1464 = vmul.f32 %v1453, %v1457
        %1468 = vrot.lane.b32.xlu0 %v1462, 46
        %v1469 = vpop.permute.xlu0 %1468
        %1470 = vrot.lane.b32.xlu0 %v1463, 46
        %v1471 = vpop.permute.xlu0 %1470
        %1472 = vrot.lane.b32.xlu0 %v1464, 46
        %v1473 = vpop.permute.xlu0 %1472
        %v1474 = vsel %vm1022, %v1469, %v1471
        %v1475 = vsel %vm1022, %v1471, %v1473
        %v1479 = vadd.f32 %v1438, %v1474
        %v1480 = vadd.f32 %v1439, %v1475
        %v1481 = vadd.f32 %v1440, %v1473
        %s1482 = sld [smem:[#allocation6 + $0x2c]]
        %s1483 = sld [smem:[#allocation6 + $0xac]]
        %v1484 = vstv %s1482
        %v1485 = vmul.f32 %v1484, %v568
        %v1486 = vmul.f32 %v1484, %v564
        %v1487 = vmul.f32 %v1484, %v569
        %v1488 = vstv %s1483
        %v1489 = vmul.f32 %v1488, %v580
        %v1490 = vmul.f32 %v1488, %v576
        %v1491 = vmul.f32 %v1488, %v581
        %v1492 = vadd.f32 %v1485, %v1489
        %v1493 = vadd.f32 %v1486, %v1490
        %v1494 = vadd.f32 %v1487, %v1491
        %1495 = vrot.lane.b32.xlu0 %v1230, 111
        %v1496 = vpop.permute.xlu0 %1495
        %1497 = vrot.lane.b32.xlu0 %v1231, 111
        %v1498 = vpop.permute.xlu0 %1497
        %v1499 = vsel %vm996, %v1496, %v1498
        %v1503 = vmul.f32 %v1492, %v1496
        %v1504 = vmul.f32 %v1493, %v1499
        %v1505 = vmul.f32 %v1494, %v1498
        %1509 = vrot.lane.b32.xlu0 %v1503, 30
        %v1510 = vpop.permute.xlu0 %1509
        %1511 = vrot.lane.b32.xlu0 %v1504, 30
        %v1512 = vpop.permute.xlu0 %1511
        %1513 = vrot.lane.b32.xlu0 %v1505, 30
        %v1514 = vpop.permute.xlu0 %1513
        %v1515 = vsel %vm979, %v1510, %v1512
        %v1516 = vsel %vm979, %v1512, %v1514
        %v1520 = vadd.f32 %v1479, %v1515
        %v1521 = vadd.f32 %v1480, %v1516
        %v1522 = vadd.f32 %v1481, %v1514
        %s1523 = sld [smem:[#allocation6 + $0x3]]
        %s1524 = sld [smem:[#allocation6 + $0x83]]
        %v1525 = vstv %s1523
        %v1526 = vmul.f32 %v1525, %v568
        %v1527 = vmul.f32 %v1525, %v564
        %v1528 = vmul.f32 %v1525, %v569
        %v1529 = vstv %s1524
        %v1530 = vmul.f32 %v1529, %v580
        %v1531 = vmul.f32 %v1529, %v576
        %v1532 = vmul.f32 %v1529, %v581
        %v1533 = vadd.f32 %v1526, %v1530
        %v1534 = vadd.f32 %v1527, %v1531
        %v1535 = vadd.f32 %v1528, %v1532
        %1539 = vrot.lane.b32.xlu0 %v1533, 125
        %v1540 = vpop.permute.xlu0 %1539
        %1541 = vrot.lane.b32.xlu0 %v1534, 125
        %v1542 = vpop.permute.xlu0 %1541
        %1543 = vrot.lane.b32.xlu0 %v1535, 125
        %v1544 = vpop.permute.xlu0 %1543
        %vm1545 = vcmask 1022976
        %v1546 = vsel %vm1545, %v1540, %v1542
        %v1547 = vsel %vm1545, %v1542, %v1544
        %v1551 = vadd.f32 %v1520, %v1546
        %v1552 = vadd.f32 %v1521, %v1547
        %v1553 = vadd.f32 %v1522, %v1544
        %s1554 = sld [smem:[#allocation6 + $0xa]]
        %s1555 = sld [smem:[#allocation6 + $0x8a]]
        %v1556 = vstv %s1554
        %v1557 = vmul.f32 %v1556, %v568
        %v1558 = vmul.f32 %v1556, %v564
        %v1559 = vmul.f32 %v1556, %v569
        %v1560 = vstv %s1555
        %v1561 = vmul.f32 %v1560, %v580
        %v1562 = vmul.f32 %v1560, %v576
        %v1563 = vmul.f32 %v1560, %v581
        %v1564 = vadd.f32 %v1557, %v1561
        %v1565 = vadd.f32 %v1558, %v1562
        %v1566 = vadd.f32 %v1559, %v1563
        %1570 = vrot.lane.b32.xlu0 %v1564, 109
        %v1571 = vpop.permute.xlu0 %1570
        %1572 = vrot.lane.b32.xlu0 %v1565, 109
        %v1573 = vpop.permute.xlu0 %1572
        %1574 = vrot.lane.b32.xlu0 %v1566, 109
        %v1575 = vpop.permute.xlu0 %1574
        %v1576 = vsel %vm880, %v1571, %v1573
        %v1577 = vsel %vm880, %v1573, %v1575
        %v1581 = vadd.f32 %v1551, %v1576
        %v1582 = vadd.f32 %v1552, %v1577
        %v1583 = vadd.f32 %v1553, %v1575
        %s1584 = sld [smem:[#allocation6 + $0x11]]
        %s1585 = sld [smem:[#allocation6 + $0x91]]
        %v1586 = vstv %s1584
        %v1587 = vmul.f32 %v1586, %v568
        %v1588 = vmul.f32 %v1586, %v564
        %v1589 = vmul.f32 %v1586, %v569
        %v1590 = vstv %s1585
        %v1591 = vmul.f32 %v1590, %v580
        %v1592 = vmul.f32 %v1590, %v576
        %v1593 = vmul.f32 %v1590, %v581
        %v1594 = vadd.f32 %v1587, %v1591
        %v1595 = vadd.f32 %v1588, %v1592
        %v1596 = vadd.f32 %v1589, %v1593
        %1600 = vrot.lane.b32.xlu0 %v1594, 93
        %v1601 = vpop.permute.xlu0 %1600
        %1602 = vrot.lane.b32.xlu0 %v1595, 93
        %v1603 = vpop.permute.xlu0 %1602
        %1604 = vrot.lane.b32.xlu0 %v1596, 93
        %v1605 = vpop.permute.xlu0 %1604
        %v1606 = vsel %vm837, %v1601, %v1603
        %v1607 = vsel %vm837, %v1603, %v1605
        %v1611 = vadd.f32 %v1581, %v1606
        %v1612 = vadd.f32 %v1582, %v1607
        %v1613 = vadd.f32 %v1583, %v1605
        %s1614 = sld [smem:[#allocation6 + $0x18]]
        %s1615 = sld [smem:[#allocation6 + $0x98]]
        %v1616 = vstv %s1614
        %v1617 = vmul.f32 %v1616, %v568
        %v1618 = vmul.f32 %v1616, %v564
        %v1619 = vmul.f32 %v1616, %v569
        %v1620 = vstv %s1615
        %v1621 = vmul.f32 %v1620, %v580
        %v1622 = vmul.f32 %v1620, %v576
        %v1623 = vmul.f32 %v1620, %v581
        %v1624 = vadd.f32 %v1617, %v1621
        %v1625 = vadd.f32 %v1618, %v1622
        %v1626 = vadd.f32 %v1619, %v1623
        %1630 = vrot.lane.b32.xlu0 %v1624, 77
        %v1631 = vpop.permute.xlu0 %1630
        %1632 = vrot.lane.b32.xlu0 %v1625, 77
        %v1633 = vpop.permute.xlu0 %1632
        %1634 = vrot.lane.b32.xlu0 %v1626, 77
        %v1635 = vpop.permute.xlu0 %1634
        %v1636 = vsel %vm795, %v1631, %v1633
        %v1637 = vsel %vm795, %v1633, %v1635
        %v1641 = vadd.f32 %v1611, %v1636
        %v1642 = vadd.f32 %v1612, %v1637
        %v1643 = vadd.f32 %v1613, %v1635
        %s1644 = sld [smem:[#allocation6 + $0x1f]]
        %s1645 = sld [smem:[#allocation6 + $0x9f]]
        %v1646 = vstv %s1644
        %v1647 = vmul.f32 %v1646, %v568
        %v1648 = vmul.f32 %v1646, %v564
        %v1649 = vmul.f32 %v1646, %v569
        %v1650 = vstv %s1645
        %v1651 = vmul.f32 %v1650, %v580
        %v1652 = vmul.f32 %v1650, %v576
        %v1653 = vmul.f32 %v1650, %v581
        %v1654 = vadd.f32 %v1647, %v1651
        %v1655 = vadd.f32 %v1648, %v1652
        %v1656 = vadd.f32 %v1649, %v1653
        %1660 = vrot.lane.b32.xlu0 %v1654, 61
        %v1661 = vpop.permute.xlu0 %1660
        %1662 = vrot.lane.b32.xlu0 %v1655, 61
        %v1663 = vpop.permute.xlu0 %1662
        %1664 = vrot.lane.b32.xlu0 %v1656, 61
        %v1665 = vpop.permute.xlu0 %1664
        %v1666 = vsel %vm752, %v1661, %v1663
        %v1667 = vsel %vm752, %v1663, %v1665
        %v1671 = vadd.f32 %v1641, %v1666
        %v1672 = vadd.f32 %v1642, %v1667
        %v1673 = vadd.f32 %v1643, %v1665
        %s1674 = sld [smem:[#allocation6 + $0x26]]
        %s1675 = sld [smem:[#allocation6 + $0xa6]]
        %v1676 = vstv %s1674
        %v1677 = vmul.f32 %v1676, %v568
        %v1678 = vmul.f32 %v1676, %v564
        %v1679 = vmul.f32 %v1676, %v569
        %v1680 = vstv %s1675
        %v1681 = vmul.f32 %v1680, %v580
        %v1682 = vmul.f32 %v1680, %v576
        %v1683 = vmul.f32 %v1680, %v581
        %v1684 = vadd.f32 %v1677, %v1681
        %v1685 = vadd.f32 %v1678, %v1682
        %v1686 = vadd.f32 %v1679, %v1683
        %1690 = vrot.lane.b32.xlu0 %v1684, 45
        %v1691 = vpop.permute.xlu0 %1690
        %1692 = vrot.lane.b32.xlu0 %v1685, 45
        %v1693 = vpop.permute.xlu0 %1692
        %1694 = vrot.lane.b32.xlu0 %v1686, 45
        %v1695 = vpop.permute.xlu0 %1694
        %v1696 = vsel %vm709, %v1691, %v1693
        %v1697 = vsel %vm709, %v1693, %v1695
        %v1701 = vadd.f32 %v1671, %v1696
        %v1702 = vadd.f32 %v1672, %v1697
        %v1703 = vadd.f32 %v1673, %v1695
        %s1704 = sld [smem:[#allocation6 + $0x2d]]
        %s1705 = sld [smem:[#allocation6 + $0xad]]
        %v1706 = vstv %s1704
        %v1707 = vmul.f32 %v1706, %v568
        %v1708 = vmul.f32 %v1706, %v564
        %v1709 = vmul.f32 %v1706, %v569
        %v1710 = vstv %s1705
        %v1711 = vmul.f32 %v1710, %v580
        %v1712 = vmul.f32 %v1710, %v576
        %v1713 = vmul.f32 %v1710, %v581
        %v1714 = vadd.f32 %v1707, %v1711
        %v1715 = vadd.f32 %v1708, %v1712
        %v1716 = vadd.f32 %v1709, %v1713
        %1720 = vrot.lane.b32.xlu0 %v1714, 29
        %v1721 = vpop.permute.xlu0 %1720
        %1722 = vrot.lane.b32.xlu0 %v1715, 29
        %v1723 = vpop.permute.xlu0 %1722
        %1724 = vrot.lane.b32.xlu0 %v1716, 29
        %v1725 = vpop.permute.xlu0 %1724
        %v1726 = vsel %vm666, %v1721, %v1723
        %v1727 = vsel %vm666, %v1723, %v1725
        %v1731 = vadd.f32 %v1701, %v1726
        %v1732 = vadd.f32 %v1702, %v1727
        %v1733 = vadd.f32 %v1703, %v1725
        %v1734 = vadd.s32 %v605, 1
        %v1735 = vadd.s32 %v606, 1
        %vm1736 = vcmp.ge.s32.totalorder %v1734, 0
        %vm1737 = vcmp.ge.s32.totalorder %v1735, 0
        %vm1738 = vcmp.lt.s32.totalorder %v1734, 16
        %vm1739 = vcmp.lt.s32.totalorder %v1735, 16
        %vm1740 = vmand %vm1736, %vm1738
        %vm1741 = vmand %vm1737, %vm1739
        %v1742 = vsel %vm1740, 1, 0
        %v1743 = vsel %vm1741, 1, 0
        %v1744 = vcvt.s32.f32 %v1742
        %v1745 = vcvt.s32.f32 %v1743
        %s1746 = sld [smem:[#allocation6 + $0x4]]
        %s1747 = sld [smem:[#allocation6 + $0x84]]
        %v1748 = vstv %s1746
        %v1749 = vmul.f32 %v1748, %v568
        %v1750 = vmul.f32 %v1748, %v564
        %v1751 = vmul.f32 %v1748, %v569
        %v1752 = vstv %s1747
        %v1753 = vmul.f32 %v1752, %v580
        %v1754 = vmul.f32 %v1752, %v576
        %v1755 = vmul.f32 %v1752, %v581
        %v1756 = vadd.f32 %v1749, %v1753
        %v1757 = vadd.f32 %v1750, %v1754
        %v1758 = vadd.f32 %v1751, %v1755
        %1761 = vrot.lane.b32.xlu0 %v1744, 17
        %v1762 = vpop.permute.xlu0 %1761
        %1763 = vrot.lane.b32.xlu0 %v1745, 17
        %v1764 = vpop.permute.xlu0 %1763
        %vm1765 = vcmask 138240
        %v1766 = vsel %vm1765, %v1762, %v1764
        %v1770 = vmul.f32 %v1756, %v1762
        %v1771 = vmul.f32 %v1757, %v1766
        %v1772 = vmul.f32 %v1758, %v1764
        %1776 = vrot.lane.b32.xlu0 %v1770, 124
        %v1777 = vpop.permute.xlu0 %1776
        %1778 = vrot.lane.b32.xlu0 %v1771, 124
        %v1779 = vpop.permute.xlu0 %1778
        %1780 = vrot.lane.b32.xlu0 %v1772, 124
        %v1781 = vpop.permute.xlu0 %1780
        %vm1782 = vcmask 1014784
        %v1783 = vsel %vm1782, %v1777, %v1779
        %v1784 = vsel %vm1782, %v1779, %v1781
        %v1788 = vadd.f32 %v1731, %v1783
        %v1789 = vadd.f32 %v1732, %v1784
        %v1790 = vadd.f32 %v1733, %v1781
        %s1791 = sld [smem:[#allocation6 + $0xb]]
        %s1792 = sld [smem:[#allocation6 + $0x8b]]
        %v1793 = vstv %s1791
        %v1794 = vmul.f32 %v1793, %v568
        %v1795 = vmul.f32 %v1793, %v564
        %v1796 = vmul.f32 %v1793, %v569
        %v1797 = vstv %s1792
        %v1798 = vmul.f32 %v1797, %v580
        %v1799 = vmul.f32 %v1797, %v576
        %v1800 = vmul.f32 %v1797, %v581
        %v1801 = vadd.f32 %v1794, %v1798
        %v1802 = vadd.f32 %v1795, %v1799
        %v1803 = vadd.f32 %v1796, %v1800
        %1804 = vrot.lane.b32.xlu0 %v1744, 33
        %v1805 = vpop.permute.xlu0 %1804
        %1806 = vrot.lane.b32.xlu0 %v1745, 33
        %v1807 = vpop.permute.xlu0 %1806
        %vm1808 = vcmask 269312
        %v1809 = vsel %vm1808, %v1805, %v1807
        %v1813 = vmul.f32 %v1801, %v1805
        %v1814 = vmul.f32 %v1802, %v1809
        %v1815 = vmul.f32 %v1803, %v1807
        %1819 = vrot.lane.b32.xlu0 %v1813, 108
        %v1820 = vpop.permute.xlu0 %1819
        %1821 = vrot.lane.b32.xlu0 %v1814, 108
        %v1822 = vpop.permute.xlu0 %1821
        %1823 = vrot.lane.b32.xlu0 %v1815, 108
        %v1824 = vpop.permute.xlu0 %1823
        %vm1825 = vcmask 883712
        %v1826 = vsel %vm1825, %v1820, %v1822
        %v1827 = vsel %vm1825, %v1822, %v1824
        %v1831 = vadd.f32 %v1788, %v1826
        %v1832 = vadd.f32 %v1789, %v1827
        %v1833 = vadd.f32 %v1790, %v1824
        %s1834 = sld [smem:[#allocation6 + $0x12]]
        %s1835 = sld [smem:[#allocation6 + $0x92]]
        %v1836 = vstv %s1834
        %v1837 = vmul.f32 %v1836, %v568
        %v1838 = vmul.f32 %v1836, %v564
        %v1839 = vmul.f32 %v1836, %v569
        %v1840 = vstv %s1835
        %v1841 = vmul.f32 %v1840, %v580
        %v1842 = vmul.f32 %v1840, %v576
        %v1843 = vmul.f32 %v1840, %v581
        %v1844 = vadd.f32 %v1837, %v1841
        %v1845 = vadd.f32 %v1838, %v1842
        %v1846 = vadd.f32 %v1839, %v1843
        %1847 = vrot.lane.b32.xlu0 %v1744, 49
        %v1848 = vpop.permute.xlu0 %1847
        %1849 = vrot.lane.b32.xlu0 %v1745, 49
        %v1850 = vpop.permute.xlu0 %1849
        %vm1851 = vcmask 400384
        %v1852 = vsel %vm1851, %v1848, %v1850
        %v1856 = vmul.f32 %v1844, %v1848
        %v1857 = vmul.f32 %v1845, %v1852
        %v1858 = vmul.f32 %v1846, %v1850
        %1862 = vrot.lane.b32.xlu0 %v1856, 92
        %v1863 = vpop.permute.xlu0 %1862
        %1864 = vrot.lane.b32.xlu0 %v1857, 92
        %v1865 = vpop.permute.xlu0 %1864
        %1866 = vrot.lane.b32.xlu0 %v1858, 92
        %v1867 = vpop.permute.xlu0 %1866
        %vm1868 = vcmask 752640
        %v1869 = vsel %vm1868, %v1863, %v1865
        %v1870 = vsel %vm1868, %v1865, %v1867
        %v1874 = vadd.f32 %v1831, %v1869
        %v1875 = vadd.f32 %v1832, %v1870
        %v1876 = vadd.f32 %v1833, %v1867
        %s1877 = sld [smem:[#allocation6 + $0x19]]
        %s1878 = sld [smem:[#allocation6 + $0x99]]
        %v1879 = vstv %s1877
        %v1880 = vmul.f32 %v1879, %v568
        %v1881 = vmul.f32 %v1879, %v564
        %v1882 = vmul.f32 %v1879, %v569
        %v1883 = vstv %s1878
        %v1884 = vmul.f32 %v1883, %v580
        %v1885 = vmul.f32 %v1883, %v576
        %v1886 = vmul.f32 %v1883, %v581
        %v1887 = vadd.f32 %v1880, %v1884
        %v1888 = vadd.f32 %v1881, %v1885
        %v1889 = vadd.f32 %v1882, %v1886
        %1890 = vrot.lane.b32.xlu0 %v1744, 65
        %v1891 = vpop.permute.xlu0 %1890
        %1892 = vrot.lane.b32.xlu0 %v1745, 65
        %v1893 = vpop.permute.xlu0 %1892
        %vm1894 = vcmask 531456
        %v1895 = vsel %vm1894, %v1891, %v1893
        %v1899 = vmul.f32 %v1887, %v1891
        %v1900 = vmul.f32 %v1888, %v1895
        %v1901 = vmul.f32 %v1889, %v1893
        %1905 = vrot.lane.b32.xlu0 %v1899, 76
        %v1906 = vpop.permute.xlu0 %1905
        %1907 = vrot.lane.b32.xlu0 %v1900, 76
        %v1908 = vpop.permute.xlu0 %1907
        %1909 = vrot.lane.b32.xlu0 %v1901, 76
        %v1910 = vpop.permute.xlu0 %1909
        %vm1911 = vcmask 621568
        %v1912 = vsel %vm1911, %v1906, %v1908
        %v1913 = vsel %vm1911, %v1908, %v1910
        %v1917 = vadd.f32 %v1874, %v1912
        %v1918 = vadd.f32 %v1875, %v1913
        %v1919 = vadd.f32 %v1876, %v1910
        %s1920 = sld [smem:[#allocation6 + $0x20]]
        %s1921 = sld [smem:[#allocation6 + $0xa0]]
        %v1922 = vstv %s1920
        %v1923 = vmul.f32 %v1922, %v568
        %v1924 = vmul.f32 %v1922, %v564
        %v1925 = vmul.f32 %v1922, %v569
        %v1926 = vstv %s1921
        %v1927 = vmul.f32 %v1926, %v580
        %v1928 = vmul.f32 %v1926, %v576
        %v1929 = vmul.f32 %v1926, %v581
        %v1930 = vadd.f32 %v1923, %v1927
        %v1931 = vadd.f32 %v1924, %v1928
        %v1932 = vadd.f32 %v1925, %v1929
        %1933 = vrot.lane.b32.xlu0 %v1744, 81
        %v1934 = vpop.permute.xlu0 %1933
        %1935 = vrot.lane.b32.xlu0 %v1745, 81
        %v1936 = vpop.permute.xlu0 %1935
        %vm1937 = vcmask 662528
        %v1938 = vsel %vm1937, %v1934, %v1936
        %v1942 = vmul.f32 %v1930, %v1934
        %v1943 = vmul.f32 %v1931, %v1938
        %v1944 = vmul.f32 %v1932, %v1936
        %1948 = vrot.lane.b32.xlu0 %v1942, 60
        %v1949 = vpop.permute.xlu0 %1948
        %1950 = vrot.lane.b32.xlu0 %v1943, 60
        %v1951 = vpop.permute.xlu0 %1950
        %1952 = vrot.lane.b32.xlu0 %v1944, 60
        %v1953 = vpop.permute.xlu0 %1952
        %vm1954 = vcmask 490496
        %v1955 = vsel %vm1954, %v1949, %v1951
        %v1956 = vsel %vm1954, %v1951, %v1953
        %v1960 = vadd.f32 %v1917, %v1955
        %v1961 = vadd.f32 %v1918, %v1956
        %v1962 = vadd.f32 %v1919, %v1953
        %s1963 = sld [smem:[#allocation6 + $0x27]]
        %s1964 = sld [smem:[#allocation6 + $0xa7]]
        %v1965 = vstv %s1963
        %v1966 = vmul.f32 %v1965, %v568
        %v1967 = vmul.f32 %v1965, %v564
        %v1968 = vmul.f32 %v1965, %v569
        %v1969 = vstv %s1964
        %v1970 = vmul.f32 %v1969, %v580
        %v1971 = vmul.f32 %v1969, %v576
        %v1972 = vmul.f32 %v1969, %v581
        %v1973 = vadd.f32 %v1966, %v1970
        %v1974 = vadd.f32 %v1967, %v1971
        %v1975 = vadd.f32 %v1968, %v1972
        %1976 = vrot.lane.b32.xlu0 %v1744, 97
        %v1977 = vpop.permute.xlu0 %1976
        %1978 = vrot.lane.b32.xlu0 %v1745, 97
        %v1979 = vpop.permute.xlu0 %1978
        %vm1980 = vcmask 793600
        %v1981 = vsel %vm1980, %v1977, %v1979
        %v1985 = vmul.f32 %v1973, %v1977
        %v1986 = vmul.f32 %v1974, %v1981
        %v1987 = vmul.f32 %v1975, %v1979
        %1991 = vrot.lane.b32.xlu0 %v1985, 44
        %v1992 = vpop.permute.xlu0 %1991
        %1993 = vrot.lane.b32.xlu0 %v1986, 44
        %v1994 = vpop.permute.xlu0 %1993
        %1995 = vrot.lane.b32.xlu0 %v1987, 44
        %v1996 = vpop.permute.xlu0 %1995
        %vm1997 = vcmask 359424
        %v1998 = vsel %vm1997, %v1992, %v1994
        %v1999 = vsel %vm1997, %v1994, %v1996
        %v2003 = vadd.f32 %v1960, %v1998
        %v2004 = vadd.f32 %v1961, %v1999
        %v2005 = vadd.f32 %v1962, %v1996
        %s2006 = sld [smem:[#allocation6 + $0x2e]]
        %s2007 = sld [smem:[#allocation6 + $0xae]]
        %v2008 = vstv %s2006
        %v2009 = vmul.f32 %v2008, %v568
        %v2010 = vmul.f32 %v2008, %v564
        %v2011 = vmul.f32 %v2008, %v569
        %v2012 = vstv %s2007
        %v2013 = vmul.f32 %v2012, %v580
        %v2014 = vmul.f32 %v2012, %v576
        %v2015 = vmul.f32 %v2012, %v581
        %v2016 = vadd.f32 %v2009, %v2013
        %v2017 = vadd.f32 %v2010, %v2014
        %v2018 = vadd.f32 %v2011, %v2015
        %2019 = vrot.lane.b32.xlu0 %v1744, 113
        %v2020 = vpop.permute.xlu0 %2019
        %2021 = vrot.lane.b32.xlu0 %v1745, 113
        %v2022 = vpop.permute.xlu0 %2021
        %vm2023 = vcmask 924672
        %v2024 = vsel %vm2023, %v2020, %v2022
        %v2028 = vmul.f32 %v2016, %v2020
        %v2029 = vmul.f32 %v2017, %v2024
        %v2030 = vmul.f32 %v2018, %v2022
        %2034 = vrot.lane.b32.xlu0 %v2028, 28
        %v2035 = vpop.permute.xlu0 %2034
        %2036 = vrot.lane.b32.xlu0 %v2029, 28
        %v2037 = vpop.permute.xlu0 %2036
        %2038 = vrot.lane.b32.xlu0 %v2030, 28
        %v2039 = vpop.permute.xlu0 %2038
        %vm2040 = vcmask 228352
        %v2041 = vsel %vm2040, %v2035, %v2037
        %v2042 = vsel %vm2040, %v2037, %v2039
        %v2046 = vadd.f32 %v2003, %v2041
        %v2047 = vadd.f32 %v2004, %v2042
        %v2048 = vadd.f32 %v2005, %v2039
        %v2049 = vadd.s32 %v605, 2
        %v2050 = vadd.s32 %v606, 2
        %vm2051 = vcmp.ge.s32.totalorder %v2049, 0
        %vm2052 = vcmp.ge.s32.totalorder %v2050, 0
        %vm2053 = vcmp.lt.s32.totalorder %v2049, 16
        %vm2054 = vcmp.lt.s32.totalorder %v2050, 16
        %vm2055 = vmand %vm2051, %vm2053
        %vm2056 = vmand %vm2052, %vm2054
        %v2057 = vsel %vm2055, 1, 0
        %v2058 = vsel %vm2056, 1, 0
        %v2059 = vcvt.s32.f32 %v2057
        %v2060 = vcvt.s32.f32 %v2058
        %s2061 = sld [smem:[#allocation6 + $0x5]]
        %s2062 = sld [smem:[#allocation6 + $0x85]]
        %v2063 = vstv %s2061
        %v2064 = vmul.f32 %v2063, %v568
        %v2065 = vmul.f32 %v2063, %v564
        %v2066 = vmul.f32 %v2063, %v569
        %v2067 = vstv %s2062
        %v2068 = vmul.f32 %v2067, %v580
        %v2069 = vmul.f32 %v2067, %v576
        %v2070 = vmul.f32 %v2067, %v581
        %v2071 = vadd.f32 %v2064, %v2068
        %v2072 = vadd.f32 %v2065, %v2069
        %v2073 = vadd.f32 %v2066, %v2070
        %2076 = vrot.lane.b32.xlu0 %v2059, 18
        %v2077 = vpop.permute.xlu0 %2076
        %2078 = vrot.lane.b32.xlu0 %v2060, 18
        %v2079 = vpop.permute.xlu0 %2078
        %vm2080 = vcmask 146432
        %v2081 = vsel %vm2080, %v2077, %v2079
        %v2085 = vmul.f32 %v2071, %v2077
        %v2086 = vmul.f32 %v2072, %v2081
        %v2087 = vmul.f32 %v2073, %v2079
        %2091 = vrot.lane.b32.xlu0 %v2085, 123
        %v2092 = vpop.permute.xlu0 %2091
        %2093 = vrot.lane.b32.xlu0 %v2086, 123
        %v2094 = vpop.permute.xlu0 %2093
        %2095 = vrot.lane.b32.xlu0 %v2087, 123
        %v2096 = vpop.permute.xlu0 %2095
        %vm2097 = vcmask 1006592
        %v2098 = vsel %vm2097, %v2092, %v2094
        %v2099 = vsel %vm2097, %v2094, %v2096
        %v2103 = vadd.f32 %v2046, %v2098
        %v2104 = vadd.f32 %v2047, %v2099
        %v2105 = vadd.f32 %v2048, %v2096
        %s2106 = sld [smem:[#allocation6 + $0xc]]
        %s2107 = sld [smem:[#allocation6 + $0x8c]]
        %v2108 = vstv %s2106
        %v2109 = vmul.f32 %v2108, %v568
        %v2110 = vmul.f32 %v2108, %v564
        %v2111 = vmul.f32 %v2108, %v569
        %v2112 = vstv %s2107
        %v2113 = vmul.f32 %v2112, %v580
        %v2114 = vmul.f32 %v2112, %v576
        %v2115 = vmul.f32 %v2112, %v581
        %v2116 = vadd.f32 %v2109, %v2113
        %v2117 = vadd.f32 %v2110, %v2114
        %v2118 = vadd.f32 %v2111, %v2115
        %2119 = vrot.lane.b32.xlu0 %v2059, 34
        %v2120 = vpop.permute.xlu0 %2119
        %2121 = vrot.lane.b32.xlu0 %v2060, 34
        %v2122 = vpop.permute.xlu0 %2121
        %vm2123 = vcmask 277504
        %v2124 = vsel %vm2123, %v2120, %v2122
        %v2128 = vmul.f32 %v2116, %v2120
        %v2129 = vmul.f32 %v2117, %v2124
        %v2130 = vmul.f32 %v2118, %v2122
        %2134 = vrot.lane.b32.xlu0 %v2128, 107
        %v2135 = vpop.permute.xlu0 %2134
        %2136 = vrot.lane.b32.xlu0 %v2129, 107
        %v2137 = vpop.permute.xlu0 %2136
        %2138 = vrot.lane.b32.xlu0 %v2130, 107
        %v2139 = vpop.permute.xlu0 %2138
        %vm2140 = vcmask 875520
        %v2141 = vsel %vm2140, %v2135, %v2137
        %v2142 = vsel %vm2140, %v2137, %v2139
        %v2146 = vadd.f32 %v2103, %v2141
        %v2147 = vadd.f32 %v2104, %v2142
        %v2148 = vadd.f32 %v2105, %v2139
        %s2149 = sld [smem:[#allocation6 + $0x13]]
        %s2150 = sld [smem:[#allocation6 + $0x93]]
        %v2151 = vstv %s2149
        %v2152 = vmul.f32 %v2151, %v568
        %v2153 = vmul.f32 %v2151, %v564
        %v2154 = vmul.f32 %v2151, %v569
        %v2155 = vstv %s2150
        %v2156 = vmul.f32 %v2155, %v580
        %v2157 = vmul.f32 %v2155, %v576
        %v2158 = vmul.f32 %v2155, %v581
        %v2159 = vadd.f32 %v2152, %v2156
        %v2160 = vadd.f32 %v2153, %v2157
        %v2161 = vadd.f32 %v2154, %v2158
        %2162 = vrot.lane.b32.xlu0 %v2059, 50
        %v2163 = vpop.permute.xlu0 %2162
        %2164 = vrot.lane.b32.xlu0 %v2060, 50
        %v2165 = vpop.permute.xlu0 %2164
        %vm2166 = vcmask 408576
        %v2167 = vsel %vm2166, %v2163, %v2165
        %v2171 = vmul.f32 %v2159, %v2163
        %v2172 = vmul.f32 %v2160, %v2167
        %v2173 = vmul.f32 %v2161, %v2165
        %2177 = vrot.lane.b32.xlu0 %v2171, 91
        %v2178 = vpop.permute.xlu0 %2177
        %2179 = vrot.lane.b32.xlu0 %v2172, 91
        %v2180 = vpop.permute.xlu0 %2179
        %2181 = vrot.lane.b32.xlu0 %v2173, 91
        %v2182 = vpop.permute.xlu0 %2181
        %vm2183 = vcmask 744448
        %v2184 = vsel %vm2183, %v2178, %v2180
        %v2185 = vsel %vm2183, %v2180, %v2182
        %v2189 = vadd.f32 %v2146, %v2184
        %v2190 = vadd.f32 %v2147, %v2185
        %v2191 = vadd.f32 %v2148, %v2182
        %s2192 = sld [smem:[#allocation6 + $0x1a]]
        %s2193 = sld [smem:[#allocation6 + $0x9a]]
        %v2194 = vstv %s2192
        %v2195 = vmul.f32 %v2194, %v568
        %v2196 = vmul.f32 %v2194, %v564
        %v2197 = vmul.f32 %v2194, %v569
        %v2198 = vstv %s2193
        %v2199 = vmul.f32 %v2198, %v580
        %v2200 = vmul.f32 %v2198, %v576
        %v2201 = vmul.f32 %v2198, %v581
        %v2202 = vadd.f32 %v2195, %v2199
        %v2203 = vadd.f32 %v2196, %v2200
        %v2204 = vadd.f32 %v2197, %v2201
        %2205 = vrot.lane.b32.xlu0 %v2059, 66
        %v2206 = vpop.permute.xlu0 %2205
        %2207 = vrot.lane.b32.xlu0 %v2060, 66
        %v2208 = vpop.permute.xlu0 %2207
        %vm2209 = vcmask 539648
        %v2210 = vsel %vm2209, %v2206, %v2208
        %v2214 = vmul.f32 %v2202, %v2206
        %v2215 = vmul.f32 %v2203, %v2210
        %v2216 = vmul.f32 %v2204, %v2208
        %2220 = vrot.lane.b32.xlu0 %v2214, 75
        %v2221 = vpop.permute.xlu0 %2220
        %2222 = vrot.lane.b32.xlu0 %v2215, 75
        %v2223 = vpop.permute.xlu0 %2222
        %2224 = vrot.lane.b32.xlu0 %v2216, 75
        %v2225 = vpop.permute.xlu0 %2224
        %vm2226 = vcmask 613376
        %v2227 = vsel %vm2226, %v2221, %v2223
        %v2228 = vsel %vm2226, %v2223, %v2225
        %v2232 = vadd.f32 %v2189, %v2227
        %v2233 = vadd.f32 %v2190, %v2228
        %v2234 = vadd.f32 %v2191, %v2225
        %s2235 = sld [smem:[#allocation6 + $0x21]]
        %s2236 = sld [smem:[#allocation6 + $0xa1]]
        %v2237 = vstv %s2235
        %v2238 = vmul.f32 %v2237, %v568
        %v2239 = vmul.f32 %v2237, %v564
        %v2240 = vmul.f32 %v2237, %v569
        %v2241 = vstv %s2236
        %v2242 = vmul.f32 %v2241, %v580
        %v2243 = vmul.f32 %v2241, %v576
        %v2244 = vmul.f32 %v2241, %v581
        %v2245 = vadd.f32 %v2238, %v2242
        %v2246 = vadd.f32 %v2239, %v2243
        %v2247 = vadd.f32 %v2240, %v2244
        %2248 = vrot.lane.b32.xlu0 %v2059, 82
        %v2249 = vpop.permute.xlu0 %2248
        %2250 = vrot.lane.b32.xlu0 %v2060, 82
        %v2251 = vpop.permute.xlu0 %2250
        %vm2252 = vcmask 670720
        %v2253 = vsel %vm2252, %v2249, %v2251
        %v2257 = vmul.f32 %v2245, %v2249
        %v2258 = vmul.f32 %v2246, %v2253
        %v2259 = vmul.f32 %v2247, %v2251
        %2263 = vrot.lane.b32.xlu0 %v2257, 59
        %v2264 = vpop.permute.xlu0 %2263
        %2265 = vrot.lane.b32.xlu0 %v2258, 59
        %v2266 = vpop.permute.xlu0 %2265
        %2267 = vrot.lane.b32.xlu0 %v2259, 59
        %v2268 = vpop.permute.xlu0 %2267
        %vm2269 = vcmask 482304
        %v2270 = vsel %vm2269, %v2264, %v2266
        %v2271 = vsel %vm2269, %v2266, %v2268
        %v2275 = vadd.f32 %v2232, %v2270
        %v2276 = vadd.f32 %v2233, %v2271
        %v2277 = vadd.f32 %v2234, %v2268
        %s2278 = sld [smem:[#allocation6 + $0x28]]
        %s2279 = sld [smem:[#allocation6 + $0xa8]]
        %v2280 = vstv %s2278
        %v2281 = vmul.f32 %v2280, %v568
        %v2282 = vmul.f32 %v2280, %v564
        %v2283 = vmul.f32 %v2280, %v569
        %v2284 = vstv %s2279
        %v2285 = vmul.f32 %v2284, %v580
        %v2286 = vmul.f32 %v2284, %v576
        %v2287 = vmul.f32 %v2284, %v581
        %v2288 = vadd.f32 %v2281, %v2285
        %v2289 = vadd.f32 %v2282, %v2286
        %v2290 = vadd.f32 %v2283, %v2287
        %2291 = vrot.lane.b32.xlu0 %v2059, 98
        %v2292 = vpop.permute.xlu0 %2291
        %2293 = vrot.lane.b32.xlu0 %v2060, 98
        %v2294 = vpop.permute.xlu0 %2293
        %vm2295 = vcmask 801792
        %v2296 = vsel %vm2295, %v2292, %v2294
        %v2300 = vmul.f32 %v2288, %v2292
        %v2301 = vmul.f32 %v2289, %v2296
        %v2302 = vmul.f32 %v2290, %v2294
        %2306 = vrot.lane.b32.xlu0 %v2300, 43
        %v2307 = vpop.permute.xlu0 %2306
        %2308 = vrot.lane.b32.xlu0 %v2301, 43
        %v2309 = vpop.permute.xlu0 %2308
        %2310 = vrot.lane.b32.xlu0 %v2302, 43
        %v2311 = vpop.permute.xlu0 %2310
        %vm2312 = vcmask 351232
        %v2313 = vsel %vm2312, %v2307, %v2309
        %v2314 = vsel %vm2312, %v2309, %v2311
        %v2318 = vadd.f32 %v2275, %v2313
        %v2319 = vadd.f32 %v2276, %v2314
        %v2320 = vadd.f32 %v2277, %v2311
        %s2321 = sld [smem:[#allocation6 + $0x2f]]
        %s2322 = sld [smem:[#allocation6 + $0xaf]]
        %v2323 = vstv %s2321
        %v2324 = vmul.f32 %v2323, %v568
        %v2325 = vmul.f32 %v2323, %v564
        %v2326 = vmul.f32 %v2323, %v569
        %v2327 = vstv %s2322
        %v2328 = vmul.f32 %v2327, %v580
        %v2329 = vmul.f32 %v2327, %v576
        %v2330 = vmul.f32 %v2327, %v581
        %v2331 = vadd.f32 %v2324, %v2328
        %v2332 = vadd.f32 %v2325, %v2329
        %v2333 = vadd.f32 %v2326, %v2330
        %2334 = vrot.lane.b32.xlu0 %v2059, 114
        %v2335 = vpop.permute.xlu0 %2334
        %2336 = vrot.lane.b32.xlu0 %v2060, 114
        %v2337 = vpop.permute.xlu0 %2336
        %vm2338 = vcmask 932864
        %v2339 = vsel %vm2338, %v2335, %v2337
        %v2343 = vmul.f32 %v2331, %v2335
        %v2344 = vmul.f32 %v2332, %v2339
        %v2345 = vmul.f32 %v2333, %v2337
        %2349 = vrot.lane.b32.xlu0 %v2343, 27
        %v2350 = vpop.permute.xlu0 %2349
        %2351 = vrot.lane.b32.xlu0 %v2344, 27
        %v2352 = vpop.permute.xlu0 %2351
        %2353 = vrot.lane.b32.xlu0 %v2345, 27
        %v2354 = vpop.permute.xlu0 %2353
        %vm2355 = vcmask 220160
        %v2356 = vsel %vm2355, %v2350, %v2352
        %v2357 = vsel %vm2355, %v2352, %v2354
        %v2361 = vadd.f32 %v2318, %v2356
        %v2362 = vadd.f32 %v2319, %v2357
        %v2363 = vadd.f32 %v2320, %v2354
        %v2364 = vadd.s32 %v605, 3
        %v2365 = vadd.s32 %v606, 3
        %vm2366 = vcmp.ge.s32.totalorder %v2364, 0
        %vm2367 = vcmp.ge.s32.totalorder %v2365, 0
        %vm2368 = vcmp.lt.s32.totalorder %v2364, 16
        %vm2369 = vcmp.lt.s32.totalorder %v2365, 16
        %vm2370 = vmand %vm2366, %vm2368
        %vm2371 = vmand %vm2367, %vm2369
        %v2372 = vsel %vm2370, 1, 0
        %v2373 = vsel %vm2371, 1, 0
        %v2374 = vcvt.s32.f32 %v2372
        %v2375 = vcvt.s32.f32 %v2373
        %s2376 = sld [smem:[#allocation6 + $0x6]]
        %s2377 = sld [smem:[#allocation6 + $0x86]]
        %v2378 = vstv %s2376
        %v2379 = vmul.f32 %v2378, %v568
        %v2380 = vmul.f32 %v2378, %v564
        %v2381 = vmul.f32 %v2378, %v569
        %v2382 = vstv %s2377
        %v2383 = vmul.f32 %v2382, %v580
        %v2384 = vmul.f32 %v2382, %v576
        %v2385 = vmul.f32 %v2382, %v581
        %v2386 = vadd.f32 %v2379, %v2383
        %v2387 = vadd.f32 %v2380, %v2384
        %v2388 = vadd.f32 %v2381, %v2385
        %2391 = vrot.lane.b32.xlu0 %v2374, 19
        %v2392 = vpop.permute.xlu0 %2391
        %2393 = vrot.lane.b32.xlu0 %v2375, 19
        %v2394 = vpop.permute.xlu0 %2393
        %vm2395 = vcmask 154624
        %v2396 = vsel %vm2395, %v2392, %v2394
        %v2400 = vmul.f32 %v2386, %v2392
        %v2401 = vmul.f32 %v2387, %v2396
        %v2402 = vmul.f32 %v2388, %v2394
        %2406 = vrot.lane.b32.xlu0 %v2400, 122
        %v2407 = vpop.permute.xlu0 %2406
        %2408 = vrot.lane.b32.xlu0 %v2401, 122
        %v2409 = vpop.permute.xlu0 %2408
        %2410 = vrot.lane.b32.xlu0 %v2402, 122
        %v2411 = vpop.permute.xlu0 %2410
        %vm2412 = vcmask 998400
        %v2413 = vsel %vm2412, %v2407, %v2409
        %v2414 = vsel %vm2412, %v2409, %v2411
        %v2418 = vadd.f32 %v2361, %v2413
        %v2419 = vadd.f32 %v2362, %v2414
        %v2420 = vadd.f32 %v2363, %v2411
        %s2421 = sld [smem:[#allocation6 + $0xd]]
        %s2422 = sld [smem:[#allocation6 + $0x8d]]
        %v2423 = vstv %s2421
        %v2424 = vmul.f32 %v2423, %v568
        %v2425 = vmul.f32 %v2423, %v564
        %v2426 = vmul.f32 %v2423, %v569
        %v2427 = vstv %s2422
        %v2428 = vmul.f32 %v2427, %v580
        %v2429 = vmul.f32 %v2427, %v576
        %v2430 = vmul.f32 %v2427, %v581
        %v2431 = vadd.f32 %v2424, %v2428
        %v2432 = vadd.f32 %v2425, %v2429
        %v2433 = vadd.f32 %v2426, %v2430
        %2434 = vrot.lane.b32.xlu0 %v2374, 35
        %v2435 = vpop.permute.xlu0 %2434
        %2436 = vrot.lane.b32.xlu0 %v2375, 35
        %v2437 = vpop.permute.xlu0 %2436
        %vm2438 = vcmask 285696
        %v2439 = vsel %vm2438, %v2435, %v2437
        %v2443 = vmul.f32 %v2431, %v2435
        %v2444 = vmul.f32 %v2432, %v2439
        %v2445 = vmul.f32 %v2433, %v2437
        %2449 = vrot.lane.b32.xlu0 %v2443, 106
        %v2450 = vpop.permute.xlu0 %2449
        %2451 = vrot.lane.b32.xlu0 %v2444, 106
        %v2452 = vpop.permute.xlu0 %2451
        %2453 = vrot.lane.b32.xlu0 %v2445, 106
        %v2454 = vpop.permute.xlu0 %2453
        %vm2455 = vcmask 867328
        %v2456 = vsel %vm2455, %v2450, %v2452
        %v2457 = vsel %vm2455, %v2452, %v2454
        %v2461 = vadd.f32 %v2418, %v2456
        %v2462 = vadd.f32 %v2419, %v2457
        %v2463 = vadd.f32 %v2420, %v2454
        %s2464 = sld [smem:[#allocation6 + $0x14]]
        %s2465 = sld [smem:[#allocation6 + $0x94]]
        %v2466 = vstv %s2464
        %v2467 = vmul.f32 %v2466, %v568
        %v2468 = vmul.f32 %v2466, %v564
        %v2469 = vmul.f32 %v2466, %v569
        %v2470 = vstv %s2465
        %v2471 = vmul.f32 %v2470, %v580
        %v2472 = vmul.f32 %v2470, %v576
        %v2473 = vmul.f32 %v2470, %v581
        %v2474 = vadd.f32 %v2467, %v2471
        %v2475 = vadd.f32 %v2468, %v2472
        %v2476 = vadd.f32 %v2469, %v2473
        %2477 = vrot.lane.b32.xlu0 %v2374, 51
        %v2478 = vpop.permute.xlu0 %2477
        %2479 = vrot.lane.b32.xlu0 %v2375, 51
        %v2480 = vpop.permute.xlu0 %2479
        %vm2481 = vcmask 416768
        %v2482 = vsel %vm2481, %v2478, %v2480
        %v2486 = vmul.f32 %v2474, %v2478
        %v2487 = vmul.f32 %v2475, %v2482
        %v2488 = vmul.f32 %v2476, %v2480
        %2492 = vrot.lane.b32.xlu0 %v2486, 90
        %v2493 = vpop.permute.xlu0 %2492
        %2494 = vrot.lane.b32.xlu0 %v2487, 90
        %v2495 = vpop.permute.xlu0 %2494
        %2496 = vrot.lane.b32.xlu0 %v2488, 90
        %v2497 = vpop.permute.xlu0 %2496
        %vm2498 = vcmask 736256
        %v2499 = vsel %vm2498, %v2493, %v2495
        %v2500 = vsel %vm2498, %v2495, %v2497
        %v2504 = vadd.f32 %v2461, %v2499
        %v2505 = vadd.f32 %v2462, %v2500
        %v2506 = vadd.f32 %v2463, %v2497
        %s2507 = sld [smem:[#allocation6 + $0x1b]]
        %s2508 = sld [smem:[#allocation6 + $0x9b]]
        %v2509 = vstv %s2507
        %v2510 = vmul.f32 %v2509, %v568
        %v2511 = vmul.f32 %v2509, %v564
        %v2512 = vmul.f32 %v2509, %v569
        %v2513 = vstv %s2508
        %v2514 = vmul.f32 %v2513, %v580
        %v2515 = vmul.f32 %v2513, %v576
        %v2516 = vmul.f32 %v2513, %v581
        %v2517 = vadd.f32 %v2510, %v2514
        %v2518 = vadd.f32 %v2511, %v2515
        %v2519 = vadd.f32 %v2512, %v2516
        %2520 = vrot.lane.b32.xlu0 %v2374, 67
        %v2521 = vpop.permute.xlu0 %2520
        %2522 = vrot.lane.b32.xlu0 %v2375, 67
        %v2523 = vpop.permute.xlu0 %2522
        %vm2524 = vcmask 547840
        %v2525 = vsel %vm2524, %v2521, %v2523
        %v2529 = vmul.f32 %v2517, %v2521
        %v2530 = vmul.f32 %v2518, %v2525
        %v2531 = vmul.f32 %v2519, %v2523
        %2535 = vrot.lane.b32.xlu0 %v2529, 74
        %v2536 = vpop.permute.xlu0 %2535
        %2537 = vrot.lane.b32.xlu0 %v2530, 74
        %v2538 = vpop.permute.xlu0 %2537
        %2539 = vrot.lane.b32.xlu0 %v2531, 74
        %v2540 = vpop.permute.xlu0 %2539
        %vm2541 = vcmask 605184
        %v2542 = vsel %vm2541, %v2536, %v2538
        %v2543 = vsel %vm2541, %v2538, %v2540
        %v2547 = vadd.f32 %v2504, %v2542
        %v2548 = vadd.f32 %v2505, %v2543
        %v2549 = vadd.f32 %v2506, %v2540
        %s2550 = sld [smem:[#allocation6 + $0x22]]
        %s2551 = sld [smem:[#allocation6 + $0xa2]]
        %v2552 = vstv %s2550
        %v2553 = vmul.f32 %v2552, %v568
        %v2554 = vmul.f32 %v2552, %v564
        %v2555 = vmul.f32 %v2552, %v569
        %v2556 = vstv %s2551
        %v2557 = vmul.f32 %v2556, %v580
        %v2558 = vmul.f32 %v2556, %v576
        %v2559 = vmul.f32 %v2556, %v581
        %v2560 = vadd.f32 %v2553, %v2557
        %v2561 = vadd.f32 %v2554, %v2558
        %v2562 = vadd.f32 %v2555, %v2559
        %2563 = vrot.lane.b32.xlu0 %v2374, 83
        %v2564 = vpop.permute.xlu0 %2563
        %2565 = vrot.lane.b32.xlu0 %v2375, 83
        %v2566 = vpop.permute.xlu0 %2565
        %vm2567 = vcmask 678912
        %v2568 = vsel %vm2567, %v2564, %v2566
        %v2572 = vmul.f32 %v2560, %v2564
        %v2573 = vmul.f32 %v2561, %v2568
        %v2574 = vmul.f32 %v2562, %v2566
        %2578 = vrot.lane.b32.xlu0 %v2572, 58
        %v2579 = vpop.permute.xlu0 %2578
        %2580 = vrot.lane.b32.xlu0 %v2573, 58
        %v2581 = vpop.permute.xlu0 %2580
        %2582 = vrot.lane.b32.xlu0 %v2574, 58
        %v2583 = vpop.permute.xlu0 %2582
        %vm2584 = vcmask 474112
        %v2585 = vsel %vm2584, %v2579, %v2581
        %v2586 = vsel %vm2584, %v2581, %v2583
        %v2590 = vadd.f32 %v2547, %v2585
        %v2591 = vadd.f32 %v2548, %v2586
        %v2592 = vadd.f32 %v2549, %v2583
        %s2593 = sld [smem:[#allocation6 + $0x29]]
        %s2594 = sld [smem:[#allocation6 + $0xa9]]
        %v2595 = vstv %s2593
        %v2596 = vmul.f32 %v2595, %v568
        %v2597 = vmul.f32 %v2595, %v564
        %v2598 = vmul.f32 %v2595, %v569
        %v2599 = vstv %s2594
        %v2600 = vmul.f32 %v2599, %v580
        %v2601 = vmul.f32 %v2599, %v576
        %v2602 = vmul.f32 %v2599, %v581
        %v2603 = vadd.f32 %v2596, %v2600
        %v2604 = vadd.f32 %v2597, %v2601
        %v2605 = vadd.f32 %v2598, %v2602
        %2606 = vrot.lane.b32.xlu0 %v2374, 99
        %v2607 = vpop.permute.xlu0 %2606
        %2608 = vrot.lane.b32.xlu0 %v2375, 99
        %v2609 = vpop.permute.xlu0 %2608
        %vm2610 = vcmask 809984
        %v2611 = vsel %vm2610, %v2607, %v2609
        %v2615 = vmul.f32 %v2603, %v2607
        %v2616 = vmul.f32 %v2604, %v2611
        %v2617 = vmul.f32 %v2605, %v2609
        %2621 = vrot.lane.b32.xlu0 %v2615, 42
        %v2622 = vpop.permute.xlu0 %2621
        %2623 = vrot.lane.b32.xlu0 %v2616, 42
        %v2624 = vpop.permute.xlu0 %2623
        %2625 = vrot.lane.b32.xlu0 %v2617, 42
        %v2626 = vpop.permute.xlu0 %2625
        %vm2627 = vcmask 343040
        %v2628 = vsel %vm2627, %v2622, %v2624
        %v2629 = vsel %vm2627, %v2624, %v2626
        %v2633 = vadd.f32 %v2590, %v2628
        %v2634 = vadd.f32 %v2591, %v2629
        %v2635 = vadd.f32 %v2592, %v2626
        %s2636 = sld [smem:[#allocation6 + $0x30]]
        %s2637 = sld [smem:[#allocation6 + $0xb0]]
        %v2638 = vstv %s2636
        %v2639 = vmul.f32 %v2638, %v568
        %v2640 = vmul.f32 %v2638, %v564
        %v2641 = vmul.f32 %v2638, %v569
        %v2642 = vstv %s2637
        %v2643 = vmul.f32 %v2642, %v580
        %v2644 = vmul.f32 %v2642, %v576
        %v2645 = vmul.f32 %v2642, %v581
        %v2646 = vadd.f32 %v2639, %v2643
        %v2647 = vadd.f32 %v2640, %v2644
        %v2648 = vadd.f32 %v2641, %v2645
        %2649 = vrot.lane.b32.xlu0 %v2374, 115
        %v2650 = vpop.permute.xlu0 %2649
        %2651 = vrot.lane.b32.xlu0 %v2375, 115
        %v2652 = vpop.permute.xlu0 %2651
        %vm2653 = vcmask 941056
        %v2654 = vsel %vm2653, %v2650, %v2652
        %v2658 = vmul.f32 %v2646, %v2650
        %v2659 = vmul.f32 %v2647, %v2654
        %v2660 = vmul.f32 %v2648, %v2652
        %2664 = vrot.lane.b32.xlu0 %v2658, 26
        %v2665 = vpop.permute.xlu0 %2664
        %2666 = vrot.lane.b32.xlu0 %v2659, 26
        %v2667 = vpop.permute.xlu0 %2666
        %2668 = vrot.lane.b32.xlu0 %v2660, 26
        %v2669 = vpop.permute.xlu0 %2668
        %vm2670 = vcmask 211968
        %v2671 = vsel %vm2670, %v2665, %v2667
        %v2672 = vsel %vm2670, %v2667, %v2669
        %v2676 = vadd.f32 %v2633, %v2671
        %v2677 = vadd.f32 %v2634, %v2672
        %v2678 = vadd.f32 %v2635, %v2669
        %v2679 = vxor.u32 %v2676, 2147483648
        %v2680 = vxor.u32 %v2677, 2147483648
        %v2681 = vxor.u32 %v2678, 2147483648
        %v2682 = vmul.f32 %v2679, 1.442695
        %v2683 = vpow.pop %v2682
        %v2684 = vmul.f32 %v2680, 1.442695
        %v2685 = vpow.pop %v2684
        %v2686 = vmul.f32 %v2681, 1.442695
        %v2687 = vpow.pop %v2686
        %v2688 = vadd.f32 %v2683, 1.0
        %v2689 = vadd.f32 %v2685, 1.0
        %v2690 = vadd.f32 %v2687, 1.0
        %v2691 = vrcp.pop %v2688
        %v2692 = vmul.f32 1.0, %v2691
        %v2693 = vrcp.pop %v2689
        %v2694 = vmul.f32 1.0, %v2693
        %v2695 = vrcp.pop %v2690
        %v2696 = vmul.f32 1.0, %v2695
        %v2697 = vlaneseq
        %v2698 = vshrl.u32 %v2697, 7
        %v2699 = vsub.s32 0, %v2698
        %v2700 = vrot.slane %v2692, %v2699
        %v2701 = vlaneseq
        %v2702 = vshrl.u32 %v2701, 7
        %v2703 = vsub.s32 0, %v2702
        %v2704 = vrot.slane %v2694, %v2703
        %v2705 = vlaneseq
        %v2706 = vshrl.u32 %v2705, 7
        %v2707 = vsub.s32 0, %v2706
        %v2708 = vrot.slane %v2696, %v2707
        %2712 = vrot.lane.b32.xlu0 %v2700, 115
        %v2713 = vpop.permute.xlu0 %2712
        %2714 = vrot.lane.b32.xlu0 %v2704, 115
        %v2715 = vpop.permute.xlu0 %2714
        %2716 = vrot.lane.b32.xlu0 %v2708, 115
        %v2717 = vpop.permute.xlu0 %2716
        %v2718 = vsel %vm2653, %v2713, %v2715
        %v2719 = vsel %vm2653, %v2715, %v2717
        %v2722 = vmul.f32 %v511, %v2718
        %v2723 = vmul.f32 %v512, %v2719
        %v2724 = vmul.f32 %v513, %v2718
        %v2725 = vmul.f32 %v514, %v2719
        %v2726 = vmul.f32 %v515, %v2718
        %v2727 = vmul.f32 %v516, %v2719
        %v2728 = vmul.f32 %v517, %v2718
        %v2729 = vmul.f32 %v518, %v2719
        %2730 = vst [vmem:[%s229] sm:$0xff] %v2722
        %2731 = vst [vmem:[%s229 + $0x8] sm:$0xff] %v2723
        %2732 = vst [vmem:[%s229 + $0x10] sm:$0xff] %v2724
        %2733 = vst [vmem:[%s229 + $0x18] sm:$0xff] %v2725
        %2734 = vst [vmem:[%s229 + $0x20] sm:$0xff] %v2726
        %2735 = vst [vmem:[%s229 + $0x28] sm:$0xff] %v2727
        %2736 = vst [vmem:[%s229 + $0x30] sm:$0xff] %v2728
        %2737 = vst [vmem:[%s229 + $0x38] sm:$0xff] %v2729
        %s2738 = sand.u32 %s119, 1
        %s2739 = scalar_lea.sflag [#allocation4], %s2738
        %s2740 = sand.u32 %s119, 1
        %s2741 = smul.addr %s2740, 64
        %s2742 = scalar_lea.vmem [#allocation7], %s2741
        // Predicated region
        $region45: #{tpu_custom_call.1} parent=35 // pred_check
          %p2743 = pneg %p129
        $region46: #{tpu_custom_call.1} parent=35 // pred_check_branch
          %2745 = sbr.rel (%p2743) target = $region48
        $region47: #{tpu_custom_call.1} parent=35 // pred_region
          %s2747 = ssub.s32 1024, 1024
          %2748 = vsyncadd %s2739, %s2747
          %s2749 = smul.addr %s22, 8
          %s2750 = smul.addr %s2749, 128
          %s2751 = scalar_lea.hbm %s4, %s2750
          %s2752 = sshll.u32 %s2742, 4
          %s2753 = int_to_ptr.vmem [resolvable:$true] %s2752
          %2758 = dma.vmem_to_hbm [thread:$0]  %s2753, 1024, %s2751, %s2739, 256, 256, 16
        $region48: #{tpu_custom_call.1} parent=35 // pred_fallthru
          _
      $region36: #{tpu_custom_call.1} parent=5 // pred_fallthru
        _
      %p2759 = scmp.le.s32.totalorder 2, %s17
      // Predicated region
      $region49: #{tpu_custom_call.1} parent=5 // pred_check
        %p2760 = pneg %p2759
      $region50: #{tpu_custom_call.1} parent=5 // pred_check_branch
        %2762 = sbr.rel (%p2760) target = $region52
      $region51: #{tpu_custom_call.1} parent=5 // pred_region
        %s2763 = ssub.s32 %s17, 2
        // Predicated region
        $region53: #{tpu_custom_call.1} parent=51 // pred_check
          %p2764 = pneg %p135
        $region54: #{tpu_custom_call.1} parent=51 // pred_check_branch
          %2766 = sbr.rel (%p2764) target = $region56
        $region55: #{tpu_custom_call.1} parent=51 // pred_region
          %s2767 = sand.u32 %s120, 1
          %s2768 = scalar_lea.sflag [#allocation4], %s2767
          %s2769 = sand.u32 %s120, 1
          %s2770 = smul.addr %s2769, 64
          %s2771 = scalar_lea.vmem [#allocation7], %s2770
          %2772 = dma.done %s2768, 1024
        $region56: #{tpu_custom_call.1} parent=51 // pred_fallthru
          _
      $region52: #{tpu_custom_call.1} parent=5 // pred_fallthru
        _
    $region6: #{tpu_custom_call.1} parent=1 // loop_footer
      %s21 = sadd.s32 1, %s17
    $region7: #{tpu_custom_call.1} parent=1 // loop_footer_branch
      %16 = sbr.rel target = $region3
    $region8: #{tpu_custom_call.1} parent=1 // loop_exit
      _
    %2773 = vsyncpa [#allocation3], 1
    %s2774 = scalar_lea.sflag [#allocation3], 1
    %2775 = vsyncpa %s2774, 1
    %2776 = vsyncpa [#allocation4], 1
    %s2777 = scalar_lea.sflag [#allocation4], 1
    %2778 = vsyncpa %s2777, 1
    %2779 = vsyncpa [#allocation5], 1
    %s2780 = scalar_lea.sflag [#allocation5], 1
    %2781 = vsyncpa %s2780, 1

</llo_original>
